<compile_context>
chip_gen: v7x
topology: tpu7x:2x2x1
jax: 0.10.0
libtpu: 0.0.40
codegen_flags: <defaults>
</compile_context>

<pallas_src>
import functools

import jax
import jax.numpy as jnp
import numpy as np
from jax.experimental import pallas as pl
from jax.experimental.pallas import tpu as pltpu

N_CHANNELS = 4
SEQ_LEN = 128            # the Linear sizes in __init__ assume input length 128
ENCODED_DIM = 16
BN_EPS = 1e-5
LANE = 128               # channel dims are padded to one 128-wide lane tile


def _conv_len(lin, pad):
    return (lin + 2 * pad - 3) // 2 + 1


# ---------------------------------------------------------------------------
# host-side precomputation (static in B, L): 0/1 gather matrices per conv tap
# ---------------------------------------------------------------------------
@functools.lru_cache(maxsize=None)
def _gather_matrices(b_count, lin, pad, order_lb):
    """g[k, r, q] = 1 iff input row q = b*lin + i feeds output row r for tap k
    of a kernel=3 / stride=2 / padding=`pad` conv.  Output rows are ordered
    (b, l) (order_lb=False) or (l, b) (order_lb=True).  Out-of-range taps give
    all-zero rows, which implements the zero padding.  0/1 is exact in bf16."""
    lout = _conv_len(lin, pad)
    rout, rin = b_count * lout, b_count * lin
    g = np.zeros((3, rout, rin), np.float32)
    for k in range(3):
        for r in range(rout):
            if order_lb:
                b_out, l_out = r % b_count, r // b_count
            else:
                b_out, l_out = r // lout, r % lout
            src = 2 * l_out + k - pad
            if 0 <= src < lin:
                g[k, r, b_out * lin + src] = 1.0
    return g


def _fused_conv_weight(w, cin_pad):
    """(Cout, Cin, K) PyTorch conv weight -> (cin_pad, 3*LANE) bf16,
    column index = k*LANE + cout (channel-padded with zeros)."""
    cout, cin, _ = w.shape
    wk = jnp.transpose(w, (2, 1, 0))                              # (3, Cin, Cout)
    wk = jnp.pad(wk, ((0, 0), (0, cin_pad - cin), (0, LANE - cout)))
    return jnp.transpose(wk, (1, 0, 2)).reshape(cin_pad, 3 * LANE).astype(jnp.bfloat16)


def _pad_vec(v):
    return jnp.pad(v, ((0, 0), (0, LANE - v.shape[1])))


# ---------------------------------------------------------------------------
# in-kernel helpers
# ---------------------------------------------------------------------------
def _conv_block(act, g_ref, w_ref, b_ref, rout):
    """One Conv1d(k=3, s=2) as matmuls:
         y   = act @ [W0|W1|W2]          (1 MXU push, K = cin)
         out = sum_k G_k @ y_k  +  b     (3 big-K pushes into one f32 acc)"""
    y = jnp.dot(act.astype(jnp.bfloat16), w_ref[...],
                preferred_element_type=jnp.float32)               # (rin, 3*LANE)
    acc = jnp.zeros((rout, LANE), jnp.float32)
    for k in range(3):
        yk = y[:, k * LANE:(k + 1) * LANE].astype(jnp.bfloat16)
        acc = acc + jnp.dot(g_ref[k], yk, preferred_element_type=jnp.float32)
    return acc + b_ref[...]


def encoder_kernel(x_ref, g1_ref, w1_ref, b1_ref,
                   g2_ref, w2_ref, b2_ref, gamma_ref, beta_ref,
                   g3_ref, w3_ref, b3_ref,
                   wl1_ref, bl1_ref, wl2_ref, bl2_ref, out_ref,
                   *, batch, l1, l2, l3):
    # conv1 (4 -> 8, pad 1) + ReLU; rows ordered (b, l), channels on lanes
    h1 = jnp.maximum(_conv_block(x_ref[...], g1_ref, w1_ref, b1_ref, batch * l1), 0.0)

    # conv2 (8 -> 16, pad 1); rows ordered (b, l)
    h2 = _conv_block(h1, g2_ref, w2_ref, b2_ref, batch * l2)

    # BatchNorm1d(16) training-mode batch stats, folded into one scale/shift
    mean = jnp.mean(h2, axis=0, keepdims=True)
    var = jnp.mean(h2 * h2, axis=0, keepdims=True) - mean * mean
    s = gamma_ref[...] * jax.lax.rsqrt(var + BN_EPS)
    t = beta_ref[...] - mean * s
    h2 = jnp.maximum(h2 * s + t, 0.0)
    # TODO(synk): BatchNorm running_mean/running_var buffer updates (training
    # side effects) are not reproduced; they do not affect the forward output.

    # conv3 (16 -> 32, pad 0) + ReLU; rows ordered (l, b) so the flatten below
    # is a lane-aligned concat of per-position (batch, LANE) tiles
    h3 = jnp.maximum(_conv_block(h2, g3_ref, w3_ref, b3_ref, batch * l3), 0.0)

    # Flatten + Linear(32*l3, 128) as ONE lane-dense K = l3*LANE matmul
    h_flat = jnp.concatenate(
        [h3[l * batch:(l + 1) * batch, :] for l in range(l3)], axis=1)
    h4 = jnp.dot(h_flat.astype(jnp.bfloat16), wl1_ref[...],
                 preferred_element_type=jnp.float32) + bl1_ref[...]
    h4 = jnp.maximum(h4, 0.0)

    # Linear(128, encoded_space_dim)
    out_ref[...] = jnp.dot(h4.astype(jnp.bfloat16), wl2_ref[...],
                           preferred_element_type=jnp.float32) + bl2_ref[...]


# ---------------------------------------------------------------------------
# wrapper: host-side layout/padding glue + pallas_call
# ---------------------------------------------------------------------------
def encoder_forward(x, params):
    B, C, L = x.shape
    l1 = _conv_len(L, 1)
    l2 = _conv_len(l1, 1)
    l3 = _conv_len(l2, 0)
    E = params["bl2"].shape[1]
    bf16 = jnp.bfloat16

    # activations: (B, C, L) -> (B*L, C), row = b*L + l, channels on lanes
    x2 = jnp.transpose(x, (0, 2, 1)).reshape(B * L, C).astype(bf16)

    # host-precomputed 0/1 gather matrices (bf16), stacked over the 3 taps
    g1 = jnp.asarray(_gather_matrices(B, L, 1, False), bf16)
    g2 = jnp.asarray(_gather_matrices(B, l1, 1, False), bf16)
    g3 = jnp.asarray(_gather_matrices(B, l2, 0, True), bf16)

    # conv weights fused over taps, channel-padded to the lane tile
    w1a = _fused_conv_weight(params["w1"], C)
    w2a = _fused_conv_weight(params["w2"], LANE)
    w3a = _fused_conv_weight(params["w3"], LANE)
    b1p = _pad_vec(params["b1"])
    b2p = _pad_vec(params["b2"])
    b3p = _pad_vec(params["b3"])
    gammap = _pad_vec(params["gamma"])
    betap = _pad_vec(params["beta"])

    # Linear1 weight (128, 32*l3) -> (l3*LANE, 128); row = l*LANE + c matches
    # the lane-concatenated, channel-padded conv3 output (PyTorch flatten
    # order is c*l3 + l).
    wl1 = jnp.transpose(params["wl1"].reshape(128, 32, l3), (2, 1, 0))   # (l3,32,128)
    wl1 = jnp.pad(wl1, ((0, 0), (0, LANE - 32), (0, 0)))                  # (l3,LANE,128)
    wl1f = wl1.reshape(l3 * LANE, 128).astype(bf16)
    wl2t = jnp.transpose(params["wl2"]).astype(bf16)                      # (128, E)

    inputs = (x2, g1, w1a, b1p, g2, w2a, b2p, gammap, betap,
              g3, w3a, b3p, wl1f, params["bl1"], wl2t, params["bl2"])

    kernel = functools.partial(encoder_kernel, batch=B, l1=l1, l2=l2, l3=l3)
    # TODO(synk): for large batches, add a batch grid (row-tiled BlockSpecs,
    # dimension_semantics=("parallel",)) so both v7x TensorCores are used and
    # the input DMA is double-buffered; gather matrices then size with the
    # batch *tile*, keeping their B^2 footprint inside v7x's 64 MiB VMEM.
    return pl.pallas_call(
        kernel,
        out_shape=jax.ShapeDtypeStruct((B, E), jnp.float32),
        in_specs=[pl.BlockSpec(memory_space=pltpu.MemorySpace.VMEM)] * len(inputs),
        out_specs=pl.BlockSpec(memory_space=pltpu.MemorySpace.VMEM),
        compiler_params=pltpu.CompilerParams(vmem_limit_bytes=32 * 1024 * 1024),
    )(*inputs)


# ---------------------------------------------------------------------------
# deterministic parameter init (synthetic, PyTorch-like uniform bounds)
# ---------------------------------------------------------------------------
def init_params(key, n_channels, encoded_space_dim, l3):
    keys = jax.random.split(key, 10)

    def u(k, shape, fan_in):
        bound = 1.0 / (fan_in ** 0.5)
        return jax.random.uniform(k, shape, jnp.float32, -bound, bound)

    return dict(
        w1=u(keys[0], (8, n_channels, 3), n_channels * 3),
        b1=u(keys[1], (1, 8), n_channels * 3),
        w2=u(keys[2], (16, 8, 3), 8 * 3),
        b2=u(keys[3], (1, 16), 8 * 3),
        gamma=jnp.ones((1, 16), jnp.float32),
        beta=jnp.zeros((1, 16), jnp.float32),
        w3=u(keys[4], (32, 16, 3), 16 * 3),
        b3=u(keys[5], (1, 32), 16 * 3),
        wl1=u(keys[6], (128, 32 * l3), 32 * l3),
        bl1=u(keys[7], (1, 128), 32 * l3),
        wl2=u(keys[8], (encoded_space_dim, 128), 128),
        bl2=u(keys[9], (1, encoded_space_dim), 128),
    )


# ---------------------------------------------------------------------------
# pure-JAX f32 reference (same math as the PyTorch module, training-mode BN)
# ---------------------------------------------------------------------------
def reference_forward(x, params):
    def conv1d(h, w, b, stride, pad):
        y = jax.lax.conv_general_dilated(
            h, w, window_strides=(stride,), padding=[(pad, pad)],
            dimension_numbers=("NCH", "OIH", "NCH"))
        return y + b.reshape(1, -1, 1)

    h = jax.nn.relu(conv1d(x, params["w1"], params["b1"][0], 2, 1))
    h = conv1d(h, params["w2"], params["b2"][0], 2, 1)
    mean = jnp.mean(h, axis=(0, 2), keepdims=True)
    var = jnp.mean((h - mean) ** 2, axis=(0, 2), keepdims=True)
    h = (h - mean) / jnp.sqrt(var + BN_EPS)
    h = h * params["gamma"][0].reshape(1, -1, 1) + params["beta"][0].reshape(1, -1, 1)
    h = jax.nn.relu(h)
    h = jax.nn.relu(conv1d(h, params["w3"], params["b3"][0], 2, 0))
    flat = h.reshape(h.shape[0], -1)                           # channel-major flatten
    h = jax.nn.relu(flat @ params["wl1"].T + params["bl1"])
    return h @ params["wl2"].T + params["bl2"]


if __name__ == "__main__":
    key = jax.random.PRNGKey(0)
    kx, kp = jax.random.split(key)

    l1 = _conv_len(SEQ_LEN, 1)
    l2 = _conv_len(l1, 1)
    l3 = _conv_len(l2, 0)           # 15, matching _calculate_conv_output_size(128)

    params = init_params(kp, N_CHANNELS, ENCODED_DIM, l3)
    x = jax.random.normal(kx, (2, N_CHANNELS, SEQ_LEN), jnp.float32)

    out = jax.block_until_ready(encoder_forward(x, params))
    ref = reference_forward(x, params)

    # matmul operands are bf16 (MXU-native) with f32 accumulation; compare
    # against the f32 reference with a bf16-appropriate tolerance.
    np.testing.assert_allclose(np.asarray(out), np.asarray(ref),
                               rtol=2e-2, atol=2e-2)

    assert out.shape == (2, ENCODED_DIM)
    print("KERNEL_OK")
</pallas_src>

<mosaic_0001>
module attributes {stable_mosaic.version = 11 : i64} {
  func.func @encoder_kernel(%arg0: memref<256x4xbf16, #tpu.memory_space<vmem>>, %arg1: memref<3x128x256xbf16, #tpu.memory_space<vmem>>, %arg2: memref<4x384xbf16, #tpu.memory_space<vmem>>, %arg3: memref<1x128xf32, #tpu.memory_space<vmem>>, %arg4: memref<3x64x128xbf16, #tpu.memory_space<vmem>>, %arg5: memref<128x384xbf16, #tpu.memory_space<vmem>>, %arg6: memref<1x128xf32, #tpu.memory_space<vmem>>, %arg7: memref<1x128xf32, #tpu.memory_space<vmem>>, %arg8: memref<1x128xf32, #tpu.memory_space<vmem>>, %arg9: memref<3x30x64xbf16, #tpu.memory_space<vmem>>, %arg10: memref<128x384xbf16, #tpu.memory_space<vmem>>, %arg11: memref<1x128xf32, #tpu.memory_space<vmem>>, %arg12: memref<1920x128xbf16, #tpu.memory_space<vmem>>, %arg13: memref<1x128xf32, #tpu.memory_space<vmem>>, %arg14: memref<128x16xbf16, #tpu.memory_space<vmem>>, %arg15: memref<1x16xf32, #tpu.memory_space<vmem>>, %arg16: memref<2x16xf32, #tpu.memory_space<vmem>>) attributes {dimension_semantics = [], scalar_prefetch = 0 : i64, scratch_operands = 0 : i64, tpu.core_type = #tpu.core_type<tc>} {
    %c0 = arith.constant 0 : index
    %c0_0 = arith.constant 0 : index
    %0 = vector.load %arg0[%c0, %c0_0] : memref<256x4xbf16, #tpu.memory_space<vmem>>, vector<256x4xbf16>
    %c0_1 = arith.constant 0 : index
    %c0_2 = arith.constant 0 : index
    %1 = vector.load %arg2[%c0_1, %c0_2] : memref<4x384xbf16, #tpu.memory_space<vmem>>, vector<4x384xbf16>
    %cst = arith.constant dense<0.000000e+00> : vector<256x384xf32>
    %2 = tpu.matmul %0, %1, %cst {dimension_numbers = #tpu.dot_dimension_numbers<[1], [0], [0], [1], [0, 0, 1, 1], [], []>} : vector<256x4xbf16>, vector<4x384xbf16>, vector<256x384xf32> -> vector<256x384xf32>
    %cst_3 = arith.constant 0.000000e+00 : f32
    %3 = vector.broadcast %cst_3 : f32 to vector<128x128xf32>
    %4 = vector.extract_strided_slice %2 {offsets = [0, 0], sizes = [256, 128], strides = [1, 1]} : vector<256x384xf32> to vector<256x128xf32>
    %5 = arith.truncf %4 : vector<256x128xf32> to vector<256x128xbf16>
    %c0_4 = arith.constant 0 : index
    %c0_5 = arith.constant 0 : index
    %c0_6 = arith.constant 0 : index
    %6 = vector.load %arg1[%c0_4, %c0_5, %c0_6] : memref<3x128x256xbf16, #tpu.memory_space<vmem>>, vector<1x128x256xbf16>
    %7 = vector.shape_cast %6 : vector<1x128x256xbf16> to vector<128x256xbf16>
    %cst_7 = arith.constant dense<0.000000e+00> : vector<128x128xf32>
    %8 = tpu.matmul %7, %5, %cst_7 {dimension_numbers = #tpu.dot_dimension_numbers<[1], [0], [0], [1], [0, 0, 1, 1], [], []>} : vector<128x256xbf16>, vector<256x128xbf16>, vector<128x128xf32> -> vector<128x128xf32>
    %9 = arith.addf %3, %8 : vector<128x128xf32>
    %10 = vector.extract_strided_slice %2 {offsets = [0, 128], sizes = [256, 128], strides = [1, 1]} : vector<256x384xf32> to vector<256x128xf32>
    %11 = arith.truncf %10 : vector<256x128xf32> to vector<256x128xbf16>
    %c1 = arith.constant 1 : index
    %c0_8 = arith.constant 0 : index
    %c0_9 = arith.constant 0 : index
    %12 = vector.load %arg1[%c1, %c0_8, %c0_9] : memref<3x128x256xbf16, #tpu.memory_space<vmem>>, vector<1x128x256xbf16>
    %13 = vector.shape_cast %12 : vector<1x128x256xbf16> to vector<128x256xbf16>
    %cst_10 = arith.constant dense<0.000000e+00> : vector<128x128xf32>
    %14 = tpu.matmul %13, %11, %cst_10 {dimension_numbers = #tpu.dot_dimension_numbers<[1], [0], [0], [1], [0, 0, 1, 1], [], []>} : vector<128x256xbf16>, vector<256x128xbf16>, vector<128x128xf32> -> vector<128x128xf32>
    %15 = arith.addf %9, %14 : vector<128x128xf32>
    %16 = vector.extract_strided_slice %2 {offsets = [0, 256], sizes = [256, 128], strides = [1, 1]} : vector<256x384xf32> to vector<256x128xf32>
    %17 = arith.truncf %16 : vector<256x128xf32> to vector<256x128xbf16>
    %c2 = arith.constant 2 : index
    %c0_11 = arith.constant 0 : index
    %c0_12 = arith.constant 0 : index
    %18 = vector.load %arg1[%c2, %c0_11, %c0_12] : memref<3x128x256xbf16, #tpu.memory_space<vmem>>, vector<1x128x256xbf16>
    %19 = vector.shape_cast %18 : vector<1x128x256xbf16> to vector<128x256xbf16>
    %cst_13 = arith.constant dense<0.000000e+00> : vector<128x128xf32>
    %20 = tpu.matmul %19, %17, %cst_13 {dimension_numbers = #tpu.dot_dimension_numbers<[1], [0], [0], [1], [0, 0, 1, 1], [], []>} : vector<128x256xbf16>, vector<256x128xbf16>, vector<128x128xf32> -> vector<128x128xf32>
    %21 = arith.addf %15, %20 : vector<128x128xf32>
    %c0_14 = arith.constant 0 : index
    %c0_15 = arith.constant 0 : index
    %22 = vector.load %arg3[%c0_14, %c0_15] : memref<1x128xf32, #tpu.memory_space<vmem>>, vector<1x128xf32>
    %23 = vector.broadcast %22 : vector<1x128xf32> to vector<128x128xf32>
    %24 = arith.addf %21, %23 : vector<128x128xf32>
    %cst_16 = arith.constant 0.000000e+00 : f32
    %25 = vector.broadcast %cst_16 : f32 to vector<128x128xf32>
    %26 = arith.maximumf %24, %25 : vector<128x128xf32>
    %27 = arith.truncf %26 : vector<128x128xf32> to vector<128x128xbf16>
    %c0_17 = arith.constant 0 : index
    %c0_18 = arith.constant 0 : index
    %28 = vector.load %arg5[%c0_17, %c0_18] : memref<128x384xbf16, #tpu.memory_space<vmem>>, vector<128x384xbf16>
    %cst_19 = arith.constant dense<0.000000e+00> : vector<128x384xf32>
    %29 = tpu.matmul %27, %28, %cst_19 {dimension_numbers = #tpu.dot_dimension_numbers<[1], [0], [0], [1], [0, 0, 1, 1], [], []>} : vector<128x128xbf16>, vector<128x384xbf16>, vector<128x384xf32> -> vector<128x384xf32>
    %cst_20 = arith.constant 0.000000e+00 : f32
    %30 = vector.broadcast %cst_20 : f32 to vector<64x128xf32>
    %31 = vector.extract_strided_slice %29 {offsets = [0, 0], sizes = [128, 128], strides = [1, 1]} : vector<128x384xf32> to vector<128x128xf32>
    %32 = arith.truncf %31 : vector<128x128xf32> to vector<128x128xbf16>
    %c0_21 = arith.constant 0 : index
    %c0_22 = arith.constant 0 : index
    %c0_23 = arith.constant 0 : index
    %33 = vector.load %arg4[%c0_21, %c0_22, %c0_23] : memref<3x64x128xbf16, #tpu.memory_space<vmem>>, vector<1x64x128xbf16>
    %34 = vector.shape_cast %33 : vector<1x64x128xbf16> to vector<64x128xbf16>
    %cst_24 = arith.constant dense<0.000000e+00> : vector<64x128xf32>
    %35 = tpu.matmul %34, %32, %cst_24 {dimension_numbers = #tpu.dot_dimension_numbers<[1], [0], [0], [1], [0, 0, 1, 1], [], []>} : vector<64x128xbf16>, vector<128x128xbf16>, vector<64x128xf32> -> vector<64x128xf32>
    %36 = arith.addf %30, %35 : vector<64x128xf32>
    %37 = vector.extract_strided_slice %29 {offsets = [0, 128], sizes = [128, 128], strides = [1, 1]} : vector<128x384xf32> to vector<128x128xf32>
    %38 = arith.truncf %37 : vector<128x128xf32> to vector<128x128xbf16>
    %c1_25 = arith.constant 1 : index
    %c0_26 = arith.constant 0 : index
    %c0_27 = arith.constant 0 : index
    %39 = vector.load %arg4[%c1_25, %c0_26, %c0_27] : memref<3x64x128xbf16, #tpu.memory_space<vmem>>, vector<1x64x128xbf16>
    %40 = vector.shape_cast %39 : vector<1x64x128xbf16> to vector<64x128xbf16>
    %cst_28 = arith.constant dense<0.000000e+00> : vector<64x128xf32>
    %41 = tpu.matmul %40, %38, %cst_28 {dimension_numbers = #tpu.dot_dimension_numbers<[1], [0], [0], [1], [0, 0, 1, 1], [], []>} : vector<64x128xbf16>, vector<128x128xbf16>, vector<64x128xf32> -> vector<64x128xf32>
    %42 = arith.addf %36, %41 : vector<64x128xf32>
    %43 = vector.extract_strided_slice %29 {offsets = [0, 256], sizes = [128, 128], strides = [1, 1]} : vector<128x384xf32> to vector<128x128xf32>
    %44 = arith.truncf %43 : vector<128x128xf32> to vector<128x128xbf16>
    %c2_29 = arith.constant 2 : index
    %c0_30 = arith.constant 0 : index
    %c0_31 = arith.constant 0 : index
    %45 = vector.load %arg4[%c2_29, %c0_30, %c0_31] : memref<3x64x128xbf16, #tpu.memory_space<vmem>>, vector<1x64x128xbf16>
    %46 = vector.shape_cast %45 : vector<1x64x128xbf16> to vector<64x128xbf16>
    %cst_32 = arith.constant dense<0.000000e+00> : vector<64x128xf32>
    %47 = tpu.matmul %46, %44, %cst_32 {dimension_numbers = #tpu.dot_dimension_numbers<[1], [0], [0], [1], [0, 0, 1, 1], [], []>} : vector<64x128xbf16>, vector<128x128xbf16>, vector<64x128xf32> -> vector<64x128xf32>
    %48 = arith.addf %42, %47 : vector<64x128xf32>
    %c0_33 = arith.constant 0 : index
    %c0_34 = arith.constant 0 : index
    %49 = vector.load %arg6[%c0_33, %c0_34] : memref<1x128xf32, #tpu.memory_space<vmem>>, vector<1x128xf32>
    %50 = vector.broadcast %49 : vector<1x128xf32> to vector<64x128xf32>
    %51 = arith.addf %48, %50 : vector<64x128xf32>
    %cst_35 = arith.constant dense<0.000000e+00> : vector<128xf32>
    %52 = vector.multi_reduction <add>, %51, %cst_35 [0] : vector<64x128xf32> to vector<128xf32>
    %53 = vector.shape_cast %52 : vector<128xf32> to vector<1x128xf32>
    %cst_36 = arith.constant 6.400000e+01 : f32
    %54 = vector.broadcast %cst_36 : f32 to vector<1x128xf32>
    %55 = arith.divf %53, %54 : vector<1x128xf32>
    %56 = arith.mulf %51, %51 : vector<64x128xf32>
    %cst_37 = arith.constant dense<0.000000e+00> : vector<128xf32>
    %57 = vector.multi_reduction <add>, %56, %cst_37 [0] : vector<64x128xf32> to vector<128xf32>
    %58 = vector.shape_cast %57 : vector<128xf32> to vector<1x128xf32>
    %cst_38 = arith.constant 6.400000e+01 : f32
    %59 = vector.broadcast %cst_38 : f32 to vector<1x128xf32>
    %60 = arith.divf %58, %59 : vector<1x128xf32>
    %61 = arith.mulf %55, %55 : vector<1x128xf32>
    %62 = arith.subf %60, %61 : vector<1x128xf32>
    %c0_39 = arith.constant 0 : index
    %c0_40 = arith.constant 0 : index
    %63 = vector.load %arg7[%c0_39, %c0_40] : memref<1x128xf32, #tpu.memory_space<vmem>>, vector<1x128xf32>
    %cst_41 = arith.constant 9.99999974E-6 : f32
    %64 = vector.broadcast %cst_41 : f32 to vector<1x128xf32>
    %65 = arith.addf %62, %64 : vector<1x128xf32>
    %66 = math.rsqrt %65 : vector<1x128xf32>
    %67 = arith.mulf %63, %66 : vector<1x128xf32>
    %c0_42 = arith.constant 0 : index
    %c0_43 = arith.constant 0 : index
    %68 = vector.load %arg8[%c0_42, %c0_43] : memref<1x128xf32, #tpu.memory_space<vmem>>, vector<1x128xf32>
    %69 = arith.mulf %55, %67 : vector<1x128xf32>
    %70 = arith.subf %68, %69 : vector<1x128xf32>
    %71 = vector.broadcast %67 : vector<1x128xf32> to vector<64x128xf32>
    %72 = arith.mulf %51, %71 : vector<64x128xf32>
    %73 = vector.broadcast %70 : vector<1x128xf32> to vector<64x128xf32>
    %74 = arith.addf %72, %73 : vector<64x128xf32>
    %cst_44 = arith.constant 0.000000e+00 : f32
    %75 = vector.broadcast %cst_44 : f32 to vector<64x128xf32>
    %76 = arith.maximumf %74, %75 : vector<64x128xf32>
    %77 = arith.truncf %76 : vector<64x128xf32> to vector<64x128xbf16>
    %c0_45 = arith.constant 0 : index
    %c0_46 = arith.constant 0 : index
    %78 = vector.load %arg10[%c0_45, %c0_46] : memref<128x384xbf16, #tpu.memory_space<vmem>>, vector<128x384xbf16>
    %cst_47 = arith.constant dense<0.000000e+00> : vector<64x384xf32>
    %79 = tpu.matmul %77, %78, %cst_47 {dimension_numbers = #tpu.dot_dimension_numbers<[1], [0], [0], [1], [0, 0, 1, 1], [], []>} : vector<64x128xbf16>, vector<128x384xbf16>, vector<64x384xf32> -> vector<64x384xf32>
    %cst_48 = arith.constant 0.000000e+00 : f32
    %80 = vector.broadcast %cst_48 : f32 to vector<30x128xf32>
    %81 = vector.extract_strided_slice %79 {offsets = [0, 0], sizes = [64, 128], strides = [1, 1]} : vector<64x384xf32> to vector<64x128xf32>
    %82 = arith.truncf %81 : vector<64x128xf32> to vector<64x128xbf16>
    %c0_49 = arith.constant 0 : index
    %c0_50 = arith.constant 0 : index
    %c0_51 = arith.constant 0 : index
    %83 = vector.load %arg9[%c0_49, %c0_50, %c0_51] : memref<3x30x64xbf16, #tpu.memory_space<vmem>>, vector<1x30x64xbf16>
    %84 = vector.shape_cast %83 : vector<1x30x64xbf16> to vector<30x64xbf16>
    %cst_52 = arith.constant dense<0.000000e+00> : vector<30x128xf32>
    %85 = tpu.matmul %84, %82, %cst_52 {dimension_numbers = #tpu.dot_dimension_numbers<[1], [0], [0], [1], [0, 0, 1, 1], [], []>} : vector<30x64xbf16>, vector<64x128xbf16>, vector<30x128xf32> -> vector<30x128xf32>
    %86 = arith.addf %80, %85 : vector<30x128xf32>
    %87 = vector.extract_strided_slice %79 {offsets = [0, 128], sizes = [64, 128], strides = [1, 1]} : vector<64x384xf32> to vector<64x128xf32>
    %88 = arith.truncf %87 : vector<64x128xf32> to vector<64x128xbf16>
    %c1_53 = arith.constant 1 : index
    %c0_54 = arith.constant 0 : index
    %c0_55 = arith.constant 0 : index
    %89 = vector.load %arg9[%c1_53, %c0_54, %c0_55] : memref<3x30x64xbf16, #tpu.memory_space<vmem>>, vector<1x30x64xbf16>
    %90 = vector.shape_cast %89 : vector<1x30x64xbf16> to vector<30x64xbf16>
    %cst_56 = arith.constant dense<0.000000e+00> : vector<30x128xf32>
    %91 = tpu.matmul %90, %88, %cst_56 {dimension_numbers = #tpu.dot_dimension_numbers<[1], [0], [0], [1], [0, 0, 1, 1], [], []>} : vector<30x64xbf16>, vector<64x128xbf16>, vector<30x128xf32> -> vector<30x128xf32>
    %92 = arith.addf %86, %91 : vector<30x128xf32>
    %93 = vector.extract_strided_slice %79 {offsets = [0, 256], sizes = [64, 128], strides = [1, 1]} : vector<64x384xf32> to vector<64x128xf32>
    %94 = arith.truncf %93 : vector<64x128xf32> to vector<64x128xbf16>
    %c2_57 = arith.constant 2 : index
    %c0_58 = arith.constant 0 : index
    %c0_59 = arith.constant 0 : index
    %95 = vector.load %arg9[%c2_57, %c0_58, %c0_59] : memref<3x30x64xbf16, #tpu.memory_space<vmem>>, vector<1x30x64xbf16>
    %96 = vector.shape_cast %95 : vector<1x30x64xbf16> to vector<30x64xbf16>
    %cst_60 = arith.constant dense<0.000000e+00> : vector<30x128xf32>
    %97 = tpu.matmul %96, %94, %cst_60 {dimension_numbers = #tpu.dot_dimension_numbers<[1], [0], [0], [1], [0, 0, 1, 1], [], []>} : vector<30x64xbf16>, vector<64x128xbf16>, vector<30x128xf32> -> vector<30x128xf32>
    %98 = arith.addf %92, %97 : vector<30x128xf32>
    %c0_61 = arith.constant 0 : index
    %c0_62 = arith.constant 0 : index
    %99 = vector.load %arg11[%c0_61, %c0_62] : memref<1x128xf32, #tpu.memory_space<vmem>>, vector<1x128xf32>
    %100 = vector.broadcast %99 : vector<1x128xf32> to vector<30x128xf32>
    %101 = arith.addf %98, %100 : vector<30x128xf32>
    %cst_63 = arith.constant 0.000000e+00 : f32
    %102 = vector.broadcast %cst_63 : f32 to vector<30x128xf32>
    %103 = arith.maximumf %101, %102 : vector<30x128xf32>
    %104 = vector.extract_strided_slice %103 {offsets = [0, 0], sizes = [2, 128], strides = [1, 1]} : vector<30x128xf32> to vector<2x128xf32>
    %105 = vector.extract_strided_slice %103 {offsets = [2, 0], sizes = [2, 128], strides = [1, 1]} : vector<30x128xf32> to vector<2x128xf32>
    %106 = vector.extract_strided_slice %103 {offsets = [4, 0], sizes = [2, 128], strides = [1, 1]} : vector<30x128xf32> to vector<2x128xf32>
    %107 = vector.extract_strided_slice %103 {offsets = [6, 0], sizes = [2, 128], strides = [1, 1]} : vector<30x128xf32> to vector<2x128xf32>
    %108 = vector.extract_strided_slice %103 {offsets = [8, 0], sizes = [2, 128], strides = [1, 1]} : vector<30x128xf32> to vector<2x128xf32>
    %109 = vector.extract_strided_slice %103 {offsets = [10, 0], sizes = [2, 128], strides = [1, 1]} : vector<30x128xf32> to vector<2x128xf32>
    %110 = vector.extract_strided_slice %103 {offsets = [12, 0], sizes = [2, 128], strides = [1, 1]} : vector<30x128xf32> to vector<2x128xf32>
    %111 = vector.extract_strided_slice %103 {offsets = [14, 0], sizes = [2, 128], strides = [1, 1]} : vector<30x128xf32> to vector<2x128xf32>
    %112 = vector.extract_strided_slice %103 {offsets = [16, 0], sizes = [2, 128], strides = [1, 1]} : vector<30x128xf32> to vector<2x128xf32>
    %113 = vector.extract_strided_slice %103 {offsets = [18, 0], sizes = [2, 128], strides = [1, 1]} : vector<30x128xf32> to vector<2x128xf32>
    %114 = vector.extract_strided_slice %103 {offsets = [20, 0], sizes = [2, 128], strides = [1, 1]} : vector<30x128xf32> to vector<2x128xf32>
    %115 = vector.extract_strided_slice %103 {offsets = [22, 0], sizes = [2, 128], strides = [1, 1]} : vector<30x128xf32> to vector<2x128xf32>
    %116 = vector.extract_strided_slice %103 {offsets = [24, 0], sizes = [2, 128], strides = [1, 1]} : vector<30x128xf32> to vector<2x128xf32>
    %117 = vector.extract_strided_slice %103 {offsets = [26, 0], sizes = [2, 128], strides = [1, 1]} : vector<30x128xf32> to vector<2x128xf32>
    %118 = vector.extract_strided_slice %103 {offsets = [28, 0], sizes = [2, 128], strides = [1, 1]} : vector<30x128xf32> to vector<2x128xf32>
    %119 = tpu.concatenate %104, %105, %106, %107, %108, %109, %110, %111, %112, %113, %114, %115, %116, %117, %118 in 1 : vector<2x128xf32>, vector<2x128xf32>, vector<2x128xf32>, vector<2x128xf32>, vector<2x128xf32>, vector<2x128xf32>, vector<2x128xf32>, vector<2x128xf32>, vector<2x128xf32>, vector<2x128xf32>, vector<2x128xf32>, vector<2x128xf32>, vector<2x128xf32>, vector<2x128xf32>, vector<2x128xf32> -> vector<2x1920xf32>
    %120 = arith.truncf %119 : vector<2x1920xf32> to vector<2x1920xbf16>
    %c0_64 = arith.constant 0 : index
    %c0_65 = arith.constant 0 : index
    %121 = vector.load %arg12[%c0_64, %c0_65] : memref<1920x128xbf16, #tpu.memory_space<vmem>>, vector<1920x128xbf16>
    %cst_66 = arith.constant dense<0.000000e+00> : vector<2x128xf32>
    %122 = tpu.matmul %120, %121, %cst_66 {dimension_numbers = #tpu.dot_dimension_numbers<[1], [0], [0], [1], [0, 0, 1, 1], [], []>} : vector<2x1920xbf16>, vector<1920x128xbf16>, vector<2x128xf32> -> vector<2x128xf32>
    %c0_67 = arith.constant 0 : index
    %c0_68 = arith.constant 0 : index
    %123 = vector.load %arg13[%c0_67, %c0_68] : memref<1x128xf32, #tpu.memory_space<vmem>>, vector<1x128xf32>
    %124 = vector.broadcast %123 : vector<1x128xf32> to vector<2x128xf32>
    %125 = arith.addf %122, %124 : vector<2x128xf32>
    %cst_69 = arith.constant 0.000000e+00 : f32
    %126 = vector.broadcast %cst_69 : f32 to vector<2x128xf32>
    %127 = arith.maximumf %125, %126 : vector<2x128xf32>
    %128 = arith.truncf %127 : vector<2x128xf32> to vector<2x128xbf16>
    %c0_70 = arith.constant 0 : index
    %c0_71 = arith.constant 0 : index
    %129 = vector.load %arg14[%c0_70, %c0_71] : memref<128x16xbf16, #tpu.memory_space<vmem>>, vector<128x16xbf16>
    %cst_72 = arith.constant dense<0.000000e+00> : vector<2x16xf32>
    %130 = tpu.matmul %128, %129, %cst_72 {dimension_numbers = #tpu.dot_dimension_numbers<[1], [0], [0], [1], [0, 0, 1, 1], [], []>} : vector<2x128xbf16>, vector<128x16xbf16>, vector<2x16xf32> -> vector<2x16xf32>
    %c0_73 = arith.constant 0 : index
    %c0_74 = arith.constant 0 : index
    %131 = vector.load %arg15[%c0_73, %c0_74] : memref<1x16xf32, #tpu.memory_space<vmem>>, vector<1x16xf32>
    %132 = vector.broadcast %131 : vector<1x16xf32> to vector<2x16xf32>
    %133 = arith.addf %130, %132 : vector<2x16xf32>
    %c0_75 = arith.constant 0 : index
    %c0_76 = arith.constant 0 : index
    %134 = vector.load %arg16[%c0_75, %c0_76] : memref<2x16xf32, #tpu.memory_space<vmem>>, vector<2x16xf32>
    tpu.vector_store %arg16[%c0_75, %c0_76], %133 {strides = array<i32>} : memref<2x16xf32, #tpu.memory_space<vmem>>, vector<2x16xf32>,
    return
  }
}

</mosaic_0001>

<llo_original>
// kernel: tpu_custom_call.1
$region0: #{tpu_custom_call.1}
  #allocation0 [shape = 'u32[]', space=smem, size = 0x4, offset = 0x4, fixed_abs, tag = 'smem constant byte address 0x4 - core index']
  #allocation1 [shape = 'u32[144,128]{1,0:T(1,128)}', space=vmem, size = 0x12000, scoped, tag = 'internal scratch']
  %s0 = inlined_call_operand.vmem [shape: bf16[256,4], index: 0, kind: input, shape index: {}]
  %s1 = inlined_call_operand.hbm [shape: bf16[3,128,256], index: 1, kind: input, shape index: {}]
  %s2 = inlined_call_operand.vmem [shape: bf16[4,384], index: 2, kind: input, shape index: {}]
  %s3 = inlined_call_operand.vmem [shape: f32[1,128], index: 3, kind: input, shape index: {}]
  %s4 = inlined_call_operand.hbm [shape: bf16[3,64,128], index: 4, kind: input, shape index: {}]
  %s5 = inlined_call_operand.vmem [shape: bf16[128,384], index: 5, kind: input, shape index: {}]
  %s6 = inlined_call_operand.vmem [shape: f32[1,128], index: 6, kind: input, shape index: {}]
  %s7 = inlined_call_operand.vmem [shape: f32[1,128], index: 7, kind: input, shape index: {}]
  %s8 = inlined_call_operand.vmem [shape: f32[1,128], index: 8, kind: input, shape index: {}]
  %s9 = inlined_call_operand.hbm [shape: bf16[3,30,64], index: 9, kind: input, shape index: {}]
  %s10 = inlined_call_operand.hbm [shape: bf16[128,384], index: 10, kind: input, shape index: {}]
  %s11 = inlined_call_operand.vmem [shape: f32[1,128], index: 11, kind: input, shape index: {}]
  %s12 = inlined_call_operand.hbm [shape: bf16[1920,128], index: 12, kind: input, shape index: {}]
  %s13 = inlined_call_operand.vmem [shape: f32[1,128], index: 13, kind: input, shape index: {}]
  %s14 = inlined_call_operand.vmem [shape: bf16[128,16], index: 14, kind: input, shape index: {}]
  %s15 = inlined_call_operand.vmem [shape: f32[1,16], index: 15, kind: input, shape index: {}]
  %s16 = inlined_call_operand.hbm [shape: f32[2,16], index: 16, kind: output, shape index: {}]
  %s17 = sld [smem:[#allocation0]]
  $region94: #{tpu_custom_call.1} parent=0
    _
  %s19 = ssub.s32 1, %s17
  %s20 = scalar_select 0, %s19, %s17
  $region1: #{tpu_custom_call.1} parent=0
    #allocation2 [shape = 'u8[196608]{0}', space=vmem, size = 0x30000, scoped, tag = 'input window, operand 1, single buffered']
    #allocation3 [shape = 's32[1]{0}', space=sflag, size = 0x4, scoped, tag = 'scoped memory for tpu_custom_call.1']
    #allocation4 [shape = 's32[1]{0}', space=sflag, size = 0x4, scoped, tag = 'scoped memory for tpu_custom_call.1']
    #allocation5 [shape = 'u8[49152]{0}', space=vmem, size = 0xc000, scoped, tag = 'input window, operand 4, single buffered']
    #allocation6 [shape = 's32[1]{0}', space=sflag, size = 0x4, scoped, tag = 'scoped memory for tpu_custom_call.1']
    #allocation7 [shape = 'u8[24576]{0}', space=vmem, size = 0x6000, scoped, tag = 'input window, operand 9, single buffered']
    #allocation8 [shape = 'u8[98304]{0}', space=vmem, size = 0x18000, scoped, tag = 'input window, operand 10, single buffered']
    #allocation9 [shape = 's32[1]{0}', space=sflag, size = 0x4, scoped, tag = 'scoped memory for tpu_custom_call.1']
    #allocation10 [shape = 'u8[491520]{0}', space=vmem, size = 0x78000, scoped, tag = 'input window, operand 12, single buffered']
    #allocation11 [shape = 'u8[1024]{0}', space=vmem, size = 0x400, scoped, tag = 'output window, operand 0, single buffered']
    %21 = vsyncpa [#allocation3], 0
    %22 = vsyncpa [#allocation6], 0
    %23 = vsyncpa [#allocation9], 0
    %24 = vsyncpa [#allocation4], 0
    // Predicated region
    $region2: #{tpu_custom_call.1} parent=1 // pred_check
      _
    $region3: #{tpu_custom_call.1} parent=1 // pred_check_branch
      %26 = sbr.rel (0) target = $region5
    $region4: #{tpu_custom_call.1} parent=1 // pred_region
      _
    $region5: #{tpu_custom_call.1} parent=1 // pred_fallthru
      _
    // Predicated region
    $region6: #{tpu_custom_call.1} parent=1 // pred_check
      _
    $region7: #{tpu_custom_call.1} parent=1 // pred_check_branch
      %28 = sbr.rel (0) target = $region9
    $region8: #{tpu_custom_call.1} parent=1 // pred_region
      %s30 = ssub.s32 6144, 6144
      %31 = vsyncadd [#allocation3], %s30
      %s32 = sshll.u32 [#allocation2], 4
      %s33 = int_to_ptr.vmem [resolvable:$true] %s32
      %38 = dma.hbm_to_vmem [thread:$0]  %s1, 6144, %s33, [#allocation3], 128, 128, 8
    $region9: #{tpu_custom_call.1} parent=1 // pred_fallthru
      _
    // Predicated region
    $region10: #{tpu_custom_call.1} parent=1 // pred_check
      _
    $region11: #{tpu_custom_call.1} parent=1 // pred_check_branch
      %40 = sbr.rel (0) target = $region13
    $region12: #{tpu_custom_call.1} parent=1 // pred_region
      _
    $region13: #{tpu_custom_call.1} parent=1 // pred_fallthru
      _
    // Predicated region
    $region14: #{tpu_custom_call.1} parent=1 // pred_check
      _
    $region15: #{tpu_custom_call.1} parent=1 // pred_check_branch
      %42 = sbr.rel (0) target = $region17
    $region16: #{tpu_custom_call.1} parent=1 // pred_region
      _
    $region17: #{tpu_custom_call.1} parent=1 // pred_fallthru
      _
    // Predicated region
    $region18: #{tpu_custom_call.1} parent=1 // pred_check
      _
    $region19: #{tpu_custom_call.1} parent=1 // pred_check_branch
      %44 = sbr.rel (0) target = $region21
    $region20: #{tpu_custom_call.1} parent=1 // pred_region
      %s46 = ssub.s32 1536, 1536
      %47 = vsyncadd [#allocation6], %s46
      %s48 = sshll.u32 [#allocation5], 4
      %s49 = int_to_ptr.vmem [resolvable:$true] %s48
      %54 = dma.hbm_to_vmem [thread:$0]  %s4, 1536, %s49, [#allocation6], 64, 64, 4
    $region21: #{tpu_custom_call.1} parent=1 // pred_fallthru
      _
    // Predicated region
    $region22: #{tpu_custom_call.1} parent=1 // pred_check
      _
    $region23: #{tpu_custom_call.1} parent=1 // pred_check_branch
      %56 = sbr.rel (0) target = $region25
    $region24: #{tpu_custom_call.1} parent=1 // pred_region
      _
    $region25: #{tpu_custom_call.1} parent=1 // pred_fallthru
      _
    // Predicated region
    $region26: #{tpu_custom_call.1} parent=1 // pred_check
      _
    $region27: #{tpu_custom_call.1} parent=1 // pred_check_branch
      %58 = sbr.rel (0) target = $region29
    $region28: #{tpu_custom_call.1} parent=1 // pred_region
      _
    $region29: #{tpu_custom_call.1} parent=1 // pred_fallthru
      _
    // Predicated region
    $region30: #{tpu_custom_call.1} parent=1 // pred_check
      _
    $region31: #{tpu_custom_call.1} parent=1 // pred_check_branch
      %60 = sbr.rel (0) target = $region33
    $region32: #{tpu_custom_call.1} parent=1 // pred_region
      _
    $region33: #{tpu_custom_call.1} parent=1 // pred_fallthru
      _
    // Predicated region
    $region34: #{tpu_custom_call.1} parent=1 // pred_check
      _
    $region35: #{tpu_custom_call.1} parent=1 // pred_check_branch
      %62 = sbr.rel (0) target = $region37
    $region36: #{tpu_custom_call.1} parent=1 // pred_region
      _
    $region37: #{tpu_custom_call.1} parent=1 // pred_fallthru
      _
    // Predicated region
    $region38: #{tpu_custom_call.1} parent=1 // pred_check
      _
    $region39: #{tpu_custom_call.1} parent=1 // pred_check_branch
      %64 = sbr.rel (0) target = $region41
    $region40: #{tpu_custom_call.1} parent=1 // pred_region
      %s66 = ssub.s32 768, 768
      %67 = vsyncadd [#allocation6], %s66
      %s68 = sshll.u32 [#allocation7], 4
      %s69 = int_to_ptr.vmem [resolvable:$true] %s68
      %74 = dma.hbm_to_vmem [thread:$0]  %s9, 768, %s69, [#allocation6], 64, 64, 4
    $region41: #{tpu_custom_call.1} parent=1 // pred_fallthru
      _
    // Predicated region
    $region42: #{tpu_custom_call.1} parent=1 // pred_check
      _
    $region43: #{tpu_custom_call.1} parent=1 // pred_check_branch
      %76 = sbr.rel (0) target = $region45
    $region44: #{tpu_custom_call.1} parent=1 // pred_region
      %s78 = ssub.s32 3072, 3072
      %79 = vsyncadd [#allocation9], %s78
      %s80 = sshll.u32 [#allocation8], 4
      %s81 = int_to_ptr.vmem [resolvable:$true] %s80
      %86 = dma.hbm_to_vmem [thread:$0]  %s10, 3072, %s81, [#allocation9], 192, 192, 12
    $region45: #{tpu_custom_call.1} parent=1 // pred_fallthru
      _
    // Predicated region
    $region46: #{tpu_custom_call.1} parent=1 // pred_check
      _
    $region47: #{tpu_custom_call.1} parent=1 // pred_check_branch
      %88 = sbr.rel (0) target = $region49
    $region48: #{tpu_custom_call.1} parent=1 // pred_region
      _
    $region49: #{tpu_custom_call.1} parent=1 // pred_fallthru
      _
    // Predicated region
    $region50: #{tpu_custom_call.1} parent=1 // pred_check
      _
    $region51: #{tpu_custom_call.1} parent=1 // pred_check_branch
      %90 = sbr.rel (0) target = $region53
    $region52: #{tpu_custom_call.1} parent=1 // pred_region
      %s92 = ssub.s32 15360, 15360
      %93 = vsyncadd [#allocation9], %s92
      %s94 = sshll.u32 [#allocation10], 4
      %s95 = int_to_ptr.vmem [resolvable:$true] %s94
      %100 = dma.hbm_to_vmem [thread:$0]  %s12, 15360, %s95, [#allocation9], 64, 64, 4
    $region53: #{tpu_custom_call.1} parent=1 // pred_fallthru
      _
    // Predicated region
    $region54: #{tpu_custom_call.1} parent=1 // pred_check
      _
    $region55: #{tpu_custom_call.1} parent=1 // pred_check_branch
      %102 = sbr.rel (0) target = $region57
    $region56: #{tpu_custom_call.1} parent=1 // pred_region
      _
    $region57: #{tpu_custom_call.1} parent=1 // pred_fallthru
      _
    // Predicated region
    $region58: #{tpu_custom_call.1} parent=1 // pred_check
      _
    $region59: #{tpu_custom_call.1} parent=1 // pred_check_branch
      %104 = sbr.rel (0) target = $region61
    $region60: #{tpu_custom_call.1} parent=1 // pred_region
      _
    $region61: #{tpu_custom_call.1} parent=1 // pred_fallthru
      _
    // Predicated region
    $region62: #{tpu_custom_call.1} parent=1 // pred_check
      _
    $region63: #{tpu_custom_call.1} parent=1 // pred_check_branch
      %106 = sbr.rel (0) target = $region65
    $region64: #{tpu_custom_call.1} parent=1 // pred_region
      _
    $region65: #{tpu_custom_call.1} parent=1 // pred_fallthru
      _
    // Predicated region
    $region66: #{tpu_custom_call.1} parent=1 // pred_check
      _
    $region67: #{tpu_custom_call.1} parent=1 // pred_check_branch
      %108 = sbr.rel (0) target = $region69
    $region68: #{tpu_custom_call.1} parent=1 // pred_region
      %109 = dma.done [#allocation3], 6144
    $region69: #{tpu_custom_call.1} parent=1 // pred_fallthru
      _
    // Predicated region
    $region70: #{tpu_custom_call.1} parent=1 // pred_check
      _
    $region71: #{tpu_custom_call.1} parent=1 // pred_check_branch
      %111 = sbr.rel (0) target = $region73
    $region72: #{tpu_custom_call.1} parent=1 // pred_region
      %112 = dma.done [#allocation6], 1536
    $region73: #{tpu_custom_call.1} parent=1 // pred_fallthru
      _
    // Predicated region
    $region74: #{tpu_custom_call.1} parent=1 // pred_check
      _
    $region75: #{tpu_custom_call.1} parent=1 // pred_check_branch
      %114 = sbr.rel (0) target = $region77
    $region76: #{tpu_custom_call.1} parent=1 // pred_region
      %115 = dma.done [#allocation6], 768
    $region77: #{tpu_custom_call.1} parent=1 // pred_fallthru
      _
    // Predicated region
    $region78: #{tpu_custom_call.1} parent=1 // pred_check
      _
    $region79: #{tpu_custom_call.1} parent=1 // pred_check_branch
      %117 = sbr.rel (0) target = $region81
    $region80: #{tpu_custom_call.1} parent=1 // pred_region
      %118 = dma.done [#allocation9], 3072
    $region81: #{tpu_custom_call.1} parent=1 // pred_fallthru
      _
    // Predicated region
    $region82: #{tpu_custom_call.1} parent=1 // pred_check
      _
    $region83: #{tpu_custom_call.1} parent=1 // pred_check_branch
      %120 = sbr.rel (0) target = $region85
    $region84: #{tpu_custom_call.1} parent=1 // pred_region
      %121 = dma.done [#allocation9], 15360
    $region85: #{tpu_custom_call.1} parent=1 // pred_fallthru
      _
    %v123 = vld [vmem:[%s0] sm:$0xf]
    %v124 = vld [vmem:[%s0 + $0x4] sm:$0xf]
    %v125 = vld [vmem:[%s0 + $0x8] sm:$0xf]
    %v126 = vld [vmem:[%s0 + $0xc] sm:$0xf]
    %v127 = vld [vmem:[%s0 + $0x10] sm:$0xf]
    %v128 = vld [vmem:[%s0 + $0x14] sm:$0xf]
    %v129 = vld [vmem:[%s0 + $0x18] sm:$0xf]
    %v130 = vld [vmem:[%s0 + $0x1c] sm:$0xf]
    %v131 = vld [vmem:[%s0 + $0x20] sm:$0xf]
    %v132 = vld [vmem:[%s0 + $0x24] sm:$0xf]
    %v133 = vld [vmem:[%s0 + $0x28] sm:$0xf]
    %v134 = vld [vmem:[%s0 + $0x2c] sm:$0xf]
    %v135 = vld [vmem:[%s0 + $0x30] sm:$0xf]
    %v136 = vld [vmem:[%s0 + $0x34] sm:$0xf]
    %v137 = vld [vmem:[%s0 + $0x38] sm:$0xf]
    %v138 = vld [vmem:[%s0 + $0x3c] sm:$0xf]
    %v139 = vld [vmem:[%s0 + $0x40] sm:$0xf]
    %v140 = vld [vmem:[%s0 + $0x44] sm:$0xf]
    %v141 = vld [vmem:[%s0 + $0x48] sm:$0xf]
    %v142 = vld [vmem:[%s0 + $0x4c] sm:$0xf]
    %v143 = vld [vmem:[%s0 + $0x50] sm:$0xf]
    %v144 = vld [vmem:[%s0 + $0x54] sm:$0xf]
    %v145 = vld [vmem:[%s0 + $0x58] sm:$0xf]
    %v146 = vld [vmem:[%s0 + $0x5c] sm:$0xf]
    %v147 = vld [vmem:[%s0 + $0x60] sm:$0xf]
    %v148 = vld [vmem:[%s0 + $0x64] sm:$0xf]
    %v149 = vld [vmem:[%s0 + $0x68] sm:$0xf]
    %v150 = vld [vmem:[%s0 + $0x6c] sm:$0xf]
    %v151 = vld [vmem:[%s0 + $0x70] sm:$0xf]
    %v152 = vld [vmem:[%s0 + $0x74] sm:$0xf]
    %v153 = vld [vmem:[%s0 + $0x78] sm:$0xf]
    %v154 = vld [vmem:[%s0 + $0x7c] sm:$0xf]
    %v155 = vld [vmem:[%s2] sm:$0x3f]
    %v188 = vunpack.c.l.b16 %v123
    %v189 = vunpack.c.l.b16 %v124
    %v190 = vunpack.c.l.b16 %v125
    %v191 = vunpack.c.l.b16 %v126
    %v192 = vunpack.c.l.b16 %v127
    %v193 = vunpack.c.l.b16 %v128
    %v194 = vunpack.c.l.b16 %v129
    %v195 = vunpack.c.l.b16 %v130
    %v196 = vunpack.c.l.b16 %v131
    %v197 = vunpack.c.l.b16 %v132
    %v198 = vunpack.c.l.b16 %v133
    %v199 = vunpack.c.l.b16 %v134
    %v200 = vunpack.c.l.b16 %v135
    %v201 = vunpack.c.l.b16 %v136
    %v202 = vunpack.c.l.b16 %v137
    %v203 = vunpack.c.l.b16 %v138
    %v204 = vunpack.c.l.b16 %v139
    %v205 = vunpack.c.l.b16 %v140
    %v206 = vunpack.c.l.b16 %v141
    %v207 = vunpack.c.l.b16 %v142
    %v208 = vunpack.c.l.b16 %v143
    %v209 = vunpack.c.l.b16 %v144
    %v210 = vunpack.c.l.b16 %v145
    %v211 = vunpack.c.l.b16 %v146
    %v212 = vunpack.c.l.b16 %v147
    %v213 = vunpack.c.l.b16 %v148
    %v214 = vunpack.c.l.b16 %v149
    %v215 = vunpack.c.l.b16 %v150
    %v216 = vunpack.c.l.b16 %v151
    %v217 = vunpack.c.l.b16 %v152
    %v218 = vunpack.c.l.b16 %v153
    %v219 = vunpack.c.l.b16 %v154
    %v220 = vpack.c.b16 %v189, %v188
    %v221 = vpack.c.b16 %v191, %v190
    %v222 = vpack.c.b16 %v193, %v192
    %v223 = vpack.c.b16 %v195, %v194
    %v224 = vpack.c.b16 %v197, %v196
    %v225 = vpack.c.b16 %v199, %v198
    %v226 = vpack.c.b16 %v201, %v200
    %v227 = vpack.c.b16 %v203, %v202
    %v228 = vpack.c.b16 %v205, %v204
    %v229 = vpack.c.b16 %v207, %v206
    %v230 = vpack.c.b16 %v209, %v208
    %v231 = vpack.c.b16 %v211, %v210
    %v232 = vpack.c.b16 %v213, %v212
    %v233 = vpack.c.b16 %v215, %v214
    %v234 = vpack.c.b16 %v217, %v216
    %v235 = vpack.c.b16 %v219, %v218
    %v237 = vcombine.high %v155, %v155
    %v239 = vunpack.c.l.s4 1983009808
    %v240 = vunpack.c.0.s8 %v239
    %v241 = vlaneseq
    %v242 = vshrl.u32 %v241, 7
    %v243 = vsub.s32 %v240, %v242
    %v244 = vrot.slane %v155, %v243
    %v246 = vunpack.c.l.s4 1983009808
    %v247 = vunpack.c.0.s8 %v246
    %v248 = vlaneseq
    %v249 = vshrl.u32 %v248, 7
    %v250 = vsub.s32 %v247, %v249
    %v251 = vrot.slane %v237, %v250
    %v252 = vcombine.high %v244, %v244
    %vm253 = vcmask 31744
    %v255 = vsel %vm253, %v220, 0
    %v258 = vsel %vm253, %v221, 0
    %v261 = vsel %vm253, %v222, 0
    %v264 = vsel %vm253, %v223, 0
    %v267 = vsel %vm253, %v224, 0
    %v270 = vsel %vm253, %v225, 0
    %v273 = vsel %vm253, %v226, 0
    %v276 = vsel %vm253, %v227, 0
    %v279 = vsel %vm253, %v228, 0
    %v282 = vsel %vm253, %v229, 0
    %v285 = vsel %vm253, %v230, 0
    %v288 = vsel %vm253, %v231, 0
    %v291 = vsel %vm253, %v232, 0
    %v294 = vsel %vm253, %v233, 0
    %v297 = vsel %vm253, %v234, 0
    %v300 = vsel %vm253, %v235, 0
    %vm302 = vcmask 1041408
    %v304 = vsel %vm302, %v244, 0
    %v307 = vsel %vm302, %v252, 0
    %v310 = vsel %vm302, %v251, 0
    %312 = vmatprep.subr.bf16.mxu0 %v307
    %313 = vmatpush1.bf16.msra.mxu0 %v304
    %314 = vmatprep.subr.bf16.mxu0 0
    %315 = vmatpush1.bf16.msra.mxu0 0
    %316 = vmatprep.subr.bf16.mxu0 0
    %317 = vmatpush1.bf16.msra.mxu0 0
    %318 = vmatprep.subr.bf16.mxu0 0
    %319 = vmatpush1.bf16.msra.mxu0 0
    %320 = vmatprep.subr.bf16.mxu0 0
    %321 = vmatpush1.bf16.msra.mxu0 0
    %322 = vmatprep.subr.bf16.mxu0 0
    %323 = vmatpush1.bf16.msra.mxu0 0
    %324 = vmatprep.subr.bf16.mxu0 0
    %325 = vmatpush1.bf16.msra.mxu0 0
    %326 = vmatprep.subr.bf16.mxu0 0
    %327 = vmatpush1.bf16.msra.mxu0 0
    %328 = vmatprep.subr.bf16.mxu0 0
    %329 = vmatpush1.bf16.msra.mxu0 0
    %330 = vmatprep.subr.bf16.mxu0 0
    %331 = vmatpush1.bf16.msra.mxu0 0
    %332 = vmatprep.subr.bf16.mxu0 0
    %333 = vmatpush1.bf16.msra.mxu0 0
    %334 = vmatprep.subr.bf16.mxu0 0
    %335 = vmatpush1.bf16.msra.mxu0 0
    %336 = vmatprep.subr.bf16.mxu0 0
    %337 = vmatpush1.bf16.msra.mxu0 0
    %338 = vmatprep.subr.bf16.mxu0 0
    %339 = vmatpush1.bf16.msra.mxu0 0
    %340 = vmatprep.subr.bf16.mxu0 0
    %341 = vmatpush1.bf16.msra.mxu0 0
    %342 = vmatprep.subr.bf16.mxu0 0
    %343 = vmatpush1.bf16.msra.mxu0 0
    %344 = vmatprep.mubr.bf16.mxu0 0
    %345 = vmatmul.mubr.bf16.gmra.mrb[0].mxu0 %v255
    %v346 = vpop.f32.mrb[0].mxu0
    %v347 = vadd.f32 0.0, %v346
    %v348 = vpop.f32.mrb[0].mxu0
    %v349 = vadd.f32 0.0, %v348
    %v350 = vpop.f32.mrb[0].mxu0
    %v351 = vadd.f32 0.0, %v350
    %v352 = vpop.f32.mrb[0].mxu0
    %v353 = vadd.f32 0.0, %v352
    %354 = vmatprep.mubr.bf16.mxu0 0
    %355 = vmatmul.mubr.bf16.gmra.mrb[0].mxu0 %v258
    %v356 = vpop.f32.mrb[0].mxu0
    %v357 = vadd.f32 0.0, %v356
    %v358 = vpop.f32.mrb[0].mxu0
    %v359 = vadd.f32 0.0, %v358
    %v360 = vpop.f32.mrb[0].mxu0
    %v361 = vadd.f32 0.0, %v360
    %v362 = vpop.f32.mrb[0].mxu0
    %v363 = vadd.f32 0.0, %v362
    %364 = vmatprep.mubr.bf16.mxu0 0
    %365 = vmatmul.mubr.bf16.gmra.mrb[0].mxu0 %v261
    %v366 = vpop.f32.mrb[0].mxu0
    %v367 = vadd.f32 0.0, %v366
    %v368 = vpop.f32.mrb[0].mxu0
    %v369 = vadd.f32 0.0, %v368
    %v370 = vpop.f32.mrb[0].mxu0
    %v371 = vadd.f32 0.0, %v370
    %v372 = vpop.f32.mrb[0].mxu0
    %v373 = vadd.f32 0.0, %v372
    %374 = vmatprep.mubr.bf16.mxu0 0
    %375 = vmatmul.mubr.bf16.gmra.mrb[0].mxu0 %v264
    %v376 = vpop.f32.mrb[0].mxu0
    %v377 = vadd.f32 0.0, %v376
    %v378 = vpop.f32.mrb[0].mxu0
    %v379 = vadd.f32 0.0, %v378
    %v380 = vpop.f32.mrb[0].mxu0
    %v381 = vadd.f32 0.0, %v380
    %v382 = vpop.f32.mrb[0].mxu0
    %v383 = vadd.f32 0.0, %v382
    %384 = vmatprep.mubr.bf16.mxu0 0
    %385 = vmatmul.mubr.bf16.gmra.mrb[0].mxu0 %v267
    %v386 = vpop.f32.mrb[0].mxu0
    %v387 = vadd.f32 0.0, %v386
    %v388 = vpop.f32.mrb[0].mxu0
    %v389 = vadd.f32 0.0, %v388
    %v390 = vpop.f32.mrb[0].mxu0
    %v391 = vadd.f32 0.0, %v390
    %v392 = vpop.f32.mrb[0].mxu0
    %v393 = vadd.f32 0.0, %v392
    %394 = vmatprep.mubr.bf16.mxu0 0
    %395 = vmatmul.mubr.bf16.gmra.mrb[0].mxu0 %v270
    %v396 = vpop.f32.mrb[0].mxu0
    %v397 = vadd.f32 0.0, %v396
    %v398 = vpop.f32.mrb[0].mxu0
    %v399 = vadd.f32 0.0, %v398
    %v400 = vpop.f32.mrb[0].mxu0
    %v401 = vadd.f32 0.0, %v400
    %v402 = vpop.f32.mrb[0].mxu0
    %v403 = vadd.f32 0.0, %v402
    %404 = vmatprep.mubr.bf16.mxu0 0
    %405 = vmatmul.mubr.bf16.gmra.mrb[0].mxu0 %v273
    %v406 = vpop.f32.mrb[0].mxu0
    %v407 = vadd.f32 0.0, %v406
    %v408 = vpop.f32.mrb[0].mxu0
    %v409 = vadd.f32 0.0, %v408
    %v410 = vpop.f32.mrb[0].mxu0
    %v411 = vadd.f32 0.0, %v410
    %v412 = vpop.f32.mrb[0].mxu0
    %v413 = vadd.f32 0.0, %v412
    %414 = vmatprep.mubr.bf16.mxu0 0
    %415 = vmatmul.mubr.bf16.gmra.mrb[0].mxu0 %v276
    %v416 = vpop.f32.mrb[0].mxu0
    %v417 = vadd.f32 0.0, %v416
    %v418 = vpop.f32.mrb[0].mxu0
    %v419 = vadd.f32 0.0, %v418
    %v420 = vpop.f32.mrb[0].mxu0
    %v421 = vadd.f32 0.0, %v420
    %v422 = vpop.f32.mrb[0].mxu0
    %v423 = vadd.f32 0.0, %v422
    %424 = vmatprep.mubr.bf16.mxu0 0
    %425 = vmatmul.mubr.bf16.gmra.mrb[0].mxu0 %v279
    %v426 = vpop.f32.mrb[0].mxu0
    %v427 = vadd.f32 0.0, %v426
    %v428 = vpop.f32.mrb[0].mxu0
    %v429 = vadd.f32 0.0, %v428
    %v430 = vpop.f32.mrb[0].mxu0
    %v431 = vadd.f32 0.0, %v430
    %v432 = vpop.f32.mrb[0].mxu0
    %v433 = vadd.f32 0.0, %v432
    %434 = vmatprep.mubr.bf16.mxu0 0
    %435 = vmatmul.mubr.bf16.gmra.mrb[0].mxu0 %v282
    %v436 = vpop.f32.mrb[0].mxu0
    %v437 = vadd.f32 0.0, %v436
    %v438 = vpop.f32.mrb[0].mxu0
    %v439 = vadd.f32 0.0, %v438
    %v440 = vpop.f32.mrb[0].mxu0
    %v441 = vadd.f32 0.0, %v440
    %v442 = vpop.f32.mrb[0].mxu0
    %v443 = vadd.f32 0.0, %v442
    %444 = vmatprep.mubr.bf16.mxu0 0
    %445 = vmatmul.mubr.bf16.gmra.mrb[0].mxu0 %v285
    %v446 = vpop.f32.mrb[0].mxu0
    %v447 = vadd.f32 0.0, %v446
    %v448 = vpop.f32.mrb[0].mxu0
    %v449 = vadd.f32 0.0, %v448
    %v450 = vpop.f32.mrb[0].mxu0
    %v451 = vadd.f32 0.0, %v450
    %v452 = vpop.f32.mrb[0].mxu0
    %v453 = vadd.f32 0.0, %v452
    %454 = vmatprep.mubr.bf16.mxu0 0
    %455 = vmatmul.mubr.bf16.gmra.mrb[0].mxu0 %v288
    %v456 = vpop.f32.mrb[0].mxu0
    %v457 = vadd.f32 0.0, %v456
    %v458 = vpop.f32.mrb[0].mxu0
    %v459 = vadd.f32 0.0, %v458
    %v460 = vpop.f32.mrb[0].mxu0
    %v461 = vadd.f32 0.0, %v460
    %v462 = vpop.f32.mrb[0].mxu0
    %v463 = vadd.f32 0.0, %v462
    %464 = vmatprep.mubr.bf16.mxu0 0
    %465 = vmatmul.mubr.bf16.gmra.mrb[0].mxu0 %v291
    %v466 = vpop.f32.mrb[0].mxu0
    %v467 = vadd.f32 0.0, %v466
    %v468 = vpop.f32.mrb[0].mxu0
    %v469 = vadd.f32 0.0, %v468
    %v470 = vpop.f32.mrb[0].mxu0
    %v471 = vadd.f32 0.0, %v470
    %v472 = vpop.f32.mrb[0].mxu0
    %v473 = vadd.f32 0.0, %v472
    %474 = vmatprep.mubr.bf16.mxu0 0
    %475 = vmatmul.mubr.bf16.gmra.mrb[0].mxu0 %v294
    %v476 = vpop.f32.mrb[0].mxu0
    %v477 = vadd.f32 0.0, %v476
    %v478 = vpop.f32.mrb[0].mxu0
    %v479 = vadd.f32 0.0, %v478
    %v480 = vpop.f32.mrb[0].mxu0
    %v481 = vadd.f32 0.0, %v480
    %v482 = vpop.f32.mrb[0].mxu0
    %v483 = vadd.f32 0.0, %v482
    %484 = vmatprep.mubr.bf16.mxu0 0
    %485 = vmatmul.mubr.bf16.gmra.mrb[0].mxu0 %v297
    %v486 = vpop.f32.mrb[0].mxu0
    %v487 = vadd.f32 0.0, %v486
    %v488 = vpop.f32.mrb[0].mxu0
    %v489 = vadd.f32 0.0, %v488
    %v490 = vpop.f32.mrb[0].mxu0
    %v491 = vadd.f32 0.0, %v490
    %v492 = vpop.f32.mrb[0].mxu0
    %v493 = vadd.f32 0.0, %v492
    %494 = vmatprep.mubr.bf16.mxu0 0
    %495 = vmatmul.mubr.bf16.gmra.mrb[0].mxu0 %v300
    %v496 = vpop.f32.mrb[0].mxu0
    %v497 = vadd.f32 0.0, %v496
    %v498 = vpop.f32.mrb[0].mxu0
    %v499 = vadd.f32 0.0, %v498
    %v500 = vpop.f32.mrb[0].mxu0
    %v501 = vadd.f32 0.0, %v500
    %v502 = vpop.f32.mrb[0].mxu0
    %v503 = vadd.f32 0.0, %v502
    %504 = vdwg.mxu0
    %505 = vmatprep.subr.bf16.mxu0 0
    %506 = vmatpush1.bf16.msra.mxu0 %v310
    %507 = vmatprep.subr.bf16.mxu0 0
    %508 = vmatpush1.bf16.msra.mxu0 0
    %509 = vmatprep.subr.bf16.mxu0 0
    %510 = vmatpush1.bf16.msra.mxu0 0
    %511 = vmatprep.subr.bf16.mxu0 0
    %512 = vmatpush1.bf16.msra.mxu0 0
    %513 = vmatprep.subr.bf16.mxu0 0
    %514 = vmatpush1.bf16.msra.mxu0 0
    %515 = vmatprep.subr.bf16.mxu0 0
    %516 = vmatpush1.bf16.msra.mxu0 0
    %517 = vmatprep.subr.bf16.mxu0 0
    %518 = vmatpush1.bf16.msra.mxu0 0
    %519 = vmatprep.subr.bf16.mxu0 0
    %520 = vmatpush1.bf16.msra.mxu0 0
    %521 = vmatprep.subr.bf16.mxu0 0
    %522 = vmatpush1.bf16.msra.mxu0 0
    %523 = vmatprep.subr.bf16.mxu0 0
    %524 = vmatpush1.bf16.msra.mxu0 0
    %525 = vmatprep.subr.bf16.mxu0 0
    %526 = vmatpush1.bf16.msra.mxu0 0
    %527 = vmatprep.subr.bf16.mxu0 0
    %528 = vmatpush1.bf16.msra.mxu0 0
    %529 = vmatprep.subr.bf16.mxu0 0
    %530 = vmatpush1.bf16.msra.mxu0 0
    %531 = vmatprep.subr.bf16.mxu0 0
    %532 = vmatpush1.bf16.msra.mxu0 0
    %533 = vmatprep.subr.bf16.mxu0 0
    %534 = vmatpush1.bf16.msra.mxu0 0
    %535 = vmatprep.subr.bf16.mxu0 0
    %536 = vmatpush1.bf16.msra.mxu0 0
    %537 = vmatprep.mubr.bf16.mxu0 0
    %538 = vmatmul.mubr.bf16.gmra.mrb[0].mxu0 %v255
    %v539 = vpop.f32.mrb[0].mxu0
    %v540 = vadd.f32 0.0, %v539
    %v541 = vpop.f32.mrb[0].mxu0
    %v542 = vpop.f32.mrb[0].mxu0
    %v543 = vadd.f32 0.0, %v542
    %v544 = vpop.f32.mrb[0].mxu0
    %545 = vmatprep.mubr.bf16.mxu0 0
    %546 = vmatmul.mubr.bf16.gmra.mrb[0].mxu0 %v258
    %v547 = vpop.f32.mrb[0].mxu0
    %v548 = vadd.f32 0.0, %v547
    %v549 = vpop.f32.mrb[0].mxu0
    %v550 = vpop.f32.mrb[0].mxu0
    %v551 = vadd.f32 0.0, %v550
    %v552 = vpop.f32.mrb[0].mxu0
    %553 = vmatprep.mubr.bf16.mxu0 0
    %554 = vmatmul.mubr.bf16.gmra.mrb[0].mxu0 %v261
    %v555 = vpop.f32.mrb[0].mxu0
    %v556 = vadd.f32 0.0, %v555
    %v557 = vpop.f32.mrb[0].mxu0
    %v558 = vpop.f32.mrb[0].mxu0
    %v559 = vadd.f32 0.0, %v558
    %v560 = vpop.f32.mrb[0].mxu0
    %561 = vmatprep.mubr.bf16.mxu0 0
    %562 = vmatmul.mubr.bf16.gmra.mrb[0].mxu0 %v264
    %v563 = vpop.f32.mrb[0].mxu0
    %v564 = vadd.f32 0.0, %v563
    %v565 = vpop.f32.mrb[0].mxu0
    %v566 = vpop.f32.mrb[0].mxu0
    %v567 = vadd.f32 0.0, %v566
    %v568 = vpop.f32.mrb[0].mxu0
    %569 = vmatprep.mubr.bf16.mxu0 0
    %570 = vmatmul.mubr.bf16.gmra.mrb[0].mxu0 %v267
    %v571 = vpop.f32.mrb[0].mxu0
    %v572 = vadd.f32 0.0, %v571
    %v573 = vpop.f32.mrb[0].mxu0
    %v574 = vpop.f32.mrb[0].mxu0
    %v575 = vadd.f32 0.0, %v574
    %v576 = vpop.f32.mrb[0].mxu0
    %577 = vmatprep.mubr.bf16.mxu0 0
    %578 = vmatmul.mubr.bf16.gmra.mrb[0].mxu0 %v270
    %v579 = vpop.f32.mrb[0].mxu0
    %v580 = vadd.f32 0.0, %v579
    %v581 = vpop.f32.mrb[0].mxu0
    %v582 = vpop.f32.mrb[0].mxu0
    %v583 = vadd.f32 0.0, %v582
    %v584 = vpop.f32.mrb[0].mxu0
    %585 = vmatprep.mubr.bf16.mxu0 0
    %586 = vmatmul.mubr.bf16.gmra.mrb[0].mxu0 %v273
    %v587 = vpop.f32.mrb[0].mxu0
    %v588 = vadd.f32 0.0, %v587
    %v589 = vpop.f32.mrb[0].mxu0
    %v590 = vpop.f32.mrb[0].mxu0
    %v591 = vadd.f32 0.0, %v590
    %v592 = vpop.f32.mrb[0].mxu0
    %593 = vmatprep.mubr.bf16.mxu0 0
    %594 = vmatmul.mubr.bf16.gmra.mrb[0].mxu0 %v276
    %v595 = vpop.f32.mrb[0].mxu0
    %v596 = vadd.f32 0.0, %v595
    %v597 = vpop.f32.mrb[0].mxu0
    %v598 = vpop.f32.mrb[0].mxu0
    %v599 = vadd.f32 0.0, %v598
    %v600 = vpop.f32.mrb[0].mxu0
    %601 = vmatprep.mubr.bf16.mxu0 0
    %602 = vmatmul.mubr.bf16.gmra.mrb[0].mxu0 %v279
    %v603 = vpop.f32.mrb[0].mxu0
    %v604 = vadd.f32 0.0, %v603
    %v605 = vpop.f32.mrb[0].mxu0
    %v606 = vpop.f32.mrb[0].mxu0
    %v607 = vadd.f32 0.0, %v606
    %v608 = vpop.f32.mrb[0].mxu0
    %609 = vmatprep.mubr.bf16.mxu0 0
    %610 = vmatmul.mubr.bf16.gmra.mrb[0].mxu0 %v282
    %v611 = vpop.f32.mrb[0].mxu0
    %v612 = vadd.f32 0.0, %v611
    %v613 = vpop.f32.mrb[0].mxu0
    %v614 = vpop.f32.mrb[0].mxu0
    %v615 = vadd.f32 0.0, %v614
    %v616 = vpop.f32.mrb[0].mxu0
    %617 = vmatprep.mubr.bf16.mxu0 0
    %618 = vmatmul.mubr.bf16.gmra.mrb[0].mxu0 %v285
    %v619 = vpop.f32.mrb[0].mxu0
    %v620 = vadd.f32 0.0, %v619
    %v621 = vpop.f32.mrb[0].mxu0
    %v622 = vpop.f32.mrb[0].mxu0
    %v623 = vadd.f32 0.0, %v622
    %v624 = vpop.f32.mrb[0].mxu0
    %625 = vmatprep.mubr.bf16.mxu0 0
    %626 = vmatmul.mubr.bf16.gmra.mrb[0].mxu0 %v288
    %v627 = vpop.f32.mrb[0].mxu0
    %v628 = vadd.f32 0.0, %v627
    %v629 = vpop.f32.mrb[0].mxu0
    %v630 = vpop.f32.mrb[0].mxu0
    %v631 = vadd.f32 0.0, %v630
    %v632 = vpop.f32.mrb[0].mxu0
    %633 = vmatprep.mubr.bf16.mxu0 0
    %634 = vmatmul.mubr.bf16.gmra.mrb[0].mxu0 %v291
    %v635 = vpop.f32.mrb[0].mxu0
    %v636 = vadd.f32 0.0, %v635
    %v637 = vpop.f32.mrb[0].mxu0
    %v638 = vpop.f32.mrb[0].mxu0
    %v639 = vadd.f32 0.0, %v638
    %v640 = vpop.f32.mrb[0].mxu0
    %641 = vmatprep.mubr.bf16.mxu0 0
    %642 = vmatmul.mubr.bf16.gmra.mrb[0].mxu0 %v294
    %v643 = vpop.f32.mrb[0].mxu0
    %v644 = vadd.f32 0.0, %v643
    %v645 = vpop.f32.mrb[0].mxu0
    %v646 = vpop.f32.mrb[0].mxu0
    %v647 = vadd.f32 0.0, %v646
    %v648 = vpop.f32.mrb[0].mxu0
    %649 = vmatprep.mubr.bf16.mxu0 0
    %650 = vmatmul.mubr.bf16.gmra.mrb[0].mxu0 %v297
    %v651 = vpop.f32.mrb[0].mxu0
    %v652 = vadd.f32 0.0, %v651
    %v653 = vpop.f32.mrb[0].mxu0
    %v654 = vpop.f32.mrb[0].mxu0
    %v655 = vadd.f32 0.0, %v654
    %v656 = vpop.f32.mrb[0].mxu0
    %657 = vmatprep.mubr.bf16.mxu0 0
    %658 = vmatmul.mubr.bf16.gmra.mrb[0].mxu0 %v300
    %v659 = vpop.f32.mrb[0].mxu0
    %v660 = vadd.f32 0.0, %v659
    %v661 = vpop.f32.mrb[0].mxu0
    %v662 = vpop.f32.mrb[0].mxu0
    %v663 = vadd.f32 0.0, %v662
    %v664 = vpop.f32.mrb[0].mxu0
    %665 = vdwg.mxu0
    %v666 = vpack.c.bf16 %v351, %v347
    %v667 = vpack.c.bf16 %v361, %v357
    %v668 = vpack.c.bf16 %v371, %v367
    %v669 = vpack.c.bf16 %v381, %v377
    %v670 = vpack.c.bf16 %v391, %v387
    %v671 = vpack.c.bf16 %v401, %v397
    %v672 = vpack.c.bf16 %v411, %v407
    %v673 = vpack.c.bf16 %v421, %v417
    %v674 = vpack.c.bf16 %v431, %v427
    %v675 = vpack.c.bf16 %v441, %v437
    %v676 = vpack.c.bf16 %v451, %v447
    %v677 = vpack.c.bf16 %v461, %v457
    %v678 = vpack.c.bf16 %v471, %v467
    %v679 = vpack.c.bf16 %v481, %v477
    %v680 = vpack.c.bf16 %v491, %v487
    %v681 = vpack.c.bf16 %v501, %v497
    %v682 = vld [vmem:[#allocation2] sm:$0xff]
    %v683 = vld [vmem:[#allocation2 + $0x8] sm:$0xff]
    %v684 = vld [vmem:[#allocation2 + $0x10] sm:$0xff]
    %v685 = vld [vmem:[#allocation2 + $0x18] sm:$0xff]
    %v686 = vld [vmem:[#allocation2 + $0x20] sm:$0xff]
    %v687 = vld [vmem:[#allocation2 + $0x28] sm:$0xff]
    %v688 = vld [vmem:[#allocation2 + $0x30] sm:$0xff]
    %v689 = vld [vmem:[#allocation2 + $0x38] sm:$0xff]
    %v690 = vld [vmem:[#allocation2 + $0x40] sm:$0xff]
    %v691 = vld [vmem:[#allocation2 + $0x48] sm:$0xff]
    %v692 = vld [vmem:[#allocation2 + $0x50] sm:$0xff]
    %v693 = vld [vmem:[#allocation2 + $0x58] sm:$0xff]
    %v694 = vld [vmem:[#allocation2 + $0x60] sm:$0xff]
    %v695 = vld [vmem:[#allocation2 + $0x68] sm:$0xff]
    %v696 = vld [vmem:[#allocation2 + $0x70] sm:$0xff]
    %v697 = vld [vmem:[#allocation2 + $0x78] sm:$0xff]
    %v698 = vpack.c.bf16 %v353, %v349
    %v699 = vpack.c.bf16 %v363, %v359
    %v700 = vpack.c.bf16 %v373, %v369
    %v701 = vpack.c.bf16 %v383, %v379
    %v702 = vpack.c.bf16 %v393, %v389
    %v703 = vpack.c.bf16 %v403, %v399
    %v704 = vpack.c.bf16 %v413, %v409
    %v705 = vpack.c.bf16 %v423, %v419
    %v706 = vpack.c.bf16 %v433, %v429
    %v707 = vpack.c.bf16 %v443, %v439
    %v708 = vpack.c.bf16 %v453, %v449
    %v709 = vpack.c.bf16 %v463, %v459
    %v710 = vpack.c.bf16 %v473, %v469
    %v711 = vpack.c.bf16 %v483, %v479
    %v712 = vpack.c.bf16 %v493, %v489
    %v713 = vpack.c.bf16 %v503, %v499
    %s714 = scalar_lea.vmem [#allocation2], 128
    %v715 = vld [vmem:[%s714] sm:$0xff]
    %v716 = vld [vmem:[%s714 + $0x8] sm:$0xff]
    %v717 = vld [vmem:[%s714 + $0x10] sm:$0xff]
    %v718 = vld [vmem:[%s714 + $0x18] sm:$0xff]
    %v719 = vld [vmem:[%s714 + $0x20] sm:$0xff]
    %v720 = vld [vmem:[%s714 + $0x28] sm:$0xff]
    %v721 = vld [vmem:[%s714 + $0x30] sm:$0xff]
    %v722 = vld [vmem:[%s714 + $0x38] sm:$0xff]
    %v723 = vld [vmem:[%s714 + $0x40] sm:$0xff]
    %v724 = vld [vmem:[%s714 + $0x48] sm:$0xff]
    %v725 = vld [vmem:[%s714 + $0x50] sm:$0xff]
    %v726 = vld [vmem:[%s714 + $0x58] sm:$0xff]
    %v727 = vld [vmem:[%s714 + $0x60] sm:$0xff]
    %v728 = vld [vmem:[%s714 + $0x68] sm:$0xff]
    %v729 = vld [vmem:[%s714 + $0x70] sm:$0xff]
    %v730 = vld [vmem:[%s714 + $0x78] sm:$0xff]
    %v747 = vunpack.c.l.b16 %v715
    %v748 = vunpack.c.h.b16 %v715
    %v749 = vunpack.c.l.b16 %v716
    %v750 = vunpack.c.h.b16 %v716
    %v751 = vunpack.c.l.b16 %v717
    %v752 = vunpack.c.h.b16 %v717
    %v753 = vunpack.c.l.b16 %v718
    %v754 = vunpack.c.h.b16 %v718
    %v755 = vunpack.c.l.b16 %v719
    %v756 = vunpack.c.h.b16 %v719
    %v757 = vunpack.c.l.b16 %v720
    %v758 = vunpack.c.h.b16 %v720
    %v759 = vunpack.c.l.b16 %v721
    %v760 = vunpack.c.h.b16 %v721
    %v761 = vunpack.c.l.b16 %v722
    %v762 = vunpack.c.h.b16 %v722
    %v763 = vunpack.c.l.b16 %v723
    %v764 = vunpack.c.h.b16 %v723
    %v765 = vunpack.c.l.b16 %v724
    %v766 = vunpack.c.h.b16 %v724
    %v767 = vunpack.c.l.b16 %v725
    %v768 = vunpack.c.h.b16 %v725
    %v769 = vunpack.c.l.b16 %v726
    %v770 = vunpack.c.h.b16 %v726
    %v771 = vunpack.c.l.b16 %v727
    %v772 = vunpack.c.h.b16 %v727
    %v773 = vunpack.c.l.b16 %v728
    %v774 = vunpack.c.h.b16 %v728
    %v775 = vunpack.c.l.b16 %v729
    %v776 = vunpack.c.h.b16 %v729
    %v777 = vunpack.c.l.b16 %v730
    %v778 = vunpack.c.h.b16 %v730
    %v779 = vpack.c.b16 %v749, %v747
    %v780 = vpack.c.b16 %v750, %v748
    %v781 = vpack.c.b16 %v753, %v751
    %v782 = vpack.c.b16 %v754, %v752
    %v783 = vpack.c.b16 %v757, %v755
    %v784 = vpack.c.b16 %v758, %v756
    %v785 = vpack.c.b16 %v761, %v759
    %v786 = vpack.c.b16 %v762, %v760
    %v787 = vpack.c.b16 %v765, %v763
    %v788 = vpack.c.b16 %v766, %v764
    %v789 = vpack.c.b16 %v769, %v767
    %v790 = vpack.c.b16 %v770, %v768
    %v791 = vpack.c.b16 %v773, %v771
    %v792 = vpack.c.b16 %v774, %v772
    %v793 = vpack.c.b16 %v777, %v775
    %v794 = vpack.c.b16 %v778, %v776
    %811 = vmatprep.subr.bf16.mxu0 0
    %812 = vmatpush1.bf16.msra.mxu0 %v698
    %813 = vmatprep.subr.bf16.mxu0 0
    %814 = vmatpush1.bf16.msra.mxu0 %v699
    %815 = vmatprep.subr.bf16.mxu0 0
    %816 = vmatpush1.bf16.msra.mxu0 %v700
    %817 = vmatprep.subr.bf16.mxu0 0
    %818 = vmatpush1.bf16.msra.mxu0 %v701
    %819 = vmatprep.subr.bf16.mxu0 0
    %820 = vmatpush1.bf16.msra.mxu0 %v702
    %821 = vmatprep.subr.bf16.mxu0 0
    %822 = vmatpush1.bf16.msra.mxu0 %v703
    %823 = vmatprep.subr.bf16.mxu0 0
    %824 = vmatpush1.bf16.msra.mxu0 %v704
    %825 = vmatprep.subr.bf16.mxu0 0
    %826 = vmatpush1.bf16.msra.mxu0 %v705
    %827 = vmatprep.subr.bf16.mxu0 0
    %828 = vmatpush1.bf16.msra.mxu0 %v706
    %829 = vmatprep.subr.bf16.mxu0 0
    %830 = vmatpush1.bf16.msra.mxu0 %v707
    %831 = vmatprep.subr.bf16.mxu0 0
    %832 = vmatpush1.bf16.msra.mxu0 %v708
    %833 = vmatprep.subr.bf16.mxu0 0
    %834 = vmatpush1.bf16.msra.mxu0 %v709
    %835 = vmatprep.subr.bf16.mxu0 0
    %836 = vmatpush1.bf16.msra.mxu0 %v710
    %837 = vmatprep.subr.bf16.mxu0 0
    %838 = vmatpush1.bf16.msra.mxu0 %v711
    %839 = vmatprep.subr.bf16.mxu0 0
    %840 = vmatpush1.bf16.msra.mxu0 %v712
    %841 = vmatprep.subr.bf16.mxu0 0
    %842 = vmatpush1.bf16.msra.mxu0 %v713
    %843 = vmatprep.mubr.bf16.mxu0 %v780
    %844 = vmatmul.mubr.bf16.gmra.mrb[0].mxu0 %v779
    %v845 = vpop.f32.mrb[0].mxu0
    %v846 = vadd.f32 0.0, %v845
    %v847 = vpop.f32.mrb[0].mxu0
    %v848 = vpop.f32.mrb[0].mxu0
    %v849 = vadd.f32 0.0, %v848
    %v850 = vpop.f32.mrb[0].mxu0
    %851 = vmatprep.mubr.bf16.mxu0 %v782
    %852 = vmatmul.mubr.bf16.gmra.mrb[0].mxu0 %v781
    %v853 = vpop.f32.mrb[0].mxu0
    %v854 = vadd.f32 0.0, %v853
    %v855 = vpop.f32.mrb[0].mxu0
    %v856 = vpop.f32.mrb[0].mxu0
    %v857 = vadd.f32 0.0, %v856
    %v858 = vpop.f32.mrb[0].mxu0
    %859 = vmatprep.mubr.bf16.mxu0 %v784
    %860 = vmatmul.mubr.bf16.gmra.mrb[0].mxu0 %v783
    %v861 = vpop.f32.mrb[0].mxu0
    %v862 = vadd.f32 0.0, %v861
    %v863 = vpop.f32.mrb[0].mxu0
    %v864 = vpop.f32.mrb[0].mxu0
    %v865 = vadd.f32 0.0, %v864
    %v866 = vpop.f32.mrb[0].mxu0
    %867 = vmatprep.mubr.bf16.mxu0 %v786
    %868 = vmatmul.mubr.bf16.gmra.mrb[0].mxu0 %v785
    %v869 = vpop.f32.mrb[0].mxu0
    %v870 = vadd.f32 0.0, %v869
    %v871 = vpop.f32.mrb[0].mxu0
    %v872 = vpop.f32.mrb[0].mxu0
    %v873 = vadd.f32 0.0, %v872
    %v874 = vpop.f32.mrb[0].mxu0
    %875 = vmatprep.mubr.bf16.mxu0 %v788
    %876 = vmatmul.mubr.bf16.gmra.mrb[0].mxu0 %v787
    %v877 = vpop.f32.mrb[0].mxu0
    %v878 = vadd.f32 0.0, %v877
    %v879 = vpop.f32.mrb[0].mxu0
    %v880 = vpop.f32.mrb[0].mxu0
    %v881 = vadd.f32 0.0, %v880
    %v882 = vpop.f32.mrb[0].mxu0
    %883 = vmatprep.mubr.bf16.mxu0 %v790
    %884 = vmatmul.mubr.bf16.gmra.mrb[0].mxu0 %v789
    %v885 = vpop.f32.mrb[0].mxu0
    %v886 = vadd.f32 0.0, %v885
    %v887 = vpop.f32.mrb[0].mxu0
    %v888 = vpop.f32.mrb[0].mxu0
    %v889 = vadd.f32 0.0, %v888
    %v890 = vpop.f32.mrb[0].mxu0
    %891 = vmatprep.mubr.bf16.mxu0 %v792
    %892 = vmatmul.mubr.bf16.gmra.mrb[0].mxu0 %v791
    %v893 = vpop.f32.mrb[0].mxu0
    %v894 = vadd.f32 0.0, %v893
    %v895 = vpop.f32.mrb[0].mxu0
    %v896 = vpop.f32.mrb[0].mxu0
    %v897 = vadd.f32 0.0, %v896
    %v898 = vpop.f32.mrb[0].mxu0
    %899 = vmatprep.mubr.bf16.mxu0 %v794
    %900 = vmatmul.mubr.bf16.gmra.mrb[0].mxu0 %v793
    %v901 = vpop.f32.mrb[0].mxu0
    %v902 = vadd.f32 0.0, %v901
    %v903 = vpop.f32.mrb[0].mxu0
    %v904 = vpop.f32.mrb[0].mxu0
    %v905 = vadd.f32 0.0, %v904
    %v906 = vpop.f32.mrb[0].mxu0
    %907 = vdwg.mxu0
    %v924 = vunpack.c.l.b16 %v682
    %v925 = vunpack.c.h.b16 %v682
    %v926 = vunpack.c.l.b16 %v683
    %v927 = vunpack.c.h.b16 %v683
    %v928 = vunpack.c.l.b16 %v684
    %v929 = vunpack.c.h.b16 %v684
    %v930 = vunpack.c.l.b16 %v685
    %v931 = vunpack.c.h.b16 %v685
    %v932 = vunpack.c.l.b16 %v686
    %v933 = vunpack.c.h.b16 %v686
    %v934 = vunpack.c.l.b16 %v687
    %v935 = vunpack.c.h.b16 %v687
    %v936 = vunpack.c.l.b16 %v688
    %v937 = vunpack.c.h.b16 %v688
    %v938 = vunpack.c.l.b16 %v689
    %v939 = vunpack.c.h.b16 %v689
    %v940 = vunpack.c.l.b16 %v690
    %v941 = vunpack.c.h.b16 %v690
    %v942 = vunpack.c.l.b16 %v691
    %v943 = vunpack.c.h.b16 %v691
    %v944 = vunpack.c.l.b16 %v692
    %v945 = vunpack.c.h.b16 %v692
    %v946 = vunpack.c.l.b16 %v693
    %v947 = vunpack.c.h.b16 %v693
    %v948 = vunpack.c.l.b16 %v694
    %v949 = vunpack.c.h.b16 %v694
    %v950 = vunpack.c.l.b16 %v695
    %v951 = vunpack.c.h.b16 %v695
    %v952 = vunpack.c.l.b16 %v696
    %v953 = vunpack.c.h.b16 %v696
    %v954 = vunpack.c.l.b16 %v697
    %v955 = vunpack.c.h.b16 %v697
    %v956 = vpack.c.b16 %v926, %v924
    %v957 = vpack.c.b16 %v927, %v925
    %v958 = vpack.c.b16 %v930, %v928
    %v959 = vpack.c.b16 %v931, %v929
    %v960 = vpack.c.b16 %v934, %v932
    %v961 = vpack.c.b16 %v935, %v933
    %v962 = vpack.c.b16 %v938, %v936
    %v963 = vpack.c.b16 %v939, %v937
    %v964 = vpack.c.b16 %v942, %v940
    %v965 = vpack.c.b16 %v943, %v941
    %v966 = vpack.c.b16 %v946, %v944
    %v967 = vpack.c.b16 %v947, %v945
    %v968 = vpack.c.b16 %v950, %v948
    %v969 = vpack.c.b16 %v951, %v949
    %v970 = vpack.c.b16 %v954, %v952
    %v971 = vpack.c.b16 %v955, %v953
    %988 = vmatprep.subr.bf16.mxu0 0
    %989 = vmatpush1.bf16.msra.mxu0 %v666
    %990 = vmatprep.subr.bf16.mxu0 0
    %991 = vmatpush1.bf16.msra.mxu0 %v667
    %992 = vmatprep.subr.bf16.mxu0 0
    %993 = vmatpush1.bf16.msra.mxu0 %v668
    %994 = vmatprep.subr.bf16.mxu0 0
    %995 = vmatpush1.bf16.msra.mxu0 %v669
    %996 = vmatprep.subr.bf16.mxu0 0
    %997 = vmatpush1.bf16.msra.mxu0 %v670
    %998 = vmatprep.subr.bf16.mxu0 0
    %999 = vmatpush1.bf16.msra.mxu0 %v671
    %1000 = vmatprep.subr.bf16.mxu0 0
    %1001 = vmatpush1.bf16.msra.mxu0 %v672
    %1002 = vmatprep.subr.bf16.mxu0 0
    %1003 = vmatpush1.bf16.msra.mxu0 %v673
    %1004 = vmatprep.subr.bf16.mxu0 0
    %1005 = vmatpush1.bf16.msra.mxu0 %v674
    %1006 = vmatprep.subr.bf16.mxu0 0
    %1007 = vmatpush1.bf16.msra.mxu0 %v675
    %1008 = vmatprep.subr.bf16.mxu0 0
    %1009 = vmatpush1.bf16.msra.mxu0 %v676
    %1010 = vmatprep.subr.bf16.mxu0 0
    %1011 = vmatpush1.bf16.msra.mxu0 %v677
    %1012 = vmatprep.subr.bf16.mxu0 0
    %1013 = vmatpush1.bf16.msra.mxu0 %v678
    %1014 = vmatprep.subr.bf16.mxu0 0
    %1015 = vmatpush1.bf16.msra.mxu0 %v679
    %1016 = vmatprep.subr.bf16.mxu0 0
    %1017 = vmatpush1.bf16.msra.mxu0 %v680
    %1018 = vmatprep.subr.bf16.mxu0 0
    %1019 = vmatpush1.bf16.msra.mxu0 %v681
    %1020 = vmatprep.mubr.bf16.mxu0 %v957
    %1021 = vmatmul.mubr.bf16.gmra.mrb[0].mxu0 %v956
    %v1022 = vpop.f32.mrb[0].mxu0
    %v1023 = vadd.f32 %v846, %v1022
    %v1024 = vpop.f32.mrb[0].mxu0
    %v1025 = vpop.f32.mrb[0].mxu0
    %v1026 = vadd.f32 %v849, %v1025
    %v1027 = vpop.f32.mrb[0].mxu0
    %1028 = vmatprep.mubr.bf16.mxu0 %v959
    %1029 = vmatmul.mubr.bf16.gmra.mrb[0].mxu0 %v958
    %v1030 = vpop.f32.mrb[0].mxu0
    %v1031 = vadd.f32 %v854, %v1030
    %v1032 = vpop.f32.mrb[0].mxu0
    %v1033 = vpop.f32.mrb[0].mxu0
    %v1034 = vadd.f32 %v857, %v1033
    %v1035 = vpop.f32.mrb[0].mxu0
    %1036 = vmatprep.mubr.bf16.mxu0 %v961
    %1037 = vmatmul.mubr.bf16.gmra.mrb[0].mxu0 %v960
    %v1038 = vpop.f32.mrb[0].mxu0
    %v1039 = vadd.f32 %v862, %v1038
    %v1040 = vpop.f32.mrb[0].mxu0
    %v1041 = vpop.f32.mrb[0].mxu0
    %v1042 = vadd.f32 %v865, %v1041
    %v1043 = vpop.f32.mrb[0].mxu0
    %1044 = vmatprep.mubr.bf16.mxu0 %v963
    %1045 = vmatmul.mubr.bf16.gmra.mrb[0].mxu0 %v962
    %v1046 = vpop.f32.mrb[0].mxu0
    %v1047 = vadd.f32 %v870, %v1046
    %v1048 = vpop.f32.mrb[0].mxu0
    %v1049 = vpop.f32.mrb[0].mxu0
    %v1050 = vadd.f32 %v873, %v1049
    %v1051 = vpop.f32.mrb[0].mxu0
    %1052 = vmatprep.mubr.bf16.mxu0 %v965
    %1053 = vmatmul.mubr.bf16.gmra.mrb[0].mxu0 %v964
    %v1054 = vpop.f32.mrb[0].mxu0
    %v1055 = vadd.f32 %v878, %v1054
    %v1056 = vpop.f32.mrb[0].mxu0
    %v1057 = vpop.f32.mrb[0].mxu0
    %v1058 = vadd.f32 %v881, %v1057
    %v1059 = vpop.f32.mrb[0].mxu0
    %1060 = vmatprep.mubr.bf16.mxu0 %v967
    %1061 = vmatmul.mubr.bf16.gmra.mrb[0].mxu0 %v966
    %v1062 = vpop.f32.mrb[0].mxu0
    %v1063 = vadd.f32 %v886, %v1062
    %v1064 = vpop.f32.mrb[0].mxu0
    %v1065 = vpop.f32.mrb[0].mxu0
    %v1066 = vadd.f32 %v889, %v1065
    %v1067 = vpop.f32.mrb[0].mxu0
    %1068 = vmatprep.mubr.bf16.mxu0 %v969
    %1069 = vmatmul.mubr.bf16.gmra.mrb[0].mxu0 %v968
    %v1070 = vpop.f32.mrb[0].mxu0
    %v1071 = vadd.f32 %v894, %v1070
    %v1072 = vpop.f32.mrb[0].mxu0
    %v1073 = vpop.f32.mrb[0].mxu0
    %v1074 = vadd.f32 %v897, %v1073
    %v1075 = vpop.f32.mrb[0].mxu0
    %1076 = vmatprep.mubr.bf16.mxu0 %v971
    %1077 = vmatmul.mubr.bf16.gmra.mrb[0].mxu0 %v970
    %v1078 = vpop.f32.mrb[0].mxu0
    %v1079 = vadd.f32 %v902, %v1078
    %v1080 = vpop.f32.mrb[0].mxu0
    %v1081 = vpop.f32.mrb[0].mxu0
    %v1082 = vadd.f32 %v905, %v1081
    %v1083 = vpop.f32.mrb[0].mxu0
    %1084 = vdwg.mxu0
    %v1085 = vpack.c.bf16 %v543, %v540
    %v1086 = vpack.c.bf16 %v551, %v548
    %v1087 = vpack.c.bf16 %v559, %v556
    %v1088 = vpack.c.bf16 %v567, %v564
    %v1089 = vpack.c.bf16 %v575, %v572
    %v1090 = vpack.c.bf16 %v583, %v580
    %v1091 = vpack.c.bf16 %v591, %v588
    %v1092 = vpack.c.bf16 %v599, %v596
    %v1093 = vpack.c.bf16 %v607, %v604
    %v1094 = vpack.c.bf16 %v615, %v612
    %v1095 = vpack.c.bf16 %v623, %v620
    %v1096 = vpack.c.bf16 %v631, %v628
    %v1097 = vpack.c.bf16 %v639, %v636
    %v1098 = vpack.c.bf16 %v647, %v644
    %v1099 = vpack.c.bf16 %v655, %v652
    %v1100 = vpack.c.bf16 %v663, %v660
    %s1101 = scalar_lea.vmem [#allocation2], 256
    %v1102 = vld [vmem:[%s1101] sm:$0xff]
    %v1103 = vld [vmem:[%s1101 + $0x8] sm:$0xff]
    %v1104 = vld [vmem:[%s1101 + $0x10] sm:$0xff]
    %v1105 = vld [vmem:[%s1101 + $0x18] sm:$0xff]
    %v1106 = vld [vmem:[%s1101 + $0x20] sm:$0xff]
    %v1107 = vld [vmem:[%s1101 + $0x28] sm:$0xff]
    %v1108 = vld [vmem:[%s1101 + $0x30] sm:$0xff]
    %v1109 = vld [vmem:[%s1101 + $0x38] sm:$0xff]
    %v1110 = vld [vmem:[%s1101 + $0x40] sm:$0xff]
    %v1111 = vld [vmem:[%s1101 + $0x48] sm:$0xff]
    %v1112 = vld [vmem:[%s1101 + $0x50] sm:$0xff]
    %v1113 = vld [vmem:[%s1101 + $0x58] sm:$0xff]
    %v1114 = vld [vmem:[%s1101 + $0x60] sm:$0xff]
    %v1115 = vld [vmem:[%s1101 + $0x68] sm:$0xff]
    %v1116 = vld [vmem:[%s1101 + $0x70] sm:$0xff]
    %v1117 = vld [vmem:[%s1101 + $0x78] sm:$0xff]
    %v1134 = vunpack.c.l.b16 %v1102
    %v1135 = vunpack.c.h.b16 %v1102
    %v1136 = vunpack.c.l.b16 %v1103
    %v1137 = vunpack.c.h.b16 %v1103
    %v1138 = vunpack.c.l.b16 %v1104
    %v1139 = vunpack.c.h.b16 %v1104
    %v1140 = vunpack.c.l.b16 %v1105
    %v1141 = vunpack.c.h.b16 %v1105
    %v1142 = vunpack.c.l.b16 %v1106
    %v1143 = vunpack.c.h.b16 %v1106
    %v1144 = vunpack.c.l.b16 %v1107
    %v1145 = vunpack.c.h.b16 %v1107
    %v1146 = vunpack.c.l.b16 %v1108
    %v1147 = vunpack.c.h.b16 %v1108
    %v1148 = vunpack.c.l.b16 %v1109
    %v1149 = vunpack.c.h.b16 %v1109
    %v1150 = vunpack.c.l.b16 %v1110
    %v1151 = vunpack.c.h.b16 %v1110
    %v1152 = vunpack.c.l.b16 %v1111
    %v1153 = vunpack.c.h.b16 %v1111
    %v1154 = vunpack.c.l.b16 %v1112
    %v1155 = vunpack.c.h.b16 %v1112
    %v1156 = vunpack.c.l.b16 %v1113
    %v1157 = vunpack.c.h.b16 %v1113
    %v1158 = vunpack.c.l.b16 %v1114
    %v1159 = vunpack.c.h.b16 %v1114
    %v1160 = vunpack.c.l.b16 %v1115
    %v1161 = vunpack.c.h.b16 %v1115
    %v1162 = vunpack.c.l.b16 %v1116
    %v1163 = vunpack.c.h.b16 %v1116
    %v1164 = vunpack.c.l.b16 %v1117
    %v1165 = vunpack.c.h.b16 %v1117
    %v1166 = vpack.c.b16 %v1136, %v1134
    %v1167 = vpack.c.b16 %v1137, %v1135
    %v1168 = vpack.c.b16 %v1140, %v1138
    %v1169 = vpack.c.b16 %v1141, %v1139
    %v1170 = vpack.c.b16 %v1144, %v1142
    %v1171 = vpack.c.b16 %v1145, %v1143
    %v1172 = vpack.c.b16 %v1148, %v1146
    %v1173 = vpack.c.b16 %v1149, %v1147
    %v1174 = vpack.c.b16 %v1152, %v1150
    %v1175 = vpack.c.b16 %v1153, %v1151
    %v1176 = vpack.c.b16 %v1156, %v1154
    %v1177 = vpack.c.b16 %v1157, %v1155
    %v1178 = vpack.c.b16 %v1160, %v1158
    %v1179 = vpack.c.b16 %v1161, %v1159
    %v1180 = vpack.c.b16 %v1164, %v1162
    %v1181 = vpack.c.b16 %v1165, %v1163
    %1198 = vmatprep.subr.bf16.mxu0 0
    %1199 = vmatpush1.bf16.msra.mxu0 %v1085
    %1200 = vmatprep.subr.bf16.mxu0 0
    %1201 = vmatpush1.bf16.msra.mxu0 %v1086
    %1202 = vmatprep.subr.bf16.mxu0 0
    %1203 = vmatpush1.bf16.msra.mxu0 %v1087
    %1204 = vmatprep.subr.bf16.mxu0 0
    %1205 = vmatpush1.bf16.msra.mxu0 %v1088
    %1206 = vmatprep.subr.bf16.mxu0 0
    %1207 = vmatpush1.bf16.msra.mxu0 %v1089
    %1208 = vmatprep.subr.bf16.mxu0 0
    %1209 = vmatpush1.bf16.msra.mxu0 %v1090
    %1210 = vmatprep.subr.bf16.mxu0 0
    %1211 = vmatpush1.bf16.msra.mxu0 %v1091
    %1212 = vmatprep.subr.bf16.mxu0 0
    %1213 = vmatpush1.bf16.msra.mxu0 %v1092
    %1214 = vmatprep.subr.bf16.mxu0 0
    %1215 = vmatpush1.bf16.msra.mxu0 %v1093
    %1216 = vmatprep.subr.bf16.mxu0 0
    %1217 = vmatpush1.bf16.msra.mxu0 %v1094
    %1218 = vmatprep.subr.bf16.mxu0 0
    %1219 = vmatpush1.bf16.msra.mxu0 %v1095
    %1220 = vmatprep.subr.bf16.mxu0 0
    %1221 = vmatpush1.bf16.msra.mxu0 %v1096
    %1222 = vmatprep.subr.bf16.mxu0 0
    %1223 = vmatpush1.bf16.msra.mxu0 %v1097
    %1224 = vmatprep.subr.bf16.mxu0 0
    %1225 = vmatpush1.bf16.msra.mxu0 %v1098
    %1226 = vmatprep.subr.bf16.mxu0 0
    %1227 = vmatpush1.bf16.msra.mxu0 %v1099
    %1228 = vmatprep.subr.bf16.mxu0 0
    %1229 = vmatpush1.bf16.msra.mxu0 %v1100
    %1230 = vmatprep.mubr.bf16.mxu0 %v1167
    %1231 = vmatmul.mubr.bf16.gmra.mrb[0].mxu0 %v1166
    %v1232 = vpop.f32.mrb[0].mxu0
    %v1233 = vadd.f32 0.0, %v1232
    %v1234 = vpop.f32.mrb[0].mxu0
    %v1235 = vpop.f32.mrb[0].mxu0
    %v1236 = vadd.f32 0.0, %v1235
    %v1237 = vpop.f32.mrb[0].mxu0
    %1238 = vmatprep.mubr.bf16.mxu0 %v1169
    %1239 = vmatmul.mubr.bf16.gmra.mrb[0].mxu0 %v1168
    %v1240 = vpop.f32.mrb[0].mxu0
    %v1241 = vadd.f32 0.0, %v1240
    %v1242 = vpop.f32.mrb[0].mxu0
    %v1243 = vpop.f32.mrb[0].mxu0
    %v1244 = vadd.f32 0.0, %v1243
    %v1245 = vpop.f32.mrb[0].mxu0
    %1246 = vmatprep.mubr.bf16.mxu0 %v1171
    %1247 = vmatmul.mubr.bf16.gmra.mrb[0].mxu0 %v1170
    %v1248 = vpop.f32.mrb[0].mxu0
    %v1249 = vadd.f32 0.0, %v1248
    %v1250 = vpop.f32.mrb[0].mxu0
    %v1251 = vpop.f32.mrb[0].mxu0
    %v1252 = vadd.f32 0.0, %v1251
    %v1253 = vpop.f32.mrb[0].mxu0
    %1254 = vmatprep.mubr.bf16.mxu0 %v1173
    %1255 = vmatmul.mubr.bf16.gmra.mrb[0].mxu0 %v1172
    %v1256 = vpop.f32.mrb[0].mxu0
    %v1257 = vadd.f32 0.0, %v1256
    %v1258 = vpop.f32.mrb[0].mxu0
    %v1259 = vpop.f32.mrb[0].mxu0
    %v1260 = vadd.f32 0.0, %v1259
    %v1261 = vpop.f32.mrb[0].mxu0
    %1262 = vmatprep.mubr.bf16.mxu0 %v1175
    %1263 = vmatmul.mubr.bf16.gmra.mrb[0].mxu0 %v1174
    %v1264 = vpop.f32.mrb[0].mxu0
    %v1265 = vadd.f32 0.0, %v1264
    %v1266 = vpop.f32.mrb[0].mxu0
    %v1267 = vpop.f32.mrb[0].mxu0
    %v1268 = vadd.f32 0.0, %v1267
    %v1269 = vpop.f32.mrb[0].mxu0
    %1270 = vmatprep.mubr.bf16.mxu0 %v1177
    %1271 = vmatmul.mubr.bf16.gmra.mrb[0].mxu0 %v1176
    %v1272 = vpop.f32.mrb[0].mxu0
    %v1273 = vadd.f32 0.0, %v1272
    %v1274 = vpop.f32.mrb[0].mxu0
    %v1275 = vpop.f32.mrb[0].mxu0
    %v1276 = vadd.f32 0.0, %v1275
    %v1277 = vpop.f32.mrb[0].mxu0
    %1278 = vmatprep.mubr.bf16.mxu0 %v1179
    %1279 = vmatmul.mubr.bf16.gmra.mrb[0].mxu0 %v1178
    %v1280 = vpop.f32.mrb[0].mxu0
    %v1281 = vadd.f32 0.0, %v1280
    %v1282 = vpop.f32.mrb[0].mxu0
    %v1283 = vpop.f32.mrb[0].mxu0
    %v1284 = vadd.f32 0.0, %v1283
    %v1285 = vpop.f32.mrb[0].mxu0
    %1286 = vmatprep.mubr.bf16.mxu0 %v1181
    %1287 = vmatmul.mubr.bf16.gmra.mrb[0].mxu0 %v1180
    %v1288 = vpop.f32.mrb[0].mxu0
    %v1289 = vadd.f32 0.0, %v1288
    %v1290 = vpop.f32.mrb[0].mxu0
    %v1291 = vpop.f32.mrb[0].mxu0
    %v1292 = vadd.f32 0.0, %v1291
    %v1293 = vpop.f32.mrb[0].mxu0
    %1294 = vdwg.mxu0
    %v1295 = vadd.f32 %v1023, %v1233
    %v1296 = vadd.f32 %v1026, %v1236
    %v1297 = vadd.f32 %v1031, %v1241
    %v1298 = vadd.f32 %v1034, %v1244
    %v1299 = vadd.f32 %v1039, %v1249
    %v1300 = vadd.f32 %v1042, %v1252
    %v1301 = vadd.f32 %v1047, %v1257
    %v1302 = vadd.f32 %v1050, %v1260
    %v1303 = vadd.f32 %v1055, %v1265
    %v1304 = vadd.f32 %v1058, %v1268
    %v1305 = vadd.f32 %v1063, %v1273
    %v1306 = vadd.f32 %v1066, %v1276
    %v1307 = vadd.f32 %v1071, %v1281
    %v1308 = vadd.f32 %v1074, %v1284
    %v1309 = vadd.f32 %v1079, %v1289
    %v1310 = vadd.f32 %v1082, %v1292
    %v1311 = vld [vmem:[%s3] sm:$0x1]
    %v1313 = vlaneseq
    %v1314 = vshrl.u32 %v1313, 7
    %v1315 = vsub.s32 0, %v1314
    %v1316 = vrot.slane %v1311, %v1315
    %v1318 = vadd.f32 %v1295, %v1316
    %v1319 = vadd.f32 %v1296, %v1316
    %v1320 = vadd.f32 %v1297, %v1316
    %v1321 = vadd.f32 %v1298, %v1316
    %v1322 = vadd.f32 %v1299, %v1316
    %v1323 = vadd.f32 %v1300, %v1316
    %v1324 = vadd.f32 %v1301, %v1316
    %v1325 = vadd.f32 %v1302, %v1316
    %v1326 = vadd.f32 %v1303, %v1316
    %v1327 = vadd.f32 %v1304, %v1316
    %v1328 = vadd.f32 %v1305, %v1316
    %v1329 = vadd.f32 %v1306, %v1316
    %v1330 = vadd.f32 %v1307, %v1316
    %v1331 = vadd.f32 %v1308, %v1316
    %v1332 = vadd.f32 %v1309, %v1316
    %v1333 = vadd.f32 %v1310, %v1316
    %v1334 = vmax.f32 %v1318, 0.0
    %v1335 = vmax.f32 %v1319, 0.0
    %v1336 = vmax.f32 %v1320, 0.0
    %v1337 = vmax.f32 %v1321, 0.0
    %v1338 = vmax.f32 %v1322, 0.0
    %v1339 = vmax.f32 %v1323, 0.0
    %v1340 = vmax.f32 %v1324, 0.0
    %v1341 = vmax.f32 %v1325, 0.0
    %v1342 = vmax.f32 %v1326, 0.0
    %v1343 = vmax.f32 %v1327, 0.0
    %v1344 = vmax.f32 %v1328, 0.0
    %v1345 = vmax.f32 %v1329, 0.0
    %v1346 = vmax.f32 %v1330, 0.0
    %v1347 = vmax.f32 %v1331, 0.0
    %v1348 = vmax.f32 %v1332, 0.0
    %v1349 = vmax.f32 %v1333, 0.0
    %v1350 = vpack.c.bf16 %v1335, %v1334
    %v1351 = vpack.c.bf16 %v1337, %v1336
    %v1352 = vpack.c.bf16 %v1339, %v1338
    %v1353 = vpack.c.bf16 %v1341, %v1340
    %v1354 = vpack.c.bf16 %v1343, %v1342
    %v1355 = vpack.c.bf16 %v1345, %v1344
    %v1356 = vpack.c.bf16 %v1347, %v1346
    %v1357 = vpack.c.bf16 %v1349, %v1348
    %v1358 = vld [vmem:[%s5] sm:$0xff]
    %v1359 = vld [vmem:[%s5 + $0x8] sm:$0xf]
    %v1360 = vld [vmem:[%s5 + $0xc] sm:$0xff]
    %v1361 = vld [vmem:[%s5 + $0x14] sm:$0xf]
    %v1362 = vld [vmem:[%s5 + $0x18] sm:$0xff]
    %v1363 = vld [vmem:[%s5 + $0x20] sm:$0xf]
    %v1364 = vld [vmem:[%s5 + $0x24] sm:$0xff]
    %v1365 = vld [vmem:[%s5 + $0x2c] sm:$0xf]
    %v1366 = vld [vmem:[%s5 + $0x30] sm:$0xff]
    %v1367 = vld [vmem:[%s5 + $0x38] sm:$0xf]
    %v1368 = vld [vmem:[%s5 + $0x3c] sm:$0xff]
    %v1369 = vld [vmem:[%s5 + $0x44] sm:$0xf]
    %v1370 = vld [vmem:[%s5 + $0x48] sm:$0xff]
    %v1371 = vld [vmem:[%s5 + $0x50] sm:$0xf]
    %v1372 = vld [vmem:[%s5 + $0x54] sm:$0xff]
    %v1373 = vld [vmem:[%s5 + $0x5c] sm:$0xf]
    %v1374 = vld [vmem:[%s5 + $0x60] sm:$0xff]
    %v1375 = vld [vmem:[%s5 + $0x68] sm:$0xf]
    %v1376 = vld [vmem:[%s5 + $0x6c] sm:$0xff]
    %v1377 = vld [vmem:[%s5 + $0x74] sm:$0xf]
    %v1378 = vld [vmem:[%s5 + $0x78] sm:$0xff]
    %v1379 = vld [vmem:[%s5 + $0x80] sm:$0xf]
    %v1380 = vld [vmem:[%s5 + $0x84] sm:$0xff]
    %v1381 = vld [vmem:[%s5 + $0x8c] sm:$0xf]
    %v1382 = vld [vmem:[%s5 + $0x90] sm:$0xff]
    %v1383 = vld [vmem:[%s5 + $0x98] sm:$0xf]
    %v1384 = vld [vmem:[%s5 + $0x9c] sm:$0xff]
    %v1385 = vld [vmem:[%s5 + $0xa4] sm:$0xf]
    %v1386 = vld [vmem:[%s5 + $0xa8] sm:$0xff]
    %v1387 = vld [vmem:[%s5 + $0xb0] sm:$0xf]
    %v1388 = vld [vmem:[%s5 + $0xb4] sm:$0xff]
    %v1389 = vld [vmem:[%s5 + $0xbc] sm:$0xf]
    %v1422 = vunpack.c.l.b16 %v1358
    %v1423 = vunpack.c.h.b16 %v1358
    %v1424 = vunpack.c.l.b16 %v1359
    %v1425 = vunpack.c.l.b16 %v1360
    %v1426 = vunpack.c.h.b16 %v1360
    %v1427 = vunpack.c.l.b16 %v1361
    %v1428 = vunpack.c.l.b16 %v1362
    %v1429 = vunpack.c.h.b16 %v1362
    %v1430 = vunpack.c.l.b16 %v1363
    %v1431 = vunpack.c.l.b16 %v1364
    %v1432 = vunpack.c.h.b16 %v1364
    %v1433 = vunpack.c.l.b16 %v1365
    %v1434 = vunpack.c.l.b16 %v1366
    %v1435 = vunpack.c.h.b16 %v1366
    %v1436 = vunpack.c.l.b16 %v1367
    %v1437 = vunpack.c.l.b16 %v1368
    %v1438 = vunpack.c.h.b16 %v1368
    %v1439 = vunpack.c.l.b16 %v1369
    %v1440 = vunpack.c.l.b16 %v1370
    %v1441 = vunpack.c.h.b16 %v1370
    %v1442 = vunpack.c.l.b16 %v1371
    %v1443 = vunpack.c.l.b16 %v1372
    %v1444 = vunpack.c.h.b16 %v1372
    %v1445 = vunpack.c.l.b16 %v1373
    %v1446 = vunpack.c.l.b16 %v1374
    %v1447 = vunpack.c.h.b16 %v1374
    %v1448 = vunpack.c.l.b16 %v1375
    %v1449 = vunpack.c.l.b16 %v1376
    %v1450 = vunpack.c.h.b16 %v1376
    %v1451 = vunpack.c.l.b16 %v1377
    %v1452 = vunpack.c.l.b16 %v1378
    %v1453 = vunpack.c.h.b16 %v1378
    %v1454 = vunpack.c.l.b16 %v1379
    %v1455 = vunpack.c.l.b16 %v1380
    %v1456 = vunpack.c.h.b16 %v1380
    %v1457 = vunpack.c.l.b16 %v1381
    %v1458 = vunpack.c.l.b16 %v1382
    %v1459 = vunpack.c.h.b16 %v1382
    %v1460 = vunpack.c.l.b16 %v1383
    %v1461 = vunpack.c.l.b16 %v1384
    %v1462 = vunpack.c.h.b16 %v1384
    %v1463 = vunpack.c.l.b16 %v1385
    %v1464 = vunpack.c.l.b16 %v1386
    %v1465 = vunpack.c.h.b16 %v1386
    %v1466 = vunpack.c.l.b16 %v1387
    %v1467 = vunpack.c.l.b16 %v1388
    %v1468 = vunpack.c.h.b16 %v1388
    %v1469 = vunpack.c.l.b16 %v1389
    %v1470 = vpack.c.b16 %v1425, %v1422
    %v1471 = vpack.c.b16 %v1426, %v1423
    %v1472 = vpack.c.b16 %v1427, %v1424
    %v1473 = vpack.c.b16 %v1431, %v1428
    %v1474 = vpack.c.b16 %v1432, %v1429
    %v1475 = vpack.c.b16 %v1433, %v1430
    %v1476 = vpack.c.b16 %v1437, %v1434
    %v1477 = vpack.c.b16 %v1438, %v1435
    %v1478 = vpack.c.b16 %v1439, %v1436
    %v1479 = vpack.c.b16 %v1443, %v1440
    %v1480 = vpack.c.b16 %v1444, %v1441
    %v1481 = vpack.c.b16 %v1445, %v1442
    %v1482 = vpack.c.b16 %v1449, %v1446
    %v1483 = vpack.c.b16 %v1450, %v1447
    %v1484 = vpack.c.b16 %v1451, %v1448
    %v1485 = vpack.c.b16 %v1455, %v1452
    %v1486 = vpack.c.b16 %v1456, %v1453
    %v1487 = vpack.c.b16 %v1457, %v1454
    %v1488 = vpack.c.b16 %v1461, %v1458
    %v1489 = vpack.c.b16 %v1462, %v1459
    %v1490 = vpack.c.b16 %v1463, %v1460
    %v1491 = vpack.c.b16 %v1467, %v1464
    %v1492 = vpack.c.b16 %v1468, %v1465
    %v1493 = vpack.c.b16 %v1469, %v1466
    %1518 = vmatprep.subr.bf16.mxu0 %v1471
    %1519 = vmatpush1.bf16.msra.mxu0 %v1470
    %1520 = vmatprep.subr.bf16.mxu0 %v1474
    %1521 = vmatpush1.bf16.msra.mxu0 %v1473
    %1522 = vmatprep.subr.bf16.mxu0 %v1477
    %1523 = vmatpush1.bf16.msra.mxu0 %v1476
    %1524 = vmatprep.subr.bf16.mxu0 %v1480
    %1525 = vmatpush1.bf16.msra.mxu0 %v1479
    %1526 = vmatprep.subr.bf16.mxu0 %v1483
    %1527 = vmatpush1.bf16.msra.mxu0 %v1482
    %1528 = vmatprep.subr.bf16.mxu0 %v1486
    %1529 = vmatpush1.bf16.msra.mxu0 %v1485
    %1530 = vmatprep.subr.bf16.mxu0 %v1489
    %1531 = vmatpush1.bf16.msra.mxu0 %v1488
    %1532 = vmatprep.subr.bf16.mxu0 %v1492
    %1533 = vmatpush1.bf16.msra.mxu0 %v1491
    %1534 = vmatprep.subr.bf16.mxu0 0
    %1535 = vmatpush1.bf16.msra.mxu0 0
    %1536 = vmatprep.subr.bf16.mxu0 0
    %1537 = vmatpush1.bf16.msra.mxu0 0
    %1538 = vmatprep.subr.bf16.mxu0 0
    %1539 = vmatpush1.bf16.msra.mxu0 0
    %1540 = vmatprep.subr.bf16.mxu0 0
    %1541 = vmatpush1.bf16.msra.mxu0 0
    %1542 = vmatprep.subr.bf16.mxu0 0
    %1543 = vmatpush1.bf16.msra.mxu0 0
    %1544 = vmatprep.subr.bf16.mxu0 0
    %1545 = vmatpush1.bf16.msra.mxu0 0
    %1546 = vmatprep.subr.bf16.mxu0 0
    %1547 = vmatpush1.bf16.msra.mxu0 0
    %1548 = vmatprep.subr.bf16.mxu0 0
    %1549 = vmatpush1.bf16.msra.mxu0 0
    %1550 = vmatprep.mubr.bf16.mxu0 0
    %1551 = vmatmul.mubr.bf16.gmra.mrb[0].mxu0 %v1350
    %v1552 = vpop.f32.mrb[0].mxu0
    %v1553 = vadd.f32 0.0, %v1552
    %v1554 = vpop.f32.mrb[0].mxu0
    %v1555 = vadd.f32 0.0, %v1554
    %v1556 = vpop.f32.mrb[0].mxu0
    %v1557 = vadd.f32 0.0, %v1556
    %v1558 = vpop.f32.mrb[0].mxu0
    %v1559 = vadd.f32 0.0, %v1558
    %1560 = vmatprep.mubr.bf16.mxu0 0
    %1561 = vmatmul.mubr.bf16.gmra.mrb[0].mxu0 %v1351
    %v1562 = vpop.f32.mrb[0].mxu0
    %v1563 = vadd.f32 0.0, %v1562
    %v1564 = vpop.f32.mrb[0].mxu0
    %v1565 = vadd.f32 0.0, %v1564
    %v1566 = vpop.f32.mrb[0].mxu0
    %v1567 = vadd.f32 0.0, %v1566
    %v1568 = vpop.f32.mrb[0].mxu0
    %v1569 = vadd.f32 0.0, %v1568
    %1570 = vmatprep.mubr.bf16.mxu0 0
    %1571 = vmatmul.mubr.bf16.gmra.mrb[0].mxu0 %v1352
    %v1572 = vpop.f32.mrb[0].mxu0
    %v1573 = vadd.f32 0.0, %v1572
    %v1574 = vpop.f32.mrb[0].mxu0
    %v1575 = vadd.f32 0.0, %v1574
    %v1576 = vpop.f32.mrb[0].mxu0
    %v1577 = vadd.f32 0.0, %v1576
    %v1578 = vpop.f32.mrb[0].mxu0
    %v1579 = vadd.f32 0.0, %v1578
    %1580 = vmatprep.mubr.bf16.mxu0 0
    %1581 = vmatmul.mubr.bf16.gmra.mrb[0].mxu0 %v1353
    %v1582 = vpop.f32.mrb[0].mxu0
    %v1583 = vadd.f32 0.0, %v1582
    %v1584 = vpop.f32.mrb[0].mxu0
    %v1585 = vadd.f32 0.0, %v1584
    %v1586 = vpop.f32.mrb[0].mxu0
    %v1587 = vadd.f32 0.0, %v1586
    %v1588 = vpop.f32.mrb[0].mxu0
    %v1589 = vadd.f32 0.0, %v1588
    %1590 = vmatprep.mubr.bf16.mxu0 0
    %1591 = vmatmul.mubr.bf16.gmra.mrb[0].mxu0 %v1354
    %v1592 = vpop.f32.mrb[0].mxu0
    %v1593 = vadd.f32 0.0, %v1592
    %v1594 = vpop.f32.mrb[0].mxu0
    %v1595 = vadd.f32 0.0, %v1594
    %v1596 = vpop.f32.mrb[0].mxu0
    %v1597 = vadd.f32 0.0, %v1596
    %v1598 = vpop.f32.mrb[0].mxu0
    %v1599 = vadd.f32 0.0, %v1598
    %1600 = vmatprep.mubr.bf16.mxu0 0
    %1601 = vmatmul.mubr.bf16.gmra.mrb[0].mxu0 %v1355
    %v1602 = vpop.f32.mrb[0].mxu0
    %v1603 = vadd.f32 0.0, %v1602
    %v1604 = vpop.f32.mrb[0].mxu0
    %v1605 = vadd.f32 0.0, %v1604
    %v1606 = vpop.f32.mrb[0].mxu0
    %v1607 = vadd.f32 0.0, %v1606
    %v1608 = vpop.f32.mrb[0].mxu0
    %v1609 = vadd.f32 0.0, %v1608
    %1610 = vmatprep.mubr.bf16.mxu0 0
    %1611 = vmatmul.mubr.bf16.gmra.mrb[0].mxu0 %v1356
    %v1612 = vpop.f32.mrb[0].mxu0
    %v1613 = vadd.f32 0.0, %v1612
    %v1614 = vpop.f32.mrb[0].mxu0
    %v1615 = vadd.f32 0.0, %v1614
    %v1616 = vpop.f32.mrb[0].mxu0
    %v1617 = vadd.f32 0.0, %v1616
    %v1618 = vpop.f32.mrb[0].mxu0
    %v1619 = vadd.f32 0.0, %v1618
    %1620 = vmatprep.mubr.bf16.mxu0 0
    %1621 = vmatmul.mubr.bf16.gmra.mrb[0].mxu0 %v1357
    %v1622 = vpop.f32.mrb[0].mxu0
    %v1623 = vadd.f32 0.0, %v1622
    %v1624 = vpop.f32.mrb[0].mxu0
    %v1625 = vadd.f32 0.0, %v1624
    %v1626 = vpop.f32.mrb[0].mxu0
    %v1627 = vadd.f32 0.0, %v1626
    %v1628 = vpop.f32.mrb[0].mxu0
    %v1629 = vadd.f32 0.0, %v1628
    %1630 = vdwg.mxu0
    %1631 = vmatprep.subr.bf16.mxu0 0
    %1632 = vmatpush1.bf16.msra.mxu0 %v1472
    %1633 = vmatprep.subr.bf16.mxu0 0
    %1634 = vmatpush1.bf16.msra.mxu0 %v1475
    %1635 = vmatprep.subr.bf16.mxu0 0
    %1636 = vmatpush1.bf16.msra.mxu0 %v1478
    %1637 = vmatprep.subr.bf16.mxu0 0
    %1638 = vmatpush1.bf16.msra.mxu0 %v1481
    %1639 = vmatprep.subr.bf16.mxu0 0
    %1640 = vmatpush1.bf16.msra.mxu0 %v1484
    %1641 = vmatprep.subr.bf16.mxu0 0
    %1642 = vmatpush1.bf16.msra.mxu0 %v1487
    %1643 = vmatprep.subr.bf16.mxu0 0
    %1644 = vmatpush1.bf16.msra.mxu0 %v1490
    %1645 = vmatprep.subr.bf16.mxu0 0
    %1646 = vmatpush1.bf16.msra.mxu0 %v1493
    %1647 = vmatprep.subr.bf16.mxu0 0
    %1648 = vmatpush1.bf16.msra.mxu0 0
    %1649 = vmatprep.subr.bf16.mxu0 0
    %1650 = vmatpush1.bf16.msra.mxu0 0
    %1651 = vmatprep.subr.bf16.mxu0 0
    %1652 = vmatpush1.bf16.msra.mxu0 0
    %1653 = vmatprep.subr.bf16.mxu0 0
    %1654 = vmatpush1.bf16.msra.mxu0 0
    %1655 = vmatprep.subr.bf16.mxu0 0
    %1656 = vmatpush1.bf16.msra.mxu0 0
    %1657 = vmatprep.subr.bf16.mxu0 0
    %1658 = vmatpush1.bf16.msra.mxu0 0
    %1659 = vmatprep.subr.bf16.mxu0 0
    %1660 = vmatpush1.bf16.msra.mxu0 0
    %1661 = vmatprep.subr.bf16.mxu0 0
    %1662 = vmatpush1.bf16.msra.mxu0 0
    %1663 = vmatprep.mubr.bf16.mxu0 0
    %1664 = vmatmul.mubr.bf16.gmra.mrb[0].mxu0 %v1350
    %v1665 = vpop.f32.mrb[0].mxu0
    %v1666 = vadd.f32 0.0, %v1665
    %v1667 = vpop.f32.mrb[0].mxu0
    %v1668 = vpop.f32.mrb[0].mxu0
    %v1669 = vadd.f32 0.0, %v1668
    %v1670 = vpop.f32.mrb[0].mxu0
    %1671 = vmatprep.mubr.bf16.mxu0 0
    %1672 = vmatmul.mubr.bf16.gmra.mrb[0].mxu0 %v1351
    %v1673 = vpop.f32.mrb[0].mxu0
    %v1674 = vadd.f32 0.0, %v1673
    %v1675 = vpop.f32.mrb[0].mxu0
    %v1676 = vpop.f32.mrb[0].mxu0
    %v1677 = vadd.f32 0.0, %v1676
    %v1678 = vpop.f32.mrb[0].mxu0
    %1679 = vmatprep.mubr.bf16.mxu0 0
    %1680 = vmatmul.mubr.bf16.gmra.mrb[0].mxu0 %v1352
    %v1681 = vpop.f32.mrb[0].mxu0
    %v1682 = vadd.f32 0.0, %v1681
    %v1683 = vpop.f32.mrb[0].mxu0
    %v1684 = vpop.f32.mrb[0].mxu0
    %v1685 = vadd.f32 0.0, %v1684
    %v1686 = vpop.f32.mrb[0].mxu0
    %1687 = vmatprep.mubr.bf16.mxu0 0
    %1688 = vmatmul.mubr.bf16.gmra.mrb[0].mxu0 %v1353
    %v1689 = vpop.f32.mrb[0].mxu0
    %v1690 = vadd.f32 0.0, %v1689
    %v1691 = vpop.f32.mrb[0].mxu0
    %v1692 = vpop.f32.mrb[0].mxu0
    %v1693 = vadd.f32 0.0, %v1692
    %v1694 = vpop.f32.mrb[0].mxu0
    %1695 = vmatprep.mubr.bf16.mxu0 0
    %1696 = vmatmul.mubr.bf16.gmra.mrb[0].mxu0 %v1354
    %v1697 = vpop.f32.mrb[0].mxu0
    %v1698 = vadd.f32 0.0, %v1697
    %v1699 = vpop.f32.mrb[0].mxu0
    %v1700 = vpop.f32.mrb[0].mxu0
    %v1701 = vadd.f32 0.0, %v1700
    %v1702 = vpop.f32.mrb[0].mxu0
    %1703 = vmatprep.mubr.bf16.mxu0 0
    %1704 = vmatmul.mubr.bf16.gmra.mrb[0].mxu0 %v1355
    %v1705 = vpop.f32.mrb[0].mxu0
    %v1706 = vadd.f32 0.0, %v1705
    %v1707 = vpop.f32.mrb[0].mxu0
    %v1708 = vpop.f32.mrb[0].mxu0
    %v1709 = vadd.f32 0.0, %v1708
    %v1710 = vpop.f32.mrb[0].mxu0
    %1711 = vmatprep.mubr.bf16.mxu0 0
    %1712 = vmatmul.mubr.bf16.gmra.mrb[0].mxu0 %v1356
    %v1713 = vpop.f32.mrb[0].mxu0
    %v1714 = vadd.f32 0.0, %v1713
    %v1715 = vpop.f32.mrb[0].mxu0
    %v1716 = vpop.f32.mrb[0].mxu0
    %v1717 = vadd.f32 0.0, %v1716
    %v1718 = vpop.f32.mrb[0].mxu0
    %1719 = vmatprep.mubr.bf16.mxu0 0
    %1720 = vmatmul.mubr.bf16.gmra.mrb[0].mxu0 %v1357
    %v1721 = vpop.f32.mrb[0].mxu0
    %v1722 = vadd.f32 0.0, %v1721
    %v1723 = vpop.f32.mrb[0].mxu0
    %v1724 = vpop.f32.mrb[0].mxu0
    %v1725 = vadd.f32 0.0, %v1724
    %v1726 = vpop.f32.mrb[0].mxu0
    %1727 = vdwg.mxu0
    %v1728 = vpack.c.bf16 %v1557, %v1553
    %v1729 = vpack.c.bf16 %v1567, %v1563
    %v1730 = vpack.c.bf16 %v1577, %v1573
    %v1731 = vpack.c.bf16 %v1587, %v1583
    %v1732 = vpack.c.bf16 %v1597, %v1593
    %v1733 = vpack.c.bf16 %v1607, %v1603
    %v1734 = vpack.c.bf16 %v1617, %v1613
    %v1735 = vpack.c.bf16 %v1627, %v1623
    %v1736 = vld [vmem:[#allocation5] sm:$0xf]
    %v1737 = vld [vmem:[#allocation5 + $0x4] sm:$0xf]
    %v1738 = vld [vmem:[#allocation5 + $0x8] sm:$0xf]
    %v1739 = vld [vmem:[#allocation5 + $0xc] sm:$0xf]
    %v1740 = vld [vmem:[#allocation5 + $0x10] sm:$0xf]
    %v1741 = vld [vmem:[#allocation5 + $0x14] sm:$0xf]
    %v1742 = vld [vmem:[#allocation5 + $0x18] sm:$0xf]
    %v1743 = vld [vmem:[#allocation5 + $0x1c] sm:$0xf]
    %v1744 = vpack.c.bf16 %v1559, %v1555
    %v1745 = vpack.c.bf16 %v1569, %v1565
    %v1746 = vpack.c.bf16 %v1579, %v1575
    %v1747 = vpack.c.bf16 %v1589, %v1585
    %v1748 = vpack.c.bf16 %v1599, %v1595
    %v1749 = vpack.c.bf16 %v1609, %v1605
    %v1750 = vpack.c.bf16 %v1619, %v1615
    %v1751 = vpack.c.bf16 %v1629, %v1625
    %s1752 = scalar_lea.vmem [#allocation5], 32
    %v1753 = vld [vmem:[%s1752] sm:$0xf]
    %v1754 = vld [vmem:[%s1752 + $0x4] sm:$0xf]
    %v1755 = vld [vmem:[%s1752 + $0x8] sm:$0xf]
    %v1756 = vld [vmem:[%s1752 + $0xc] sm:$0xf]
    %v1757 = vld [vmem:[%s1752 + $0x10] sm:$0xf]
    %v1758 = vld [vmem:[%s1752 + $0x14] sm:$0xf]
    %v1759 = vld [vmem:[%s1752 + $0x18] sm:$0xf]
    %v1760 = vld [vmem:[%s1752 + $0x1c] sm:$0xf]
    %v1769 = vunpack.c.l.b16 %v1753
    %v1770 = vunpack.c.l.b16 %v1754
    %v1771 = vunpack.c.l.b16 %v1755
    %v1772 = vunpack.c.l.b16 %v1756
    %v1773 = vunpack.c.l.b16 %v1757
    %v1774 = vunpack.c.l.b16 %v1758
    %v1775 = vunpack.c.l.b16 %v1759
    %v1776 = vunpack.c.l.b16 %v1760
    %v1777 = vpack.c.b16 %v1770, %v1769
    %v1778 = vpack.c.b16 %v1772, %v1771
    %v1779 = vpack.c.b16 %v1774, %v1773
    %v1780 = vpack.c.b16 %v1776, %v1775
    %1785 = vmatprep.subr.bf16.mxu0 0
    %1786 = vmatpush1.bf16.msra.mxu0 %v1744
    %1787 = vmatprep.subr.bf16.mxu0 0
    %1788 = vmatpush1.bf16.msra.mxu0 %v1745
    %1789 = vmatprep.subr.bf16.mxu0 0
    %1790 = vmatpush1.bf16.msra.mxu0 %v1746
    %1791 = vmatprep.subr.bf16.mxu0 0
    %1792 = vmatpush1.bf16.msra.mxu0 %v1747
    %1793 = vmatprep.subr.bf16.mxu0 0
    %1794 = vmatpush1.bf16.msra.mxu0 %v1748
    %1795 = vmatprep.subr.bf16.mxu0 0
    %1796 = vmatpush1.bf16.msra.mxu0 %v1749
    %1797 = vmatprep.subr.bf16.mxu0 0
    %1798 = vmatpush1.bf16.msra.mxu0 %v1750
    %1799 = vmatprep.subr.bf16.mxu0 0
    %1800 = vmatpush1.bf16.msra.mxu0 %v1751
    %1801 = vmatprep.subr.bf16.mxu0 0
    %1802 = vmatpush1.bf16.msra.mxu0 0
    %1803 = vmatprep.subr.bf16.mxu0 0
    %1804 = vmatpush1.bf16.msra.mxu0 0
    %1805 = vmatprep.subr.bf16.mxu0 0
    %1806 = vmatpush1.bf16.msra.mxu0 0
    %1807 = vmatprep.subr.bf16.mxu0 0
    %1808 = vmatpush1.bf16.msra.mxu0 0
    %1809 = vmatprep.subr.bf16.mxu0 0
    %1810 = vmatpush1.bf16.msra.mxu0 0
    %1811 = vmatprep.subr.bf16.mxu0 0
    %1812 = vmatpush1.bf16.msra.mxu0 0
    %1813 = vmatprep.subr.bf16.mxu0 0
    %1814 = vmatpush1.bf16.msra.mxu0 0
    %1815 = vmatprep.subr.bf16.mxu0 0
    %1816 = vmatpush1.bf16.msra.mxu0 0
    %1817 = vmatprep.mubr.bf16.mxu0 0
    %1818 = vmatmul.mubr.bf16.gmra.mrb[0].mxu0 %v1777
    %v1819 = vpop.f32.mrb[0].mxu0
    %v1820 = vadd.f32 0.0, %v1819
    %v1821 = vpop.f32.mrb[0].mxu0
    %v1822 = vpop.f32.mrb[0].mxu0
    %v1823 = vadd.f32 0.0, %v1822
    %v1824 = vpop.f32.mrb[0].mxu0
    %1825 = vmatprep.mubr.bf16.mxu0 0
    %1826 = vmatmul.mubr.bf16.gmra.mrb[0].mxu0 %v1778
    %v1827 = vpop.f32.mrb[0].mxu0
    %v1828 = vadd.f32 0.0, %v1827
    %v1829 = vpop.f32.mrb[0].mxu0
    %v1830 = vpop.f32.mrb[0].mxu0
    %v1831 = vadd.f32 0.0, %v1830
    %v1832 = vpop.f32.mrb[0].mxu0
    %1833 = vmatprep.mubr.bf16.mxu0 0
    %1834 = vmatmul.mubr.bf16.gmra.mrb[0].mxu0 %v1779
    %v1835 = vpop.f32.mrb[0].mxu0
    %v1836 = vadd.f32 0.0, %v1835
    %v1837 = vpop.f32.mrb[0].mxu0
    %v1838 = vpop.f32.mrb[0].mxu0
    %v1839 = vadd.f32 0.0, %v1838
    %v1840 = vpop.f32.mrb[0].mxu0
    %1841 = vmatprep.mubr.bf16.mxu0 0
    %1842 = vmatmul.mubr.bf16.gmra.mrb[0].mxu0 %v1780
    %v1843 = vpop.f32.mrb[0].mxu0
    %v1844 = vadd.f32 0.0, %v1843
    %v1845 = vpop.f32.mrb[0].mxu0
    %v1846 = vpop.f32.mrb[0].mxu0
    %v1847 = vadd.f32 0.0, %v1846
    %v1848 = vpop.f32.mrb[0].mxu0
    %1849 = vdwg.mxu0
    %v1858 = vunpack.c.l.b16 %v1736
    %v1859 = vunpack.c.l.b16 %v1737
    %v1860 = vunpack.c.l.b16 %v1738
    %v1861 = vunpack.c.l.b16 %v1739
    %v1862 = vunpack.c.l.b16 %v1740
    %v1863 = vunpack.c.l.b16 %v1741
    %v1864 = vunpack.c.l.b16 %v1742
    %v1865 = vunpack.c.l.b16 %v1743
    %v1866 = vpack.c.b16 %v1859, %v1858
    %v1867 = vpack.c.b16 %v1861, %v1860
    %v1868 = vpack.c.b16 %v1863, %v1862
    %v1869 = vpack.c.b16 %v1865, %v1864
    %1874 = vmatprep.subr.bf16.mxu0 0
    %1875 = vmatpush1.bf16.msra.mxu0 %v1728
    %1876 = vmatprep.subr.bf16.mxu0 0
    %1877 = vmatpush1.bf16.msra.mxu0 %v1729
    %1878 = vmatprep.subr.bf16.mxu0 0
    %1879 = vmatpush1.bf16.msra.mxu0 %v1730
    %1880 = vmatprep.subr.bf16.mxu0 0
    %1881 = vmatpush1.bf16.msra.mxu0 %v1731
    %1882 = vmatprep.subr.bf16.mxu0 0
    %1883 = vmatpush1.bf16.msra.mxu0 %v1732
    %1884 = vmatprep.subr.bf16.mxu0 0
    %1885 = vmatpush1.bf16.msra.mxu0 %v1733
    %1886 = vmatprep.subr.bf16.mxu0 0
    %1887 = vmatpush1.bf16.msra.mxu0 %v1734
    %1888 = vmatprep.subr.bf16.mxu0 0
    %1889 = vmatpush1.bf16.msra.mxu0 %v1735
    %1890 = vmatprep.subr.bf16.mxu0 0
    %1891 = vmatpush1.bf16.msra.mxu0 0
    %1892 = vmatprep.subr.bf16.mxu0 0
    %1893 = vmatpush1.bf16.msra.mxu0 0
    %1894 = vmatprep.subr.bf16.mxu0 0
    %1895 = vmatpush1.bf16.msra.mxu0 0
    %1896 = vmatprep.subr.bf16.mxu0 0
    %1897 = vmatpush1.bf16.msra.mxu0 0
    %1898 = vmatprep.subr.bf16.mxu0 0
    %1899 = vmatpush1.bf16.msra.mxu0 0
    %1900 = vmatprep.subr.bf16.mxu0 0
    %1901 = vmatpush1.bf16.msra.mxu0 0
    %1902 = vmatprep.subr.bf16.mxu0 0
    %1903 = vmatpush1.bf16.msra.mxu0 0
    %1904 = vmatprep.subr.bf16.mxu0 0
    %1905 = vmatpush1.bf16.msra.mxu0 0
    %1906 = vmatprep.mubr.bf16.mxu0 0
    %1907 = vmatmul.mubr.bf16.gmra.mrb[0].mxu0 %v1866
    %v1908 = vpop.f32.mrb[0].mxu0
    %v1909 = vadd.f32 %v1820, %v1908
    %v1910 = vpop.f32.mrb[0].mxu0
    %v1911 = vpop.f32.mrb[0].mxu0
    %v1912 = vadd.f32 %v1823, %v1911
    %v1913 = vpop.f32.mrb[0].mxu0
    %1914 = vmatprep.mubr.bf16.mxu0 0
    %1915 = vmatmul.mubr.bf16.gmra.mrb[0].mxu0 %v1867
    %v1916 = vpop.f32.mrb[0].mxu0
    %v1917 = vadd.f32 %v1828, %v1916
    %v1918 = vpop.f32.mrb[0].mxu0
    %v1919 = vpop.f32.mrb[0].mxu0
    %v1920 = vadd.f32 %v1831, %v1919
    %v1921 = vpop.f32.mrb[0].mxu0
    %1922 = vmatprep.mubr.bf16.mxu0 0
    %1923 = vmatmul.mubr.bf16.gmra.mrb[0].mxu0 %v1868
    %v1924 = vpop.f32.mrb[0].mxu0
    %v1925 = vadd.f32 %v1836, %v1924
    %v1926 = vpop.f32.mrb[0].mxu0
    %v1927 = vpop.f32.mrb[0].mxu0
    %v1928 = vadd.f32 %v1839, %v1927
    %v1929 = vpop.f32.mrb[0].mxu0
    %1930 = vmatprep.mubr.bf16.mxu0 0
    %1931 = vmatmul.mubr.bf16.gmra.mrb[0].mxu0 %v1869
    %v1932 = vpop.f32.mrb[0].mxu0
    %v1933 = vadd.f32 %v1844, %v1932
    %v1934 = vpop.f32.mrb[0].mxu0
    %v1935 = vpop.f32.mrb[0].mxu0
    %v1936 = vadd.f32 %v1847, %v1935
    %v1937 = vpop.f32.mrb[0].mxu0
    %1938 = vdwg.mxu0
    %v1939 = vpack.c.bf16 %v1669, %v1666
    %v1940 = vpack.c.bf16 %v1677, %v1674
    %v1941 = vpack.c.bf16 %v1685, %v1682
    %v1942 = vpack.c.bf16 %v1693, %v1690
    %v1943 = vpack.c.bf16 %v1701, %v1698
    %v1944 = vpack.c.bf16 %v1709, %v1706
    %v1945 = vpack.c.bf16 %v1717, %v1714
    %v1946 = vpack.c.bf16 %v1725, %v1722
    %s1947 = scalar_lea.vmem [#allocation5], 64
    %v1948 = vld [vmem:[%s1947] sm:$0xf]
    %v1949 = vld [vmem:[%s1947 + $0x4] sm:$0xf]
    %v1950 = vld [vmem:[%s1947 + $0x8] sm:$0xf]
    %v1951 = vld [vmem:[%s1947 + $0xc] sm:$0xf]
    %v1952 = vld [vmem:[%s1947 + $0x10] sm:$0xf]
    %v1953 = vld [vmem:[%s1947 + $0x14] sm:$0xf]
    %v1954 = vld [vmem:[%s1947 + $0x18] sm:$0xf]
    %v1955 = vld [vmem:[%s1947 + $0x1c] sm:$0xf]
    %v1964 = vunpack.c.l.b16 %v1948
    %v1965 = vunpack.c.l.b16 %v1949
    %v1966 = vunpack.c.l.b16 %v1950
    %v1967 = vunpack.c.l.b16 %v1951
    %v1968 = vunpack.c.l.b16 %v1952
    %v1969 = vunpack.c.l.b16 %v1953
    %v1970 = vunpack.c.l.b16 %v1954
    %v1971 = vunpack.c.l.b16 %v1955
    %v1972 = vpack.c.b16 %v1965, %v1964
    %v1973 = vpack.c.b16 %v1967, %v1966
    %v1974 = vpack.c.b16 %v1969, %v1968
    %v1975 = vpack.c.b16 %v1971, %v1970
    %1980 = vmatprep.subr.bf16.mxu0 0
    %1981 = vmatpush1.bf16.msra.mxu0 %v1939
    %1982 = vmatprep.subr.bf16.mxu0 0
    %1983 = vmatpush1.bf16.msra.mxu0 %v1940
    %1984 = vmatprep.subr.bf16.mxu0 0
    %1985 = vmatpush1.bf16.msra.mxu0 %v1941
    %1986 = vmatprep.subr.bf16.mxu0 0
    %1987 = vmatpush1.bf16.msra.mxu0 %v1942
    %1988 = vmatprep.subr.bf16.mxu0 0
    %1989 = vmatpush1.bf16.msra.mxu0 %v1943
    %1990 = vmatprep.subr.bf16.mxu0 0
    %1991 = vmatpush1.bf16.msra.mxu0 %v1944
    %1992 = vmatprep.subr.bf16.mxu0 0
    %1993 = vmatpush1.bf16.msra.mxu0 %v1945
    %1994 = vmatprep.subr.bf16.mxu0 0
    %1995 = vmatpush1.bf16.msra.mxu0 %v1946
    %1996 = vmatprep.subr.bf16.mxu0 0
    %1997 = vmatpush1.bf16.msra.mxu0 0
    %1998 = vmatprep.subr.bf16.mxu0 0
    %1999 = vmatpush1.bf16.msra.mxu0 0
    %2000 = vmatprep.subr.bf16.mxu0 0
    %2001 = vmatpush1.bf16.msra.mxu0 0
    %2002 = vmatprep.subr.bf16.mxu0 0
    %2003 = vmatpush1.bf16.msra.mxu0 0
    %2004 = vmatprep.subr.bf16.mxu0 0
    %2005 = vmatpush1.bf16.msra.mxu0 0
    %2006 = vmatprep.subr.bf16.mxu0 0
    %2007 = vmatpush1.bf16.msra.mxu0 0
    %2008 = vmatprep.subr.bf16.mxu0 0
    %2009 = vmatpush1.bf16.msra.mxu0 0
    %2010 = vmatprep.subr.bf16.mxu0 0
    %2011 = vmatpush1.bf16.msra.mxu0 0
    %2012 = vmatprep.mubr.bf16.mxu0 0
    %2013 = vmatmul.mubr.bf16.gmra.mrb[0].mxu0 %v1972
    %v2014 = vpop.f32.mrb[0].mxu0
    %v2015 = vadd.f32 0.0, %v2014
    %v2016 = vpop.f32.mrb[0].mxu0
    %v2017 = vpop.f32.mrb[0].mxu0
    %v2018 = vadd.f32 0.0, %v2017
    %v2019 = vpop.f32.mrb[0].mxu0
    %2020 = vmatprep.mubr.bf16.mxu0 0
    %2021 = vmatmul.mubr.bf16.gmra.mrb[0].mxu0 %v1973
    %v2022 = vpop.f32.mrb[0].mxu0
    %v2023 = vadd.f32 0.0, %v2022
    %v2024 = vpop.f32.mrb[0].mxu0
    %v2025 = vpop.f32.mrb[0].mxu0
    %v2026 = vadd.f32 0.0, %v2025
    %v2027 = vpop.f32.mrb[0].mxu0
    %2028 = vmatprep.mubr.bf16.mxu0 0
    %2029 = vmatmul.mubr.bf16.gmra.mrb[0].mxu0 %v1974
    %v2030 = vpop.f32.mrb[0].mxu0
    %v2031 = vadd.f32 0.0, %v2030
    %v2032 = vpop.f32.mrb[0].mxu0
    %v2033 = vpop.f32.mrb[0].mxu0
    %v2034 = vadd.f32 0.0, %v2033
    %v2035 = vpop.f32.mrb[0].mxu0
    %2036 = vmatprep.mubr.bf16.mxu0 0
    %2037 = vmatmul.mubr.bf16.gmra.mrb[0].mxu0 %v1975
    %v2038 = vpop.f32.mrb[0].mxu0
    %v2039 = vadd.f32 0.0, %v2038
    %v2040 = vpop.f32.mrb[0].mxu0
    %v2041 = vpop.f32.mrb[0].mxu0
    %v2042 = vadd.f32 0.0, %v2041
    %v2043 = vpop.f32.mrb[0].mxu0
    %2044 = vdwg.mxu0
    %v2045 = vadd.f32 %v1909, %v2015
    %v2046 = vadd.f32 %v1912, %v2018
    %v2047 = vadd.f32 %v1917, %v2023
    %v2048 = vadd.f32 %v1920, %v2026
    %v2049 = vadd.f32 %v1925, %v2031
    %v2050 = vadd.f32 %v1928, %v2034
    %v2051 = vadd.f32 %v1933, %v2039
    %v2052 = vadd.f32 %v1936, %v2042
    %v2053 = vld [vmem:[%s6] sm:$0x1]
    %v2055 = vlaneseq
    %v2056 = vshrl.u32 %v2055, 7
    %v2057 = vsub.s32 0, %v2056
    %v2058 = vrot.slane %v2053, %v2057
    %v2060 = vadd.f32 %v2045, %v2058
    %v2061 = vadd.f32 %v2046, %v2058
    %v2062 = vadd.f32 %v2047, %v2058
    %v2063 = vadd.f32 %v2048, %v2058
    %v2064 = vadd.f32 %v2049, %v2058
    %v2065 = vadd.f32 %v2050, %v2058
    %v2066 = vadd.f32 %v2051, %v2058
    %v2067 = vadd.f32 %v2052, %v2058
    %v2068 = vadd.f32 %v2060, %v2061
    %v2069 = vadd.f32 %v2068, %v2062
    %v2070 = vadd.f32 %v2069, %v2063
    %v2071 = vadd.f32 %v2070, %v2064
    %v2072 = vadd.f32 %v2071, %v2065
    %v2073 = vadd.f32 %v2072, %v2066
    %v2074 = vadd.f32 %v2073, %v2067
    %v2075 = vrot.slane %v2074, 4
    %v2076 = vadd.f32 %v2074, %v2075
    %v2077 = vrot.slane %v2076, 2
    %v2078 = vadd.f32 %v2076, %v2077
    %v2079 = vrot.slane %v2078, 1
    %v2080 = vadd.f32 %v2078, %v2079
    %v2081 = vrcp.pop 64.0
    %v2082 = vmul.f32 %v2080, %v2081
    %v2083 = vmul.f32 %v2060, %v2060
    %v2084 = vmul.f32 %v2061, %v2061
    %v2085 = vmul.f32 %v2062, %v2062
    %v2086 = vmul.f32 %v2063, %v2063
    %v2087 = vmul.f32 %v2064, %v2064
    %v2088 = vmul.f32 %v2065, %v2065
    %v2089 = vmul.f32 %v2066, %v2066
    %v2090 = vmul.f32 %v2067, %v2067
    %v2091 = vadd.f32 %v2083, %v2084
    %v2092 = vadd.f32 %v2091, %v2085
    %v2093 = vadd.f32 %v2092, %v2086
    %v2094 = vadd.f32 %v2093, %v2087
    %v2095 = vadd.f32 %v2094, %v2088
    %v2096 = vadd.f32 %v2095, %v2089
    %v2097 = vadd.f32 %v2096, %v2090
    %v2098 = vrot.slane %v2097, 4
    %v2099 = vadd.f32 %v2097, %v2098
    %v2100 = vrot.slane %v2099, 2
    %v2101 = vadd.f32 %v2099, %v2100
    %v2102 = vrot.slane %v2101, 1
    %v2103 = vadd.f32 %v2101, %v2102
    %v2104 = vmul.f32 %v2103, %v2081
    %v2105 = vmul.f32 %v2082, %v2082
    %v2106 = vsub.f32 %v2104, %v2105
    %v2107 = vld [vmem:[%s7] sm:$0x1]
    %v2108 = vadd.f32 %v2106, 1e-05
    %v2109 = vrsqrt.pop %v2108
    %v2110 = vmul.f32 %v2107, %v2109
    %v2111 = vld [vmem:[%s8] sm:$0x1]
    %v2112 = vmul.f32 %v2082, %v2110
    %v2113 = vsub.f32 %v2111, %v2112
    %v2115 = vlaneseq
    %v2116 = vshrl.u32 %v2115, 7
    %v2117 = vsub.s32 0, %v2116
    %v2118 = vrot.slane %v2110, %v2117
    %v2120 = vmul.f32 %v2060, %v2118
    %v2121 = vmul.f32 %v2061, %v2118
    %v2122 = vmul.f32 %v2062, %v2118
    %v2123 = vmul.f32 %v2063, %v2118
    %v2124 = vmul.f32 %v2064, %v2118
    %v2125 = vmul.f32 %v2065, %v2118
    %v2126 = vmul.f32 %v2066, %v2118
    %v2127 = vmul.f32 %v2067, %v2118
    %v2129 = vlaneseq
    %v2130 = vshrl.u32 %v2129, 7
    %v2131 = vsub.s32 0, %v2130
    %v2132 = vrot.slane %v2113, %v2131
    %v2134 = vadd.f32 %v2120, %v2132
    %v2135 = vadd.f32 %v2121, %v2132
    %v2136 = vadd.f32 %v2122, %v2132
    %v2137 = vadd.f32 %v2123, %v2132
    %v2138 = vadd.f32 %v2124, %v2132
    %v2139 = vadd.f32 %v2125, %v2132
    %v2140 = vadd.f32 %v2126, %v2132
    %v2141 = vadd.f32 %v2127, %v2132
    %v2142 = vmax.f32 %v2134, 0.0
    %v2143 = vmax.f32 %v2135, 0.0
    %v2144 = vmax.f32 %v2136, 0.0
    %v2145 = vmax.f32 %v2137, 0.0
    %v2146 = vmax.f32 %v2138, 0.0
    %v2147 = vmax.f32 %v2139, 0.0
    %v2148 = vmax.f32 %v2140, 0.0
    %v2149 = vmax.f32 %v2141, 0.0
    %v2150 = vpack.c.bf16 %v2143, %v2142
    %v2151 = vpack.c.bf16 %v2145, %v2144
    %v2152 = vpack.c.bf16 %v2147, %v2146
    %v2153 = vpack.c.bf16 %v2149, %v2148
    %v2154 = vld [vmem:[#allocation8] sm:$0xff]
    %v2155 = vld [vmem:[#allocation8 + $0x8] sm:$0xf]
    %v2156 = vld [vmem:[#allocation8 + $0xc] sm:$0xff]
    %v2157 = vld [vmem:[#allocation8 + $0x14] sm:$0xf]
    %v2158 = vld [vmem:[#allocation8 + $0x18] sm:$0xff]
    %v2159 = vld [vmem:[#allocation8 + $0x20] sm:$0xf]
    %v2160 = vld [vmem:[#allocation8 + $0x24] sm:$0xff]
    %v2161 = vld [vmem:[#allocation8 + $0x2c] sm:$0xf]
    %v2162 = vld [vmem:[#allocation8 + $0x30] sm:$0xff]
    %v2163 = vld [vmem:[#allocation8 + $0x38] sm:$0xf]
    %v2164 = vld [vmem:[#allocation8 + $0x3c] sm:$0xff]
    %v2165 = vld [vmem:[#allocation8 + $0x44] sm:$0xf]
    %v2166 = vld [vmem:[#allocation8 + $0x48] sm:$0xff]
    %v2167 = vld [vmem:[#allocation8 + $0x50] sm:$0xf]
    %v2168 = vld [vmem:[#allocation8 + $0x54] sm:$0xff]
    %v2169 = vld [vmem:[#allocation8 + $0x5c] sm:$0xf]
    %v2170 = vld [vmem:[#allocation8 + $0x60] sm:$0xff]
    %v2171 = vld [vmem:[#allocation8 + $0x68] sm:$0xf]
    %v2172 = vld [vmem:[#allocation8 + $0x6c] sm:$0xff]
    %v2173 = vld [vmem:[#allocation8 + $0x74] sm:$0xf]
    %v2174 = vld [vmem:[#allocation8 + $0x78] sm:$0xff]
    %v2175 = vld [vmem:[#allocation8 + $0x80] sm:$0xf]
    %v2176 = vld [vmem:[#allocation8 + $0x84] sm:$0xff]
    %v2177 = vld [vmem:[#allocation8 + $0x8c] sm:$0xf]
    %v2178 = vld [vmem:[#allocation8 + $0x90] sm:$0xff]
    %v2179 = vld [vmem:[#allocation8 + $0x98] sm:$0xf]
    %v2180 = vld [vmem:[#allocation8 + $0x9c] sm:$0xff]
    %v2181 = vld [vmem:[#allocation8 + $0xa4] sm:$0xf]
    %v2182 = vld [vmem:[#allocation8 + $0xa8] sm:$0xff]
    %v2183 = vld [vmem:[#allocation8 + $0xb0] sm:$0xf]
    %v2184 = vld [vmem:[#allocation8 + $0xb4] sm:$0xff]
    %v2185 = vld [vmem:[#allocation8 + $0xbc] sm:$0xf]
    %v2218 = vunpack.c.l.b16 %v2154
    %v2219 = vunpack.c.h.b16 %v2154
    %v2220 = vunpack.c.l.b16 %v2155
    %v2221 = vunpack.c.l.b16 %v2156
    %v2222 = vunpack.c.h.b16 %v2156
    %v2223 = vunpack.c.l.b16 %v2157
    %v2224 = vunpack.c.l.b16 %v2158
    %v2225 = vunpack.c.h.b16 %v2158
    %v2226 = vunpack.c.l.b16 %v2159
    %v2227 = vunpack.c.l.b16 %v2160
    %v2228 = vunpack.c.h.b16 %v2160
    %v2229 = vunpack.c.l.b16 %v2161
    %v2230 = vunpack.c.l.b16 %v2162
    %v2231 = vunpack.c.h.b16 %v2162
    %v2232 = vunpack.c.l.b16 %v2163
    %v2233 = vunpack.c.l.b16 %v2164
    %v2234 = vunpack.c.h.b16 %v2164
    %v2235 = vunpack.c.l.b16 %v2165
    %v2236 = vunpack.c.l.b16 %v2166
    %v2237 = vunpack.c.h.b16 %v2166
    %v2238 = vunpack.c.l.b16 %v2167
    %v2239 = vunpack.c.l.b16 %v2168
    %v2240 = vunpack.c.h.b16 %v2168
    %v2241 = vunpack.c.l.b16 %v2169
    %v2242 = vunpack.c.l.b16 %v2170
    %v2243 = vunpack.c.h.b16 %v2170
    %v2244 = vunpack.c.l.b16 %v2171
    %v2245 = vunpack.c.l.b16 %v2172
    %v2246 = vunpack.c.h.b16 %v2172
    %v2247 = vunpack.c.l.b16 %v2173
    %v2248 = vunpack.c.l.b16 %v2174
    %v2249 = vunpack.c.h.b16 %v2174
    %v2250 = vunpack.c.l.b16 %v2175
    %v2251 = vunpack.c.l.b16 %v2176
    %v2252 = vunpack.c.h.b16 %v2176
    %v2253 = vunpack.c.l.b16 %v2177
    %v2254 = vunpack.c.l.b16 %v2178
    %v2255 = vunpack.c.h.b16 %v2178
    %v2256 = vunpack.c.l.b16 %v2179
    %v2257 = vunpack.c.l.b16 %v2180
    %v2258 = vunpack.c.h.b16 %v2180
    %v2259 = vunpack.c.l.b16 %v2181
    %v2260 = vunpack.c.l.b16 %v2182
    %v2261 = vunpack.c.h.b16 %v2182
    %v2262 = vunpack.c.l.b16 %v2183
    %v2263 = vunpack.c.l.b16 %v2184
    %v2264 = vunpack.c.h.b16 %v2184
    %v2265 = vunpack.c.l.b16 %v2185
    %v2266 = vpack.c.b16 %v2221, %v2218
    %v2267 = vpack.c.b16 %v2222, %v2219
    %v2268 = vpack.c.b16 %v2223, %v2220
    %v2269 = vpack.c.b16 %v2227, %v2224
    %v2270 = vpack.c.b16 %v2228, %v2225
    %v2271 = vpack.c.b16 %v2229, %v2226
    %v2272 = vpack.c.b16 %v2233, %v2230
    %v2273 = vpack.c.b16 %v2234, %v2231
    %v2274 = vpack.c.b16 %v2235, %v2232
    %v2275 = vpack.c.b16 %v2239, %v2236
    %v2276 = vpack.c.b16 %v2240, %v2237
    %v2277 = vpack.c.b16 %v2241, %v2238
    %v2278 = vpack.c.b16 %v2245, %v2242
    %v2279 = vpack.c.b16 %v2246, %v2243
    %v2280 = vpack.c.b16 %v2247, %v2244
    %v2281 = vpack.c.b16 %v2251, %v2248
    %v2282 = vpack.c.b16 %v2252, %v2249
    %v2283 = vpack.c.b16 %v2253, %v2250
    %v2284 = vpack.c.b16 %v2257, %v2254
    %v2285 = vpack.c.b16 %v2258, %v2255
    %v2286 = vpack.c.b16 %v2259, %v2256
    %v2287 = vpack.c.b16 %v2263, %v2260
    %v2288 = vpack.c.b16 %v2264, %v2261
    %v2289 = vpack.c.b16 %v2265, %v2262
    %2314 = vmatprep.subr.bf16.mxu0 %v2267
    %2315 = vmatpush1.bf16.msra.mxu0 %v2266
    %2316 = vmatprep.subr.bf16.mxu0 %v2270
    %2317 = vmatpush1.bf16.msra.mxu0 %v2269
    %2318 = vmatprep.subr.bf16.mxu0 %v2273
    %2319 = vmatpush1.bf16.msra.mxu0 %v2272
    %2320 = vmatprep.subr.bf16.mxu0 %v2276
    %2321 = vmatpush1.bf16.msra.mxu0 %v2275
    %2322 = vmatprep.subr.bf16.mxu0 %v2279
    %2323 = vmatpush1.bf16.msra.mxu0 %v2278
    %2324 = vmatprep.subr.bf16.mxu0 %v2282
    %2325 = vmatpush1.bf16.msra.mxu0 %v2281
    %2326 = vmatprep.subr.bf16.mxu0 %v2285
    %2327 = vmatpush1.bf16.msra.mxu0 %v2284
    %2328 = vmatprep.subr.bf16.mxu0 %v2288
    %2329 = vmatpush1.bf16.msra.mxu0 %v2287
    %2330 = vmatprep.subr.bf16.mxu0 0
    %2331 = vmatpush1.bf16.msra.mxu0 0
    %2332 = vmatprep.subr.bf16.mxu0 0
    %2333 = vmatpush1.bf16.msra.mxu0 0
    %2334 = vmatprep.subr.bf16.mxu0 0
    %2335 = vmatpush1.bf16.msra.mxu0 0
    %2336 = vmatprep.subr.bf16.mxu0 0
    %2337 = vmatpush1.bf16.msra.mxu0 0
    %2338 = vmatprep.subr.bf16.mxu0 0
    %2339 = vmatpush1.bf16.msra.mxu0 0
    %2340 = vmatprep.subr.bf16.mxu0 0
    %2341 = vmatpush1.bf16.msra.mxu0 0
    %2342 = vmatprep.subr.bf16.mxu0 0
    %2343 = vmatpush1.bf16.msra.mxu0 0
    %2344 = vmatprep.subr.bf16.mxu0 0
    %2345 = vmatpush1.bf16.msra.mxu0 0
    %2346 = vmatprep.mubr.bf16.mxu0 0
    %2347 = vmatmul.mubr.bf16.gmra.mrb[0].mxu0 %v2150
    %v2348 = vpop.f32.mrb[0].mxu0
    %v2349 = vadd.f32 0.0, %v2348
    %v2350 = vpop.f32.mrb[0].mxu0
    %v2351 = vadd.f32 0.0, %v2350
    %v2352 = vpop.f32.mrb[0].mxu0
    %v2353 = vadd.f32 0.0, %v2352
    %v2354 = vpop.f32.mrb[0].mxu0
    %v2355 = vadd.f32 0.0, %v2354
    %2356 = vmatprep.mubr.bf16.mxu0 0
    %2357 = vmatmul.mubr.bf16.gmra.mrb[0].mxu0 %v2151
    %v2358 = vpop.f32.mrb[0].mxu0
    %v2359 = vadd.f32 0.0, %v2358
    %v2360 = vpop.f32.mrb[0].mxu0
    %v2361 = vadd.f32 0.0, %v2360
    %v2362 = vpop.f32.mrb[0].mxu0
    %v2363 = vadd.f32 0.0, %v2362
    %v2364 = vpop.f32.mrb[0].mxu0
    %v2365 = vadd.f32 0.0, %v2364
    %2366 = vmatprep.mubr.bf16.mxu0 0
    %2367 = vmatmul.mubr.bf16.gmra.mrb[0].mxu0 %v2152
    %v2368 = vpop.f32.mrb[0].mxu0
    %v2369 = vadd.f32 0.0, %v2368
    %v2370 = vpop.f32.mrb[0].mxu0
    %v2371 = vadd.f32 0.0, %v2370
    %v2372 = vpop.f32.mrb[0].mxu0
    %v2373 = vadd.f32 0.0, %v2372
    %v2374 = vpop.f32.mrb[0].mxu0
    %v2375 = vadd.f32 0.0, %v2374
    %2376 = vmatprep.mubr.bf16.mxu0 0
    %2377 = vmatmul.mubr.bf16.gmra.mrb[0].mxu0 %v2153
    %v2378 = vpop.f32.mrb[0].mxu0
    %v2379 = vadd.f32 0.0, %v2378
    %v2380 = vpop.f32.mrb[0].mxu0
    %v2381 = vadd.f32 0.0, %v2380
    %v2382 = vpop.f32.mrb[0].mxu0
    %v2383 = vadd.f32 0.0, %v2382
    %v2384 = vpop.f32.mrb[0].mxu0
    %v2385 = vadd.f32 0.0, %v2384
    %2386 = vdwg.mxu0
    %2387 = vmatprep.subr.bf16.mxu0 0
    %2388 = vmatpush1.bf16.msra.mxu0 %v2268
    %2389 = vmatprep.subr.bf16.mxu0 0
    %2390 = vmatpush1.bf16.msra.mxu0 %v2271
    %2391 = vmatprep.subr.bf16.mxu0 0
    %2392 = vmatpush1.bf16.msra.mxu0 %v2274
    %2393 = vmatprep.subr.bf16.mxu0 0
    %2394 = vmatpush1.bf16.msra.mxu0 %v2277
    %2395 = vmatprep.subr.bf16.mxu0 0
    %2396 = vmatpush1.bf16.msra.mxu0 %v2280
    %2397 = vmatprep.subr.bf16.mxu0 0
    %2398 = vmatpush1.bf16.msra.mxu0 %v2283
    %2399 = vmatprep.subr.bf16.mxu0 0
    %2400 = vmatpush1.bf16.msra.mxu0 %v2286
    %2401 = vmatprep.subr.bf16.mxu0 0
    %2402 = vmatpush1.bf16.msra.mxu0 %v2289
    %2403 = vmatprep.subr.bf16.mxu0 0
    %2404 = vmatpush1.bf16.msra.mxu0 0
    %2405 = vmatprep.subr.bf16.mxu0 0
    %2406 = vmatpush1.bf16.msra.mxu0 0
    %2407 = vmatprep.subr.bf16.mxu0 0
    %2408 = vmatpush1.bf16.msra.mxu0 0
    %2409 = vmatprep.subr.bf16.mxu0 0
    %2410 = vmatpush1.bf16.msra.mxu0 0
    %2411 = vmatprep.subr.bf16.mxu0 0
    %2412 = vmatpush1.bf16.msra.mxu0 0
    %2413 = vmatprep.subr.bf16.mxu0 0
    %2414 = vmatpush1.bf16.msra.mxu0 0
    %2415 = vmatprep.subr.bf16.mxu0 0
    %2416 = vmatpush1.bf16.msra.mxu0 0
    %2417 = vmatprep.subr.bf16.mxu0 0
    %2418 = vmatpush1.bf16.msra.mxu0 0
    %2419 = vmatprep.mubr.bf16.mxu0 0
    %2420 = vmatmul.mubr.bf16.gmra.mrb[0].mxu0 %v2150
    %v2421 = vpop.f32.mrb[0].mxu0
    %v2422 = vadd.f32 0.0, %v2421
    %v2423 = vpop.f32.mrb[0].mxu0
    %v2424 = vpop.f32.mrb[0].mxu0
    %v2425 = vadd.f32 0.0, %v2424
    %v2426 = vpop.f32.mrb[0].mxu0
    %2427 = vmatprep.mubr.bf16.mxu0 0
    %2428 = vmatmul.mubr.bf16.gmra.mrb[0].mxu0 %v2151
    %v2429 = vpop.f32.mrb[0].mxu0
    %v2430 = vadd.f32 0.0, %v2429
    %v2431 = vpop.f32.mrb[0].mxu0
    %v2432 = vpop.f32.mrb[0].mxu0
    %v2433 = vadd.f32 0.0, %v2432
    %v2434 = vpop.f32.mrb[0].mxu0
    %2435 = vmatprep.mubr.bf16.mxu0 0
    %2436 = vmatmul.mubr.bf16.gmra.mrb[0].mxu0 %v2152
    %v2437 = vpop.f32.mrb[0].mxu0
    %v2438 = vadd.f32 0.0, %v2437
    %v2439 = vpop.f32.mrb[0].mxu0
    %v2440 = vpop.f32.mrb[0].mxu0
    %v2441 = vadd.f32 0.0, %v2440
    %v2442 = vpop.f32.mrb[0].mxu0
    %2443 = vmatprep.mubr.bf16.mxu0 0
    %2444 = vmatmul.mubr.bf16.gmra.mrb[0].mxu0 %v2153
    %v2445 = vpop.f32.mrb[0].mxu0
    %v2446 = vadd.f32 0.0, %v2445
    %v2447 = vpop.f32.mrb[0].mxu0
    %v2448 = vpop.f32.mrb[0].mxu0
    %v2449 = vadd.f32 0.0, %v2448
    %v2450 = vpop.f32.mrb[0].mxu0
    %2451 = vdwg.mxu0
    %v2452 = vpack.c.bf16 %v2353, %v2349
    %v2453 = vpack.c.bf16 %v2363, %v2359
    %v2454 = vpack.c.bf16 %v2373, %v2369
    %v2455 = vpack.c.bf16 %v2383, %v2379
    %v2456 = vld [vmem:[#allocation7] sm:$0xf]
    %v2457 = vld [vmem:[#allocation7 + $0x4] sm:$0xf]
    %v2458 = vld [vmem:[#allocation7 + $0x8] sm:$0xf]
    %v2459 = vld [vmem:[#allocation7 + $0xc] sm:$0x7]
    %v2460 = vpack.c.bf16 %v2355, %v2351
    %v2461 = vpack.c.bf16 %v2365, %v2361
    %v2462 = vpack.c.bf16 %v2375, %v2371
    %v2463 = vpack.c.bf16 %v2385, %v2381
    %s2464 = scalar_lea.vmem [#allocation7], 16
    %v2465 = vld [vmem:[%s2464] sm:$0xf]
    %v2466 = vld [vmem:[%s2464 + $0x4] sm:$0xf]
    %v2467 = vld [vmem:[%s2464 + $0x8] sm:$0xf]
    %v2468 = vld [vmem:[%s2464 + $0xc] sm:$0x7]
    %v2473 = vunpack.c.l.b16 %v2465
    %v2474 = vunpack.c.l.b16 %v2466
    %v2475 = vunpack.c.l.b16 %v2467
    %v2476 = vunpack.c.l.b16 %v2468
    %v2477 = vpack.c.b16 %v2474, %v2473
    %v2478 = vpack.c.b16 %v2476, %v2475
    %vm2479 = vcmask 523264
    %v2481 = vsel %vm2479, %v2477, 0
    %v2484 = vsel %vm2479, %v2478, 0
    %2486 = vmatprep.subr.bf16.mxu0 0
    %2487 = vmatpush1.bf16.msra.mxu0 %v2460
    %2488 = vmatprep.subr.bf16.mxu0 0
    %2489 = vmatpush1.bf16.msra.mxu0 %v2461
    %2490 = vmatprep.subr.bf16.mxu0 0
    %2491 = vmatpush1.bf16.msra.mxu0 %v2462
    %2492 = vmatprep.subr.bf16.mxu0 0
    %2493 = vmatpush1.bf16.msra.mxu0 %v2463
    %2494 = vmatprep.subr.bf16.mxu0 0
    %2495 = vmatpush1.bf16.msra.mxu0 0
    %2496 = vmatprep.subr.bf16.mxu0 0
    %2497 = vmatpush1.bf16.msra.mxu0 0
    %2498 = vmatprep.subr.bf16.mxu0 0
    %2499 = vmatpush1.bf16.msra.mxu0 0
    %2500 = vmatprep.subr.bf16.mxu0 0
    %2501 = vmatpush1.bf16.msra.mxu0 0
    %2502 = vmatprep.subr.bf16.mxu0 0
    %2503 = vmatpush1.bf16.msra.mxu0 0
    %2504 = vmatprep.subr.bf16.mxu0 0
    %2505 = vmatpush1.bf16.msra.mxu0 0
    %2506 = vmatprep.subr.bf16.mxu0 0
    %2507 = vmatpush1.bf16.msra.mxu0 0
    %2508 = vmatprep.subr.bf16.mxu0 0
    %2509 = vmatpush1.bf16.msra.mxu0 0
    %2510 = vmatprep.subr.bf16.mxu0 0
    %2511 = vmatpush1.bf16.msra.mxu0 0
    %2512 = vmatprep.subr.bf16.mxu0 0
    %2513 = vmatpush1.bf16.msra.mxu0 0
    %2514 = vmatprep.subr.bf16.mxu0 0
    %2515 = vmatpush1.bf16.msra.mxu0 0
    %2516 = vmatprep.subr.bf16.mxu0 0
    %2517 = vmatpush1.bf16.msra.mxu0 0
    %2518 = vmatprep.mubr.bf16.mxu0 0
    %2519 = vmatmul.mubr.bf16.gmra.mrb[0].mxu0 %v2481
    %v2520 = vpop.f32.mrb[0].mxu0
    %v2521 = vadd.f32 0.0, %v2520
    %v2522 = vpop.f32.mrb[0].mxu0
    %v2523 = vpop.f32.mrb[0].mxu0
    %v2524 = vadd.f32 0.0, %v2523
    %v2525 = vpop.f32.mrb[0].mxu0
    %2526 = vmatprep.mubr.bf16.mxu0 0
    %2527 = vmatmul.mubr.bf16.gmra.mrb[0].mxu0 %v2484
    %v2528 = vpop.f32.mrb[0].mxu0
    %v2529 = vadd.f32 0.0, %v2528
    %v2530 = vpop.f32.mrb[0].mxu0
    %v2531 = vpop.f32.mrb[0].mxu0
    %v2532 = vadd.f32 0.0, %v2531
    %v2533 = vpop.f32.mrb[0].mxu0
    %2534 = vdwg.mxu0
    %v2539 = vunpack.c.l.b16 %v2456
    %v2540 = vunpack.c.l.b16 %v2457
    %v2541 = vunpack.c.l.b16 %v2458
    %v2542 = vunpack.c.l.b16 %v2459
    %v2543 = vpack.c.b16 %v2540, %v2539
    %v2544 = vpack.c.b16 %v2542, %v2541
    %v2546 = vsel %vm2479, %v2543, 0
    %v2549 = vsel %vm2479, %v2544, 0
    %2551 = vmatprep.subr.bf16.mxu0 0
    %2552 = vmatpush1.bf16.msra.mxu0 %v2452
    %2553 = vmatprep.subr.bf16.mxu0 0
    %2554 = vmatpush1.bf16.msra.mxu0 %v2453
    %2555 = vmatprep.subr.bf16.mxu0 0
    %2556 = vmatpush1.bf16.msra.mxu0 %v2454
    %2557 = vmatprep.subr.bf16.mxu0 0
    %2558 = vmatpush1.bf16.msra.mxu0 %v2455
    %2559 = vmatprep.subr.bf16.mxu0 0
    %2560 = vmatpush1.bf16.msra.mxu0 0
    %2561 = vmatprep.subr.bf16.mxu0 0
    %2562 = vmatpush1.bf16.msra.mxu0 0
    %2563 = vmatprep.subr.bf16.mxu0 0
    %2564 = vmatpush1.bf16.msra.mxu0 0
    %2565 = vmatprep.subr.bf16.mxu0 0
    %2566 = vmatpush1.bf16.msra.mxu0 0
    %2567 = vmatprep.subr.bf16.mxu0 0
    %2568 = vmatpush1.bf16.msra.mxu0 0
    %2569 = vmatprep.subr.bf16.mxu0 0
    %2570 = vmatpush1.bf16.msra.mxu0 0
    %2571 = vmatprep.subr.bf16.mxu0 0
    %2572 = vmatpush1.bf16.msra.mxu0 0
    %2573 = vmatprep.subr.bf16.mxu0 0
    %2574 = vmatpush1.bf16.msra.mxu0 0
    %2575 = vmatprep.subr.bf16.mxu0 0
    %2576 = vmatpush1.bf16.msra.mxu0 0
    %2577 = vmatprep.subr.bf16.mxu0 0
    %2578 = vmatpush1.bf16.msra.mxu0 0
    %2579 = vmatprep.subr.bf16.mxu0 0
    %2580 = vmatpush1.bf16.msra.mxu0 0
    %2581 = vmatprep.subr.bf16.mxu0 0
    %2582 = vmatpush1.bf16.msra.mxu0 0
    %2583 = vmatprep.mubr.bf16.mxu0 0
    %2584 = vmatmul.mubr.bf16.gmra.mrb[0].mxu0 %v2546
    %v2585 = vpop.f32.mrb[0].mxu0
    %v2586 = vadd.f32 %v2521, %v2585
    %v2587 = vpop.f32.mrb[0].mxu0
    %v2588 = vpop.f32.mrb[0].mxu0
    %v2589 = vadd.f32 %v2524, %v2588
    %v2590 = vpop.f32.mrb[0].mxu0
    %2591 = vmatprep.mubr.bf16.mxu0 0
    %2592 = vmatmul.mubr.bf16.gmra.mrb[0].mxu0 %v2549
    %v2593 = vpop.f32.mrb[0].mxu0
    %v2594 = vadd.f32 %v2529, %v2593
    %v2595 = vpop.f32.mrb[0].mxu0
    %v2596 = vpop.f32.mrb[0].mxu0
    %v2597 = vadd.f32 %v2532, %v2596
    %v2598 = vpop.f32.mrb[0].mxu0
    %2599 = vdwg.mxu0
    %v2600 = vpack.c.bf16 %v2425, %v2422
    %v2601 = vpack.c.bf16 %v2433, %v2430
    %v2602 = vpack.c.bf16 %v2441, %v2438
    %v2603 = vpack.c.bf16 %v2449, %v2446
    %s2604 = scalar_lea.vmem [#allocation7], 32
    %v2605 = vld [vmem:[%s2604] sm:$0xf]
    %v2606 = vld [vmem:[%s2604 + $0x4] sm:$0xf]
    %v2607 = vld [vmem:[%s2604 + $0x8] sm:$0xf]
    %v2608 = vld [vmem:[%s2604 + $0xc] sm:$0x7]
    %v2613 = vunpack.c.l.b16 %v2605
    %v2614 = vunpack.c.l.b16 %v2606
    %v2615 = vunpack.c.l.b16 %v2607
    %v2616 = vunpack.c.l.b16 %v2608
    %v2617 = vpack.c.b16 %v2614, %v2613
    %v2618 = vpack.c.b16 %v2616, %v2615
    %v2620 = vsel %vm2479, %v2617, 0
    %v2623 = vsel %vm2479, %v2618, 0
    %2625 = vmatprep.subr.bf16.mxu0 0
    %2626 = vmatpush1.bf16.msra.mxu0 %v2600
    %2627 = vmatprep.subr.bf16.mxu0 0
    %2628 = vmatpush1.bf16.msra.mxu0 %v2601
    %2629 = vmatprep.subr.bf16.mxu0 0
    %2630 = vmatpush1.bf16.msra.mxu0 %v2602
    %2631 = vmatprep.subr.bf16.mxu0 0
    %2632 = vmatpush1.bf16.msra.mxu0 %v2603
    %2633 = vmatprep.subr.bf16.mxu0 0
    %2634 = vmatpush1.bf16.msra.mxu0 0
    %2635 = vmatprep.subr.bf16.mxu0 0
    %2636 = vmatpush1.bf16.msra.mxu0 0
    %2637 = vmatprep.subr.bf16.mxu0 0
    %2638 = vmatpush1.bf16.msra.mxu0 0
    %2639 = vmatprep.subr.bf16.mxu0 0
    %2640 = vmatpush1.bf16.msra.mxu0 0
    %2641 = vmatprep.subr.bf16.mxu0 0
    %2642 = vmatpush1.bf16.msra.mxu0 0
    %2643 = vmatprep.subr.bf16.mxu0 0
    %2644 = vmatpush1.bf16.msra.mxu0 0
    %2645 = vmatprep.subr.bf16.mxu0 0
    %2646 = vmatpush1.bf16.msra.mxu0 0
    %2647 = vmatprep.subr.bf16.mxu0 0
    %2648 = vmatpush1.bf16.msra.mxu0 0
    %2649 = vmatprep.subr.bf16.mxu0 0
    %2650 = vmatpush1.bf16.msra.mxu0 0
    %2651 = vmatprep.subr.bf16.mxu0 0
    %2652 = vmatpush1.bf16.msra.mxu0 0
    %2653 = vmatprep.subr.bf16.mxu0 0
    %2654 = vmatpush1.bf16.msra.mxu0 0
    %2655 = vmatprep.subr.bf16.mxu0 0
    %2656 = vmatpush1.bf16.msra.mxu0 0
    %2657 = vmatprep.mubr.bf16.mxu0 0
    %2658 = vmatmul.mubr.bf16.gmra.mrb[0].mxu0 %v2620
    %v2659 = vpop.f32.mrb[0].mxu0
    %v2660 = vadd.f32 0.0, %v2659
    %v2661 = vpop.f32.mrb[0].mxu0
    %v2662 = vpop.f32.mrb[0].mxu0
    %v2663 = vadd.f32 0.0, %v2662
    %v2664 = vpop.f32.mrb[0].mxu0
    %2665 = vmatprep.mubr.bf16.mxu0 0
    %2666 = vmatmul.mubr.bf16.gmra.mrb[0].mxu0 %v2623
    %v2667 = vpop.f32.mrb[0].mxu0
    %v2668 = vadd.f32 0.0, %v2667
    %v2669 = vpop.f32.mrb[0].mxu0
    %v2670 = vpop.f32.mrb[0].mxu0
    %v2671 = vadd.f32 0.0, %v2670
    %v2672 = vpop.f32.mrb[0].mxu0
    %2673 = vdwg.mxu0
    %v2674 = vadd.f32 %v2586, %v2660
    %v2675 = vadd.f32 %v2589, %v2663
    %v2676 = vadd.f32 %v2594, %v2668
    %v2677 = vadd.f32 %v2597, %v2671
    %v2678 = vld [vmem:[%s11] sm:$0x1]
    %v2680 = vlaneseq
    %v2681 = vshrl.u32 %v2680, 7
    %v2682 = vsub.s32 0, %v2681
    %v2683 = vrot.slane %v2678, %v2682
    %v2685 = vadd.f32 %v2674, %v2683
    %v2686 = vadd.f32 %v2675, %v2683
    %v2687 = vadd.f32 %v2676, %v2683
    %v2688 = vadd.f32 %v2677, %v2683
    %v2689 = vmax.f32 %v2685, 0.0
    %v2690 = vmax.f32 %v2686, 0.0
    %v2691 = vmax.f32 %v2687, 0.0
    %v2692 = vmax.f32 %v2688, 0.0
    %v2694 = vrot.slane %v2689, 2
    %v2696 = vrot.slane %v2689, 4
    %v2698 = vrot.slane %v2689, 6
    %v2701 = vrot.slane %v2690, 2
    %v2703 = vrot.slane %v2690, 4
    %v2705 = vrot.slane %v2690, 6
    %v2708 = vrot.slane %v2691, 2
    %v2710 = vrot.slane %v2691, 4
    %v2712 = vrot.slane %v2691, 6
    %v2715 = vrot.slane %v2692, 2
    %v2717 = vrot.slane %v2692, 4
    %v2719 = vpack.c.bf16 %v2689, %v2689
    %v2720 = vpack.c.bf16 %v2694, %v2694
    %v2721 = vpack.c.bf16 %v2696, %v2696
    %v2722 = vpack.c.bf16 %v2698, %v2698
    %v2723 = vpack.c.bf16 %v2690, %v2690
    %v2724 = vpack.c.bf16 %v2701, %v2701
    %v2725 = vpack.c.bf16 %v2703, %v2703
    %v2726 = vpack.c.bf16 %v2705, %v2705
    %v2727 = vpack.c.bf16 %v2691, %v2691
    %v2728 = vpack.c.bf16 %v2708, %v2708
    %v2729 = vpack.c.bf16 %v2710, %v2710
    %v2730 = vpack.c.bf16 %v2712, %v2712
    %v2731 = vpack.c.bf16 %v2692, %v2692
    %v2732 = vpack.c.bf16 %v2715, %v2715
    %v2733 = vpack.c.bf16 %v2717, %v2717
    %v2734 = vld [vmem:[#allocation10] sm:$0xf]
    %v2735 = vld [vmem:[#allocation10 + $0x4] sm:$0xf]
    %v2736 = vld [vmem:[#allocation10 + $0x8] sm:$0xf]
    %v2737 = vld [vmem:[#allocation10 + $0xc] sm:$0xf]
    %v2738 = vld [vmem:[#allocation10 + $0x10] sm:$0xf]
    %v2739 = vld [vmem:[#allocation10 + $0x14] sm:$0xf]
    %v2740 = vld [vmem:[#allocation10 + $0x18] sm:$0xf]
    %v2741 = vld [vmem:[#allocation10 + $0x1c] sm:$0xf]
    %v2742 = vld [vmem:[#allocation10 + $0x20] sm:$0xf]
    %v2743 = vld [vmem:[#allocation10 + $0x24] sm:$0xf]
    %v2744 = vld [vmem:[#allocation10 + $0x28] sm:$0xf]
    %v2745 = vld [vmem:[#allocation10 + $0x2c] sm:$0xf]
    %v2746 = vld [vmem:[#allocation10 + $0x30] sm:$0xf]
    %v2747 = vld [vmem:[#allocation10 + $0x34] sm:$0xf]
    %v2748 = vld [vmem:[#allocation10 + $0x38] sm:$0xf]
    %v2749 = vld [vmem:[#allocation10 + $0x3c] sm:$0xf]
    %v2750 = vld [vmem:[#allocation10 + $0x40] sm:$0xf]
    %v2751 = vld [vmem:[#allocation10 + $0x44] sm:$0xf]
    %v2752 = vld [vmem:[#allocation10 + $0x48] sm:$0xf]
    %v2753 = vld [vmem:[#allocation10 + $0x4c] sm:$0xf]
    %v2754 = vld [vmem:[#allocation10 + $0x50] sm:$0xf]
    %v2755 = vld [vmem:[#allocation10 + $0x54] sm:$0xf]
    %v2756 = vld [vmem:[#allocation10 + $0x58] sm:$0xf]
    %v2757 = vld [vmem:[#allocation10 + $0x5c] sm:$0xf]
    %v2758 = vld [vmem:[#allocation10 + $0x60] sm:$0xf]
    %v2759 = vld [vmem:[#allocation10 + $0x64] sm:$0xf]
    %v2760 = vld [vmem:[#allocation10 + $0x68] sm:$0xf]
    %v2761 = vld [vmem:[#allocation10 + $0x6c] sm:$0xf]
    %v2762 = vld [vmem:[#allocation10 + $0x70] sm:$0xf]
    %v2763 = vld [vmem:[#allocation10 + $0x74] sm:$0xf]
    %v2764 = vld [vmem:[#allocation10 + $0x78] sm:$0xf]
    %v2765 = vld [vmem:[#allocation10 + $0x7c] sm:$0xf]
    %v2766 = vld [vmem:[#allocation10 + $0x80] sm:$0xf]
    %v2767 = vld [vmem:[#allocation10 + $0x84] sm:$0xf]
    %v2768 = vld [vmem:[#allocation10 + $0x88] sm:$0xf]
    %v2769 = vld [vmem:[#allocation10 + $0x8c] sm:$0xf]
    %v2770 = vld [vmem:[#allocation10 + $0x90] sm:$0xf]
    %v2771 = vld [vmem:[#allocation10 + $0x94] sm:$0xf]
    %v2772 = vld [vmem:[#allocation10 + $0x98] sm:$0xf]
    %v2773 = vld [vmem:[#allocation10 + $0x9c] sm:$0xf]
    %v2774 = vld [vmem:[#allocation10 + $0xa0] sm:$0xf]
    %v2775 = vld [vmem:[#allocation10 + $0xa4] sm:$0xf]
    %v2776 = vld [vmem:[#allocation10 + $0xa8] sm:$0xf]
    %v2777 = vld [vmem:[#allocation10 + $0xac] sm:$0xf]
    %v2778 = vld [vmem:[#allocation10 + $0xb0] sm:$0xf]
    %v2779 = vld [vmem:[#allocation10 + $0xb4] sm:$0xf]
    %v2780 = vld [vmem:[#allocation10 + $0xb8] sm:$0xf]
    %v2781 = vld [vmem:[#allocation10 + $0xbc] sm:$0xf]
    %v2782 = vld [vmem:[#allocation10 + $0xc0] sm:$0xf]
    %v2783 = vld [vmem:[#allocation10 + $0xc4] sm:$0xf]
    %v2784 = vld [vmem:[#allocation10 + $0xc8] sm:$0xf]
    %v2785 = vld [vmem:[#allocation10 + $0xcc] sm:$0xf]
    %v2786 = vld [vmem:[#allocation10 + $0xd0] sm:$0xf]
    %v2787 = vld [vmem:[#allocation10 + $0xd4] sm:$0xf]
    %v2788 = vld [vmem:[#allocation10 + $0xd8] sm:$0xf]
    %v2789 = vld [vmem:[#allocation10 + $0xdc] sm:$0xf]
    %v2790 = vld [vmem:[#allocation10 + $0xe0] sm:$0xf]
    %v2791 = vld [vmem:[#allocation10 + $0xe4] sm:$0xf]
    %v2792 = vld [vmem:[#allocation10 + $0xe8] sm:$0xf]
    %v2793 = vld [vmem:[#allocation10 + $0xec] sm:$0xf]
    %v2794 = vld [vmem:[#allocation10 + $0xf0] sm:$0xf]
    %v2795 = vld [vmem:[#allocation10 + $0xf4] sm:$0xf]
    %v2796 = vld [vmem:[#allocation10 + $0xf8] sm:$0xf]
    %v2797 = vld [vmem:[#allocation10 + $0xfc] sm:$0xf]
    %v2798 = vld [vmem:[#allocation10 + $0x100] sm:$0xf]
    %v2799 = vld [vmem:[#allocation10 + $0x104] sm:$0xf]
    %v2800 = vld [vmem:[#allocation10 + $0x108] sm:$0xf]
    %v2801 = vld [vmem:[#allocation10 + $0x10c] sm:$0xf]
    %v2802 = vld [vmem:[#allocation10 + $0x110] sm:$0xf]
    %v2803 = vld [vmem:[#allocation10 + $0x114] sm:$0xf]
    %v2804 = vld [vmem:[#allocation10 + $0x118] sm:$0xf]
    %v2805 = vld [vmem:[#allocation10 + $0x11c] sm:$0xf]
    %v2806 = vld [vmem:[#allocation10 + $0x120] sm:$0xf]
    %v2807 = vld [vmem:[#allocation10 + $0x124] sm:$0xf]
    %v2808 = vld [vmem:[#allocation10 + $0x128] sm:$0xf]
    %v2809 = vld [vmem:[#allocation10 + $0x12c] sm:$0xf]
    %v2810 = vld [vmem:[#allocation10 + $0x130] sm:$0xf]
    %v2811 = vld [vmem:[#allocation10 + $0x134] sm:$0xf]
    %v2812 = vld [vmem:[#allocation10 + $0x138] sm:$0xf]
    %v2813 = vld [vmem:[#allocation10 + $0x13c] sm:$0xf]
    %v2814 = vld [vmem:[#allocation10 + $0x140] sm:$0xf]
    %v2815 = vld [vmem:[#allocation10 + $0x144] sm:$0xf]
    %v2816 = vld [vmem:[#allocation10 + $0x148] sm:$0xf]
    %v2817 = vld [vmem:[#allocation10 + $0x14c] sm:$0xf]
    %v2818 = vld [vmem:[#allocation10 + $0x150] sm:$0xf]
    %v2819 = vld [vmem:[#allocation10 + $0x154] sm:$0xf]
    %v2820 = vld [vmem:[#allocation10 + $0x158] sm:$0xf]
    %v2821 = vld [vmem:[#allocation10 + $0x15c] sm:$0xf]
    %v2822 = vld [vmem:[#allocation10 + $0x160] sm:$0xf]
    %v2823 = vld [vmem:[#allocation10 + $0x164] sm:$0xf]
    %v2824 = vld [vmem:[#allocation10 + $0x168] sm:$0xf]
    %v2825 = vld [vmem:[#allocation10 + $0x16c] sm:$0xf]
    %v2826 = vld [vmem:[#allocation10 + $0x170] sm:$0xf]
    %v2827 = vld [vmem:[#allocation10 + $0x174] sm:$0xf]
    %v2828 = vld [vmem:[#allocation10 + $0x178] sm:$0xf]
    %v2829 = vld [vmem:[#allocation10 + $0x17c] sm:$0xf]
    %v2830 = vld [vmem:[#allocation10 + $0x180] sm:$0xf]
    %v2831 = vld [vmem:[#allocation10 + $0x184] sm:$0xf]
    %v2832 = vld [vmem:[#allocation10 + $0x188] sm:$0xf]
    %v2833 = vld [vmem:[#allocation10 + $0x18c] sm:$0xf]
    %v2834 = vld [vmem:[#allocation10 + $0x190] sm:$0xf]
    %v2835 = vld [vmem:[#allocation10 + $0x194] sm:$0xf]
    %v2836 = vld [vmem:[#allocation10 + $0x198] sm:$0xf]
    %v2837 = vld [vmem:[#allocation10 + $0x19c] sm:$0xf]
    %v2838 = vld [vmem:[#allocation10 + $0x1a0] sm:$0xf]
    %v2839 = vld [vmem:[#allocation10 + $0x1a4] sm:$0xf]
    %v2840 = vld [vmem:[#allocation10 + $0x1a8] sm:$0xf]
    %v2841 = vld [vmem:[#allocation10 + $0x1ac] sm:$0xf]
    %v2842 = vld [vmem:[#allocation10 + $0x1b0] sm:$0xf]
    %v2843 = vld [vmem:[#allocation10 + $0x1b4] sm:$0xf]
    %v2844 = vld [vmem:[#allocation10 + $0x1b8] sm:$0xf]
    %v2845 = vld [vmem:[#allocation10 + $0x1bc] sm:$0xf]
    %v2846 = vld [vmem:[#allocation10 + $0x1c0] sm:$0xf]
    %v2847 = vld [vmem:[#allocation10 + $0x1c4] sm:$0xf]
    %v2848 = vld [vmem:[#allocation10 + $0x1c8] sm:$0xf]
    %v2849 = vld [vmem:[#allocation10 + $0x1cc] sm:$0xf]
    %v2850 = vld [vmem:[#allocation10 + $0x1d0] sm:$0xf]
    %v2851 = vld [vmem:[#allocation10 + $0x1d4] sm:$0xf]
    %v2852 = vld [vmem:[#allocation10 + $0x1d8] sm:$0xf]
    %v2853 = vld [vmem:[#allocation10 + $0x1dc] sm:$0xf]
    %v2854 = vld [vmem:[#allocation10 + $0x1e0] sm:$0xf]
    %v2855 = vld [vmem:[#allocation10 + $0x1e4] sm:$0xf]
    %v2856 = vld [vmem:[#allocation10 + $0x1e8] sm:$0xf]
    %v2857 = vld [vmem:[#allocation10 + $0x1ec] sm:$0xf]
    %v2858 = vld [vmem:[#allocation10 + $0x1f0] sm:$0xf]
    %v2859 = vld [vmem:[#allocation10 + $0x1f4] sm:$0xf]
    %v2860 = vld [vmem:[#allocation10 + $0x1f8] sm:$0xf]
    %v2861 = vld [vmem:[#allocation10 + $0x1fc] sm:$0xf]
    %v2862 = vld [vmem:[#allocation10 + $0x200] sm:$0xf]
    %v2863 = vld [vmem:[#allocation10 + $0x204] sm:$0xf]
    %v2864 = vld [vmem:[#allocation10 + $0x208] sm:$0xf]
    %v2865 = vld [vmem:[#allocation10 + $0x20c] sm:$0xf]
    %v2866 = vld [vmem:[#allocation10 + $0x210] sm:$0xf]
    %v2867 = vld [vmem:[#allocation10 + $0x214] sm:$0xf]
    %v2868 = vld [vmem:[#allocation10 + $0x218] sm:$0xf]
    %v2869 = vld [vmem:[#allocation10 + $0x21c] sm:$0xf]
    %v2870 = vld [vmem:[#allocation10 + $0x220] sm:$0xf]
    %v2871 = vld [vmem:[#allocation10 + $0x224] sm:$0xf]
    %v2872 = vld [vmem:[#allocation10 + $0x228] sm:$0xf]
    %v2873 = vld [vmem:[#allocation10 + $0x22c] sm:$0xf]
    %v2874 = vld [vmem:[#allocation10 + $0x230] sm:$0xf]
    %v2875 = vld [vmem:[#allocation10 + $0x234] sm:$0xf]
    %v2876 = vld [vmem:[#allocation10 + $0x238] sm:$0xf]
    %v2877 = vld [vmem:[#allocation10 + $0x23c] sm:$0xf]
    %v2878 = vld [vmem:[#allocation10 + $0x240] sm:$0xf]
    %v2879 = vld [vmem:[#allocation10 + $0x244] sm:$0xf]
    %v2880 = vld [vmem:[#allocation10 + $0x248] sm:$0xf]
    %v2881 = vld [vmem:[#allocation10 + $0x24c] sm:$0xf]
    %v2882 = vld [vmem:[#allocation10 + $0x250] sm:$0xf]
    %v2883 = vld [vmem:[#allocation10 + $0x254] sm:$0xf]
    %v2884 = vld [vmem:[#allocation10 + $0x258] sm:$0xf]
    %v2885 = vld [vmem:[#allocation10 + $0x25c] sm:$0xf]
    %v2886 = vld [vmem:[#allocation10 + $0x260] sm:$0xf]
    %v2887 = vld [vmem:[#allocation10 + $0x264] sm:$0xf]
    %v2888 = vld [vmem:[#allocation10 + $0x268] sm:$0xf]
    %v2889 = vld [vmem:[#allocation10 + $0x26c] sm:$0xf]
    %v2890 = vld [vmem:[#allocation10 + $0x270] sm:$0xf]
    %v2891 = vld [vmem:[#allocation10 + $0x274] sm:$0xf]
    %v2892 = vld [vmem:[#allocation10 + $0x278] sm:$0xf]
    %v2893 = vld [vmem:[#allocation10 + $0x27c] sm:$0xf]
    %v2894 = vld [vmem:[#allocation10 + $0x280] sm:$0xf]
    %v2895 = vld [vmem:[#allocation10 + $0x284] sm:$0xf]
    %v2896 = vld [vmem:[#allocation10 + $0x288] sm:$0xf]
    %v2897 = vld [vmem:[#allocation10 + $0x28c] sm:$0xf]
    %v2898 = vld [vmem:[#allocation10 + $0x290] sm:$0xf]
    %v2899 = vld [vmem:[#allocation10 + $0x294] sm:$0xf]
    %v2900 = vld [vmem:[#allocation10 + $0x298] sm:$0xf]
    %v2901 = vld [vmem:[#allocation10 + $0x29c] sm:$0xf]
    %v2902 = vld [vmem:[#allocation10 + $0x2a0] sm:$0xf]
    %v2903 = vld [vmem:[#allocation10 + $0x2a4] sm:$0xf]
    %v2904 = vld [vmem:[#allocation10 + $0x2a8] sm:$0xf]
    %v2905 = vld [vmem:[#allocation10 + $0x2ac] sm:$0xf]
    %v2906 = vld [vmem:[#allocation10 + $0x2b0] sm:$0xf]
    %v2907 = vld [vmem:[#allocation10 + $0x2b4] sm:$0xf]
    %v2908 = vld [vmem:[#allocation10 + $0x2b8] sm:$0xf]
    %v2909 = vld [vmem:[#allocation10 + $0x2bc] sm:$0xf]
    %v2910 = vld [vmem:[#allocation10 + $0x2c0] sm:$0xf]
    %v2911 = vld [vmem:[#allocation10 + $0x2c4] sm:$0xf]
    %v2912 = vld [vmem:[#allocation10 + $0x2c8] sm:$0xf]
    %v2913 = vld [vmem:[#allocation10 + $0x2cc] sm:$0xf]
    %v2914 = vld [vmem:[#allocation10 + $0x2d0] sm:$0xf]
    %v2915 = vld [vmem:[#allocation10 + $0x2d4] sm:$0xf]
    %v2916 = vld [vmem:[#allocation10 + $0x2d8] sm:$0xf]
    %v2917 = vld [vmem:[#allocation10 + $0x2dc] sm:$0xf]
    %v2918 = vld [vmem:[#allocation10 + $0x2e0] sm:$0xf]
    %v2919 = vld [vmem:[#allocation10 + $0x2e4] sm:$0xf]
    %v2920 = vld [vmem:[#allocation10 + $0x2e8] sm:$0xf]
    %v2921 = vld [vmem:[#allocation10 + $0x2ec] sm:$0xf]
    %v2922 = vld [vmem:[#allocation10 + $0x2f0] sm:$0xf]
    %v2923 = vld [vmem:[#allocation10 + $0x2f4] sm:$0xf]
    %v2924 = vld [vmem:[#allocation10 + $0x2f8] sm:$0xf]
    %v2925 = vld [vmem:[#allocation10 + $0x2fc] sm:$0xf]
    %v2926 = vld [vmem:[#allocation10 + $0x300] sm:$0xf]
    %v2927 = vld [vmem:[#allocation10 + $0x304] sm:$0xf]
    %v2928 = vld [vmem:[#allocation10 + $0x308] sm:$0xf]
    %v2929 = vld [vmem:[#allocation10 + $0x30c] sm:$0xf]
    %v2930 = vld [vmem:[#allocation10 + $0x310] sm:$0xf]
    %v2931 = vld [vmem:[#allocation10 + $0x314] sm:$0xf]
    %v2932 = vld [vmem:[#allocation10 + $0x318] sm:$0xf]
    %v2933 = vld [vmem:[#allocation10 + $0x31c] sm:$0xf]
    %v2934 = vld [vmem:[#allocation10 + $0x320] sm:$0xf]
    %v2935 = vld [vmem:[#allocation10 + $0x324] sm:$0xf]
    %v2936 = vld [vmem:[#allocation10 + $0x328] sm:$0xf]
    %v2937 = vld [vmem:[#allocation10 + $0x32c] sm:$0xf]
    %v2938 = vld [vmem:[#allocation10 + $0x330] sm:$0xf]
    %v2939 = vld [vmem:[#allocation10 + $0x334] sm:$0xf]
    %v2940 = vld [vmem:[#allocation10 + $0x338] sm:$0xf]
    %v2941 = vld [vmem:[#allocation10 + $0x33c] sm:$0xf]
    %v2942 = vld [vmem:[#allocation10 + $0x340] sm:$0xf]
    %v2943 = vld [vmem:[#allocation10 + $0x344] sm:$0xf]
    %v2944 = vld [vmem:[#allocation10 + $0x348] sm:$0xf]
    %v2945 = vld [vmem:[#allocation10 + $0x34c] sm:$0xf]
    %v2946 = vld [vmem:[#allocation10 + $0x350] sm:$0xf]
    %v2947 = vld [vmem:[#allocation10 + $0x354] sm:$0xf]
    %v2948 = vld [vmem:[#allocation10 + $0x358] sm:$0xf]
    %v2949 = vld [vmem:[#allocation10 + $0x35c] sm:$0xf]
    %v2950 = vld [vmem:[#allocation10 + $0x360] sm:$0xf]
    %v2951 = vld [vmem:[#allocation10 + $0x364] sm:$0xf]
    %v2952 = vld [vmem:[#allocation10 + $0x368] sm:$0xf]
    %v2953 = vld [vmem:[#allocation10 + $0x36c] sm:$0xf]
    %v2954 = vld [vmem:[#allocation10 + $0x370] sm:$0xf]
    %v2955 = vld [vmem:[#allocation10 + $0x374] sm:$0xf]
    %v2956 = vld [vmem:[#allocation10 + $0x378] sm:$0xf]
    %v2957 = vld [vmem:[#allocation10 + $0x37c] sm:$0xf]
    %v2958 = vld [vmem:[#allocation10 + $0x380] sm:$0xf]
    %v2959 = vld [vmem:[#allocation10 + $0x384] sm:$0xf]
    %v2960 = vld [vmem:[#allocation10 + $0x388] sm:$0xf]
    %v2961 = vld [vmem:[#allocation10 + $0x38c] sm:$0xf]
    %v2962 = vld [vmem:[#allocation10 + $0x390] sm:$0xf]
    %v2963 = vld [vmem:[#allocation10 + $0x394] sm:$0xf]
    %v2964 = vld [vmem:[#allocation10 + $0x398] sm:$0xf]
    %v2965 = vld [vmem:[#allocation10 + $0x39c] sm:$0xf]
    %v2966 = vld [vmem:[#allocation10 + $0x3a0] sm:$0xf]
    %v2967 = vld [vmem:[#allocation10 + $0x3a4] sm:$0xf]
    %v2968 = vld [vmem:[#allocation10 + $0x3a8] sm:$0xf]
    %v2969 = vld [vmem:[#allocation10 + $0x3ac] sm:$0xf]
    %v2970 = vld [vmem:[#allocation10 + $0x3b0] sm:$0xf]
    %v2971 = vld [vmem:[#allocation10 + $0x3b4] sm:$0xf]
    %v2972 = vld [vmem:[#allocation10 + $0x3b8] sm:$0xf]
    %v2973 = vld [vmem:[#allocation10 + $0x3bc] sm:$0xf]
    %v2974 = vld [vmem:[%s13] sm:$0x1]
    %v2976 = vlaneseq
    %v2977 = vshrl.u32 %v2976, 7
    %v2978 = vsub.s32 0, %v2977
    %v2979 = vrot.slane %v2974, %v2978
    %v3221 = vunpack.c.l.b16 %v2734
    %v3222 = vunpack.c.l.b16 %v2735
    %v3223 = vunpack.c.l.b16 %v2736
    %v3224 = vunpack.c.l.b16 %v2737
    %v3225 = vunpack.c.l.b16 %v2738
    %v3226 = vunpack.c.l.b16 %v2739
    %v3227 = vunpack.c.l.b16 %v2740
    %v3228 = vunpack.c.l.b16 %v2741
    %v3229 = vunpack.c.l.b16 %v2742
    %v3230 = vunpack.c.l.b16 %v2743
    %v3231 = vunpack.c.l.b16 %v2744
    %v3232 = vunpack.c.l.b16 %v2745
    %v3233 = vunpack.c.l.b16 %v2746
    %v3234 = vunpack.c.l.b16 %v2747
    %v3235 = vunpack.c.l.b16 %v2748
    %v3236 = vunpack.c.l.b16 %v2749
    %v3237 = vunpack.c.l.b16 %v2750
    %v3238 = vunpack.c.l.b16 %v2751
    %v3239 = vunpack.c.l.b16 %v2752
    %v3240 = vunpack.c.l.b16 %v2753
    %v3241 = vunpack.c.l.b16 %v2754
    %v3242 = vunpack.c.l.b16 %v2755
    %v3243 = vunpack.c.l.b16 %v2756
    %v3244 = vunpack.c.l.b16 %v2757
    %v3245 = vunpack.c.l.b16 %v2758
    %v3246 = vunpack.c.l.b16 %v2759
    %v3247 = vunpack.c.l.b16 %v2760
    %v3248 = vunpack.c.l.b16 %v2761
    %v3249 = vunpack.c.l.b16 %v2762
    %v3250 = vunpack.c.l.b16 %v2763
    %v3251 = vunpack.c.l.b16 %v2764
    %v3252 = vunpack.c.l.b16 %v2765
    %v3253 = vunpack.c.l.b16 %v2766
    %v3254 = vunpack.c.l.b16 %v2767
    %v3255 = vunpack.c.l.b16 %v2768
    %v3256 = vunpack.c.l.b16 %v2769
    %v3257 = vunpack.c.l.b16 %v2770
    %v3258 = vunpack.c.l.b16 %v2771
    %v3259 = vunpack.c.l.b16 %v2772
    %v3260 = vunpack.c.l.b16 %v2773
    %v3261 = vunpack.c.l.b16 %v2774
    %v3262 = vunpack.c.l.b16 %v2775
    %v3263 = vunpack.c.l.b16 %v2776
    %v3264 = vunpack.c.l.b16 %v2777
    %v3265 = vunpack.c.l.b16 %v2778
    %v3266 = vunpack.c.l.b16 %v2779
    %v3267 = vunpack.c.l.b16 %v2780
    %v3268 = vunpack.c.l.b16 %v2781
    %v3269 = vunpack.c.l.b16 %v2782
    %v3270 = vunpack.c.l.b16 %v2783
    %v3271 = vunpack.c.l.b16 %v2784
    %v3272 = vunpack.c.l.b16 %v2785
    %v3273 = vunpack.c.l.b16 %v2786
    %v3274 = vunpack.c.l.b16 %v2787
    %v3275 = vunpack.c.l.b16 %v2788
    %v3276 = vunpack.c.l.b16 %v2789
    %v3277 = vunpack.c.l.b16 %v2790
    %v3278 = vunpack.c.l.b16 %v2791
    %v3279 = vunpack.c.l.b16 %v2792
    %v3280 = vunpack.c.l.b16 %v2793
    %v3281 = vunpack.c.l.b16 %v2794
    %v3282 = vunpack.c.l.b16 %v2795
    %v3283 = vunpack.c.l.b16 %v2796
    %v3284 = vunpack.c.l.b16 %v2797
    %v3285 = vunpack.c.l.b16 %v2798
    %v3286 = vunpack.c.l.b16 %v2799
    %v3287 = vunpack.c.l.b16 %v2800
    %v3288 = vunpack.c.l.b16 %v2801
    %v3289 = vunpack.c.l.b16 %v2802
    %v3290 = vunpack.c.l.b16 %v2803
    %v3291 = vunpack.c.l.b16 %v2804
    %v3292 = vunpack.c.l.b16 %v2805
    %v3293 = vunpack.c.l.b16 %v2806
    %v3294 = vunpack.c.l.b16 %v2807
    %v3295 = vunpack.c.l.b16 %v2808
    %v3296 = vunpack.c.l.b16 %v2809
    %v3297 = vunpack.c.l.b16 %v2810
    %v3298 = vunpack.c.l.b16 %v2811
    %v3299 = vunpack.c.l.b16 %v2812
    %v3300 = vunpack.c.l.b16 %v2813
    %v3301 = vunpack.c.l.b16 %v2814
    %v3302 = vunpack.c.l.b16 %v2815
    %v3303 = vunpack.c.l.b16 %v2816
    %v3304 = vunpack.c.l.b16 %v2817
    %v3305 = vunpack.c.l.b16 %v2818
    %v3306 = vunpack.c.l.b16 %v2819
    %v3307 = vunpack.c.l.b16 %v2820
    %v3308 = vunpack.c.l.b16 %v2821
    %v3309 = vunpack.c.l.b16 %v2822
    %v3310 = vunpack.c.l.b16 %v2823
    %v3311 = vunpack.c.l.b16 %v2824
    %v3312 = vunpack.c.l.b16 %v2825
    %v3313 = vunpack.c.l.b16 %v2826
    %v3314 = vunpack.c.l.b16 %v2827
    %v3315 = vunpack.c.l.b16 %v2828
    %v3316 = vunpack.c.l.b16 %v2829
    %v3317 = vunpack.c.l.b16 %v2830
    %v3318 = vunpack.c.l.b16 %v2831
    %v3319 = vunpack.c.l.b16 %v2832
    %v3320 = vunpack.c.l.b16 %v2833
    %v3321 = vunpack.c.l.b16 %v2834
    %v3322 = vunpack.c.l.b16 %v2835
    %v3323 = vunpack.c.l.b16 %v2836
    %v3324 = vunpack.c.l.b16 %v2837
    %v3325 = vunpack.c.l.b16 %v2838
    %v3326 = vunpack.c.l.b16 %v2839
    %v3327 = vunpack.c.l.b16 %v2840
    %v3328 = vunpack.c.l.b16 %v2841
    %v3329 = vunpack.c.l.b16 %v2842
    %v3330 = vunpack.c.l.b16 %v2843
    %v3331 = vunpack.c.l.b16 %v2844
    %v3332 = vunpack.c.l.b16 %v2845
    %v3333 = vunpack.c.l.b16 %v2846
    %v3334 = vunpack.c.l.b16 %v2847
    %v3335 = vunpack.c.l.b16 %v2848
    %v3336 = vunpack.c.l.b16 %v2849
    %v3337 = vunpack.c.l.b16 %v2850
    %v3338 = vunpack.c.l.b16 %v2851
    %v3339 = vunpack.c.l.b16 %v2852
    %v3340 = vunpack.c.l.b16 %v2853
    %v3341 = vunpack.c.l.b16 %v2854
    %v3342 = vunpack.c.l.b16 %v2855
    %v3343 = vunpack.c.l.b16 %v2856
    %v3344 = vunpack.c.l.b16 %v2857
    %v3345 = vunpack.c.l.b16 %v2858
    %v3346 = vunpack.c.l.b16 %v2859
    %v3347 = vunpack.c.l.b16 %v2860
    %v3348 = vunpack.c.l.b16 %v2861
    %v3349 = vunpack.c.l.b16 %v2862
    %v3350 = vunpack.c.l.b16 %v2863
    %v3351 = vunpack.c.l.b16 %v2864
    %v3352 = vunpack.c.l.b16 %v2865
    %v3353 = vunpack.c.l.b16 %v2866
    %v3354 = vunpack.c.l.b16 %v2867
    %v3355 = vunpack.c.l.b16 %v2868
    %v3356 = vunpack.c.l.b16 %v2869
    %v3357 = vunpack.c.l.b16 %v2870
    %v3358 = vunpack.c.l.b16 %v2871
    %v3359 = vunpack.c.l.b16 %v2872
    %v3360 = vunpack.c.l.b16 %v2873
    %v3361 = vunpack.c.l.b16 %v2874
    %v3362 = vunpack.c.l.b16 %v2875
    %v3363 = vunpack.c.l.b16 %v2876
    %v3364 = vunpack.c.l.b16 %v2877
    %v3365 = vunpack.c.l.b16 %v2878
    %v3366 = vunpack.c.l.b16 %v2879
    %v3367 = vunpack.c.l.b16 %v2880
    %v3368 = vunpack.c.l.b16 %v2881
    %v3369 = vunpack.c.l.b16 %v2882
    %v3370 = vunpack.c.l.b16 %v2883
    %v3371 = vunpack.c.l.b16 %v2884
    %v3372 = vunpack.c.l.b16 %v2885
    %v3373 = vunpack.c.l.b16 %v2886
    %v3374 = vunpack.c.l.b16 %v2887
    %v3375 = vunpack.c.l.b16 %v2888
    %v3376 = vunpack.c.l.b16 %v2889
    %v3377 = vunpack.c.l.b16 %v2890
    %v3378 = vunpack.c.l.b16 %v2891
    %v3379 = vunpack.c.l.b16 %v2892
    %v3380 = vunpack.c.l.b16 %v2893
    %v3381 = vunpack.c.l.b16 %v2894
    %v3382 = vunpack.c.l.b16 %v2895
    %v3383 = vunpack.c.l.b16 %v2896
    %v3384 = vunpack.c.l.b16 %v2897
    %v3385 = vunpack.c.l.b16 %v2898
    %v3386 = vunpack.c.l.b16 %v2899
    %v3387 = vunpack.c.l.b16 %v2900
    %v3388 = vunpack.c.l.b16 %v2901
    %v3389 = vunpack.c.l.b16 %v2902
    %v3390 = vunpack.c.l.b16 %v2903
    %v3391 = vunpack.c.l.b16 %v2904
    %v3392 = vunpack.c.l.b16 %v2905
    %v3393 = vunpack.c.l.b16 %v2906
    %v3394 = vunpack.c.l.b16 %v2907
    %v3395 = vunpack.c.l.b16 %v2908
    %v3396 = vunpack.c.l.b16 %v2909
    %v3397 = vunpack.c.l.b16 %v2910
    %v3398 = vunpack.c.l.b16 %v2911
    %v3399 = vunpack.c.l.b16 %v2912
    %v3400 = vunpack.c.l.b16 %v2913
    %v3401 = vunpack.c.l.b16 %v2914
    %v3402 = vunpack.c.l.b16 %v2915
    %v3403 = vunpack.c.l.b16 %v2916
    %v3404 = vunpack.c.l.b16 %v2917
    %v3405 = vunpack.c.l.b16 %v2918
    %v3406 = vunpack.c.l.b16 %v2919
    %v3407 = vunpack.c.l.b16 %v2920
    %v3408 = vunpack.c.l.b16 %v2921
    %v3409 = vunpack.c.l.b16 %v2922
    %v3410 = vunpack.c.l.b16 %v2923
    %v3411 = vunpack.c.l.b16 %v2924
    %v3412 = vunpack.c.l.b16 %v2925
    %v3413 = vunpack.c.l.b16 %v2926
    %v3414 = vunpack.c.l.b16 %v2927
    %v3415 = vunpack.c.l.b16 %v2928
    %v3416 = vunpack.c.l.b16 %v2929
    %v3417 = vunpack.c.l.b16 %v2930
    %v3418 = vunpack.c.l.b16 %v2931
    %v3419 = vunpack.c.l.b16 %v2932
    %v3420 = vunpack.c.l.b16 %v2933
    %v3421 = vunpack.c.l.b16 %v2934
    %v3422 = vunpack.c.l.b16 %v2935
    %v3423 = vunpack.c.l.b16 %v2936
    %v3424 = vunpack.c.l.b16 %v2937
    %v3425 = vunpack.c.l.b16 %v2938
    %v3426 = vunpack.c.l.b16 %v2939
    %v3427 = vunpack.c.l.b16 %v2940
    %v3428 = vunpack.c.l.b16 %v2941
    %v3429 = vunpack.c.l.b16 %v2942
    %v3430 = vunpack.c.l.b16 %v2943
    %v3431 = vunpack.c.l.b16 %v2944
    %v3432 = vunpack.c.l.b16 %v2945
    %v3433 = vunpack.c.l.b16 %v2946
    %v3434 = vunpack.c.l.b16 %v2947
    %v3435 = vunpack.c.l.b16 %v2948
    %v3436 = vunpack.c.l.b16 %v2949
    %v3437 = vunpack.c.l.b16 %v2950
    %v3438 = vunpack.c.l.b16 %v2951
    %v3439 = vunpack.c.l.b16 %v2952
    %v3440 = vunpack.c.l.b16 %v2953
    %v3441 = vunpack.c.l.b16 %v2954
    %v3442 = vunpack.c.l.b16 %v2955
    %v3443 = vunpack.c.l.b16 %v2956
    %v3444 = vunpack.c.l.b16 %v2957
    %v3445 = vunpack.c.l.b16 %v2958
    %v3446 = vunpack.c.l.b16 %v2959
    %v3447 = vunpack.c.l.b16 %v2960
    %v3448 = vunpack.c.l.b16 %v2961
    %v3449 = vunpack.c.l.b16 %v2962
    %v3450 = vunpack.c.l.b16 %v2963
    %v3451 = vunpack.c.l.b16 %v2964
    %v3452 = vunpack.c.l.b16 %v2965
    %v3453 = vunpack.c.l.b16 %v2966
    %v3454 = vunpack.c.l.b16 %v2967
    %v3455 = vunpack.c.l.b16 %v2968
    %v3456 = vunpack.c.l.b16 %v2969
    %v3457 = vunpack.c.l.b16 %v2970
    %v3458 = vunpack.c.l.b16 %v2971
    %v3459 = vunpack.c.l.b16 %v2972
    %v3460 = vunpack.c.l.b16 %v2973
    %v3461 = vpack.c.b16 %v3222, %v3221
    %v3462 = vpack.c.b16 %v3224, %v3223
    %v3463 = vpack.c.b16 %v3226, %v3225
    %v3464 = vpack.c.b16 %v3228, %v3227
    %v3465 = vpack.c.b16 %v3230, %v3229
    %v3466 = vpack.c.b16 %v3232, %v3231
    %v3467 = vpack.c.b16 %v3234, %v3233
    %v3468 = vpack.c.b16 %v3236, %v3235
    %v3469 = vpack.c.b16 %v3238, %v3237
    %v3470 = vpack.c.b16 %v3240, %v3239
    %v3471 = vpack.c.b16 %v3242, %v3241
    %v3472 = vpack.c.b16 %v3244, %v3243
    %v3473 = vpack.c.b16 %v3246, %v3245
    %v3474 = vpack.c.b16 %v3248, %v3247
    %v3475 = vpack.c.b16 %v3250, %v3249
    %v3476 = vpack.c.b16 %v3252, %v3251
    %v3477 = vpack.c.b16 %v3254, %v3253
    %v3478 = vpack.c.b16 %v3256, %v3255
    %v3479 = vpack.c.b16 %v3258, %v3257
    %v3480 = vpack.c.b16 %v3260, %v3259
    %v3481 = vpack.c.b16 %v3262, %v3261
    %v3482 = vpack.c.b16 %v3264, %v3263
    %v3483 = vpack.c.b16 %v3266, %v3265
    %v3484 = vpack.c.b16 %v3268, %v3267
    %v3485 = vpack.c.b16 %v3270, %v3269
    %v3486 = vpack.c.b16 %v3272, %v3271
    %v3487 = vpack.c.b16 %v3274, %v3273
    %v3488 = vpack.c.b16 %v3276, %v3275
    %v3489 = vpack.c.b16 %v3278, %v3277
    %v3490 = vpack.c.b16 %v3280, %v3279
    %v3491 = vpack.c.b16 %v3282, %v3281
    %v3492 = vpack.c.b16 %v3284, %v3283
    %v3493 = vpack.c.b16 %v3286, %v3285
    %v3494 = vpack.c.b16 %v3288, %v3287
    %v3495 = vpack.c.b16 %v3290, %v3289
    %v3496 = vpack.c.b16 %v3292, %v3291
    %v3497 = vpack.c.b16 %v3294, %v3293
    %v3498 = vpack.c.b16 %v3296, %v3295
    %v3499 = vpack.c.b16 %v3298, %v3297
    %v3500 = vpack.c.b16 %v3300, %v3299
    %v3501 = vpack.c.b16 %v3302, %v3301
    %v3502 = vpack.c.b16 %v3304, %v3303
    %v3503 = vpack.c.b16 %v3306, %v3305
    %v3504 = vpack.c.b16 %v3308, %v3307
    %v3505 = vpack.c.b16 %v3310, %v3309
    %v3506 = vpack.c.b16 %v3312, %v3311
    %v3507 = vpack.c.b16 %v3314, %v3313
    %v3508 = vpack.c.b16 %v3316, %v3315
    %v3509 = vpack.c.b16 %v3318, %v3317
    %v3510 = vpack.c.b16 %v3320, %v3319
    %v3511 = vpack.c.b16 %v3322, %v3321
    %v3512 = vpack.c.b16 %v3324, %v3323
    %v3513 = vpack.c.b16 %v3326, %v3325
    %v3514 = vpack.c.b16 %v3328, %v3327
    %v3515 = vpack.c.b16 %v3330, %v3329
    %v3516 = vpack.c.b16 %v3332, %v3331
    %v3517 = vpack.c.b16 %v3334, %v3333
    %v3518 = vpack.c.b16 %v3336, %v3335
    %v3519 = vpack.c.b16 %v3338, %v3337
    %v3520 = vpack.c.b16 %v3340, %v3339
    %v3521 = vpack.c.b16 %v3342, %v3341
    %v3522 = vpack.c.b16 %v3344, %v3343
    %v3523 = vpack.c.b16 %v3346, %v3345
    %v3524 = vpack.c.b16 %v3348, %v3347
    %v3525 = vpack.c.b16 %v3350, %v3349
    %v3526 = vpack.c.b16 %v3352, %v3351
    %v3527 = vpack.c.b16 %v3354, %v3353
    %v3528 = vpack.c.b16 %v3356, %v3355
    %v3529 = vpack.c.b16 %v3358, %v3357
    %v3530 = vpack.c.b16 %v3360, %v3359
    %v3531 = vpack.c.b16 %v3362, %v3361
    %v3532 = vpack.c.b16 %v3364, %v3363
    %v3533 = vpack.c.b16 %v3366, %v3365
    %v3534 = vpack.c.b16 %v3368, %v3367
    %v3535 = vpack.c.b16 %v3370, %v3369
    %v3536 = vpack.c.b16 %v3372, %v3371
    %v3537 = vpack.c.b16 %v3374, %v3373
    %v3538 = vpack.c.b16 %v3376, %v3375
    %v3539 = vpack.c.b16 %v3378, %v3377
    %v3540 = vpack.c.b16 %v3380, %v3379
    %v3541 = vpack.c.b16 %v3382, %v3381
    %v3542 = vpack.c.b16 %v3384, %v3383
    %v3543 = vpack.c.b16 %v3386, %v3385
    %v3544 = vpack.c.b16 %v3388, %v3387
    %v3545 = vpack.c.b16 %v3390, %v3389
    %v3546 = vpack.c.b16 %v3392, %v3391
    %v3547 = vpack.c.b16 %v3394, %v3393
    %v3548 = vpack.c.b16 %v3396, %v3395
    %v3549 = vpack.c.b16 %v3398, %v3397
    %v3550 = vpack.c.b16 %v3400, %v3399
    %v3551 = vpack.c.b16 %v3402, %v3401
    %v3552 = vpack.c.b16 %v3404, %v3403
    %v3553 = vpack.c.b16 %v3406, %v3405
    %v3554 = vpack.c.b16 %v3408, %v3407
    %v3555 = vpack.c.b16 %v3410, %v3409
    %v3556 = vpack.c.b16 %v3412, %v3411
    %v3557 = vpack.c.b16 %v3414, %v3413
    %v3558 = vpack.c.b16 %v3416, %v3415
    %v3559 = vpack.c.b16 %v3418, %v3417
    %v3560 = vpack.c.b16 %v3420, %v3419
    %v3561 = vpack.c.b16 %v3422, %v3421
    %v3562 = vpack.c.b16 %v3424, %v3423
    %v3563 = vpack.c.b16 %v3426, %v3425
    %v3564 = vpack.c.b16 %v3428, %v3427
    %v3565 = vpack.c.b16 %v3430, %v3429
    %v3566 = vpack.c.b16 %v3432, %v3431
    %v3567 = vpack.c.b16 %v3434, %v3433
    %v3568 = vpack.c.b16 %v3436, %v3435
    %v3569 = vpack.c.b16 %v3438, %v3437
    %v3570 = vpack.c.b16 %v3440, %v3439
    %v3571 = vpack.c.b16 %v3442, %v3441
    %v3572 = vpack.c.b16 %v3444, %v3443
    %v3573 = vpack.c.b16 %v3446, %v3445
    %v3574 = vpack.c.b16 %v3448, %v3447
    %v3575 = vpack.c.b16 %v3450, %v3449
    %v3576 = vpack.c.b16 %v3452, %v3451
    %v3577 = vpack.c.b16 %v3454, %v3453
    %v3578 = vpack.c.b16 %v3456, %v3455
    %v3579 = vpack.c.b16 %v3458, %v3457
    %v3580 = vpack.c.b16 %v3460, %v3459
    %3701 = vmatprep.subr.bf16.mxu0 0
    %3702 = vmatpush1.bf16.msra.mxu0 %v3461
    %3703 = vmatprep.subr.bf16.mxu0 0
    %3704 = vmatpush1.bf16.msra.mxu0 %v3462
    %3705 = vmatprep.subr.bf16.mxu0 0
    %3706 = vmatpush1.bf16.msra.mxu0 %v3463
    %3707 = vmatprep.subr.bf16.mxu0 0
    %3708 = vmatpush1.bf16.msra.mxu0 %v3464
    %3709 = vmatprep.subr.bf16.mxu0 0
    %3710 = vmatpush1.bf16.msra.mxu0 %v3465
    %3711 = vmatprep.subr.bf16.mxu0 0
    %3712 = vmatpush1.bf16.msra.mxu0 %v3466
    %3713 = vmatprep.subr.bf16.mxu0 0
    %3714 = vmatpush1.bf16.msra.mxu0 %v3467
    %3715 = vmatprep.subr.bf16.mxu0 0
    %3716 = vmatpush1.bf16.msra.mxu0 %v3468
    %3717 = vmatprep.subr.bf16.mxu0 0
    %3718 = vmatpush1.bf16.msra.mxu0 %v3469
    %3719 = vmatprep.subr.bf16.mxu0 0
    %3720 = vmatpush1.bf16.msra.mxu0 %v3470
    %3721 = vmatprep.subr.bf16.mxu0 0
    %3722 = vmatpush1.bf16.msra.mxu0 %v3471
    %3723 = vmatprep.subr.bf16.mxu0 0
    %3724 = vmatpush1.bf16.msra.mxu0 %v3472
    %3725 = vmatprep.subr.bf16.mxu0 0
    %3726 = vmatpush1.bf16.msra.mxu0 %v3473
    %3727 = vmatprep.subr.bf16.mxu0 0
    %3728 = vmatpush1.bf16.msra.mxu0 %v3474
    %3729 = vmatprep.subr.bf16.mxu0 0
    %3730 = vmatpush1.bf16.msra.mxu0 %v3475
    %3731 = vmatprep.subr.bf16.mxu0 0
    %3732 = vmatpush1.bf16.msra.mxu0 %v3476
    %3733 = vmatprep.mubr.bf16.mxu0 %v2720
    %3734 = vmatmul.mubr.bf16.gmra.mrb[0].mxu0 %v2719
    %v3735 = vpop.f32.mrb[0].mxu0
    %v3736 = vadd.f32 %v2979, %v3735
    %v3737 = vpop.f32.mrb[0].mxu0
    %v3738 = vpop.f32.mrb[0].mxu0
    %v3739 = vpop.f32.mrb[0].mxu0
    %3740 = vdwg.mxu0
    %3741 = vmatprep.subr.bf16.mxu0 0
    %3742 = vmatpush1.bf16.msra.mxu0 %v3477
    %3743 = vmatprep.subr.bf16.mxu0 0
    %3744 = vmatpush1.bf16.msra.mxu0 %v3478
    %3745 = vmatprep.subr.bf16.mxu0 0
    %3746 = vmatpush1.bf16.msra.mxu0 %v3479
    %3747 = vmatprep.subr.bf16.mxu0 0
    %3748 = vmatpush1.bf16.msra.mxu0 %v3480
    %3749 = vmatprep.subr.bf16.mxu0 0
    %3750 = vmatpush1.bf16.msra.mxu0 %v3481
    %3751 = vmatprep.subr.bf16.mxu0 0
    %3752 = vmatpush1.bf16.msra.mxu0 %v3482
    %3753 = vmatprep.subr.bf16.mxu0 0
    %3754 = vmatpush1.bf16.msra.mxu0 %v3483
    %3755 = vmatprep.subr.bf16.mxu0 0
    %3756 = vmatpush1.bf16.msra.mxu0 %v3484
    %3757 = vmatprep.subr.bf16.mxu0 0
    %3758 = vmatpush1.bf16.msra.mxu0 %v3485
    %3759 = vmatprep.subr.bf16.mxu0 0
    %3760 = vmatpush1.bf16.msra.mxu0 %v3486
    %3761 = vmatprep.subr.bf16.mxu0 0
    %3762 = vmatpush1.bf16.msra.mxu0 %v3487
    %3763 = vmatprep.subr.bf16.mxu0 0
    %3764 = vmatpush1.bf16.msra.mxu0 %v3488
    %3765 = vmatprep.subr.bf16.mxu0 0
    %3766 = vmatpush1.bf16.msra.mxu0 %v3489
    %3767 = vmatprep.subr.bf16.mxu0 0
    %3768 = vmatpush1.bf16.msra.mxu0 %v3490
    %3769 = vmatprep.subr.bf16.mxu0 0
    %3770 = vmatpush1.bf16.msra.mxu0 %v3491
    %3771 = vmatprep.subr.bf16.mxu0 0
    %3772 = vmatpush1.bf16.msra.mxu0 %v3492
    %3773 = vmatprep.mubr.bf16.mxu0 %v2722
    %3774 = vmatmul.mubr.bf16.gmra.mrb[0].mxu0 %v2721
    %v3775 = vpop.f32.mrb[0].mxu0
    %v3776 = vadd.f32 %v3736, %v3775
    %v3777 = vpop.f32.mrb[0].mxu0
    %v3778 = vpop.f32.mrb[0].mxu0
    %v3779 = vpop.f32.mrb[0].mxu0
    %3780 = vdwg.mxu0
    %3781 = vmatprep.subr.bf16.mxu0 0
    %3782 = vmatpush1.bf16.msra.mxu0 %v3493
    %3783 = vmatprep.subr.bf16.mxu0 0
    %3784 = vmatpush1.bf16.msra.mxu0 %v3494
    %3785 = vmatprep.subr.bf16.mxu0 0
    %3786 = vmatpush1.bf16.msra.mxu0 %v3495
    %3787 = vmatprep.subr.bf16.mxu0 0
    %3788 = vmatpush1.bf16.msra.mxu0 %v3496
    %3789 = vmatprep.subr.bf16.mxu0 0
    %3790 = vmatpush1.bf16.msra.mxu0 %v3497
    %3791 = vmatprep.subr.bf16.mxu0 0
    %3792 = vmatpush1.bf16.msra.mxu0 %v3498
    %3793 = vmatprep.subr.bf16.mxu0 0
    %3794 = vmatpush1.bf16.msra.mxu0 %v3499
    %3795 = vmatprep.subr.bf16.mxu0 0
    %3796 = vmatpush1.bf16.msra.mxu0 %v3500
    %3797 = vmatprep.subr.bf16.mxu0 0
    %3798 = vmatpush1.bf16.msra.mxu0 %v3501
    %3799 = vmatprep.subr.bf16.mxu0 0
    %3800 = vmatpush1.bf16.msra.mxu0 %v3502
    %3801 = vmatprep.subr.bf16.mxu0 0
    %3802 = vmatpush1.bf16.msra.mxu0 %v3503
    %3803 = vmatprep.subr.bf16.mxu0 0
    %3804 = vmatpush1.bf16.msra.mxu0 %v3504
    %3805 = vmatprep.subr.bf16.mxu0 0
    %3806 = vmatpush1.bf16.msra.mxu0 %v3505
    %3807 = vmatprep.subr.bf16.mxu0 0
    %3808 = vmatpush1.bf16.msra.mxu0 %v3506
    %3809 = vmatprep.subr.bf16.mxu0 0
    %3810 = vmatpush1.bf16.msra.mxu0 %v3507
    %3811 = vmatprep.subr.bf16.mxu0 0
    %3812 = vmatpush1.bf16.msra.mxu0 %v3508
    %3813 = vmatprep.mubr.bf16.mxu0 %v2724
    %3814 = vmatmul.mubr.bf16.gmra.mrb[0].mxu0 %v2723
    %v3815 = vpop.f32.mrb[0].mxu0
    %v3816 = vadd.f32 %v3776, %v3815
    %v3817 = vpop.f32.mrb[0].mxu0
    %v3818 = vpop.f32.mrb[0].mxu0
    %v3819 = vpop.f32.mrb[0].mxu0
    %3820 = vdwg.mxu0
    %3821 = vmatprep.subr.bf16.mxu0 0
    %3822 = vmatpush1.bf16.msra.mxu0 %v3509
    %3823 = vmatprep.subr.bf16.mxu0 0
    %3824 = vmatpush1.bf16.msra.mxu0 %v3510
    %3825 = vmatprep.subr.bf16.mxu0 0
    %3826 = vmatpush1.bf16.msra.mxu0 %v3511
    %3827 = vmatprep.subr.bf16.mxu0 0
    %3828 = vmatpush1.bf16.msra.mxu0 %v3512
    %3829 = vmatprep.subr.bf16.mxu0 0
    %3830 = vmatpush1.bf16.msra.mxu0 %v3513
    %3831 = vmatprep.subr.bf16.mxu0 0
    %3832 = vmatpush1.bf16.msra.mxu0 %v3514
    %3833 = vmatprep.subr.bf16.mxu0 0
    %3834 = vmatpush1.bf16.msra.mxu0 %v3515
    %3835 = vmatprep.subr.bf16.mxu0 0
    %3836 = vmatpush1.bf16.msra.mxu0 %v3516
    %3837 = vmatprep.subr.bf16.mxu0 0
    %3838 = vmatpush1.bf16.msra.mxu0 %v3517
    %3839 = vmatprep.subr.bf16.mxu0 0
    %3840 = vmatpush1.bf16.msra.mxu0 %v3518
    %3841 = vmatprep.subr.bf16.mxu0 0
    %3842 = vmatpush1.bf16.msra.mxu0 %v3519
    %3843 = vmatprep.subr.bf16.mxu0 0
    %3844 = vmatpush1.bf16.msra.mxu0 %v3520
    %3845 = vmatprep.subr.bf16.mxu0 0
    %3846 = vmatpush1.bf16.msra.mxu0 %v3521
    %3847 = vmatprep.subr.bf16.mxu0 0
    %3848 = vmatpush1.bf16.msra.mxu0 %v3522
    %3849 = vmatprep.subr.bf16.mxu0 0
    %3850 = vmatpush1.bf16.msra.mxu0 %v3523
    %3851 = vmatprep.subr.bf16.mxu0 0
    %3852 = vmatpush1.bf16.msra.mxu0 %v3524
    %3853 = vmatprep.mubr.bf16.mxu0 %v2726
    %3854 = vmatmul.mubr.bf16.gmra.mrb[0].mxu0 %v2725
    %v3855 = vpop.f32.mrb[0].mxu0
    %v3856 = vadd.f32 %v3816, %v3855
    %v3857 = vpop.f32.mrb[0].mxu0
    %v3858 = vpop.f32.mrb[0].mxu0
    %v3859 = vpop.f32.mrb[0].mxu0
    %3860 = vdwg.mxu0
    %3861 = vmatprep.subr.bf16.mxu0 0
    %3862 = vmatpush1.bf16.msra.mxu0 %v3525
    %3863 = vmatprep.subr.bf16.mxu0 0
    %3864 = vmatpush1.bf16.msra.mxu0 %v3526
    %3865 = vmatprep.subr.bf16.mxu0 0
    %3866 = vmatpush1.bf16.msra.mxu0 %v3527
    %3867 = vmatprep.subr.bf16.mxu0 0
    %3868 = vmatpush1.bf16.msra.mxu0 %v3528
    %3869 = vmatprep.subr.bf16.mxu0 0
    %3870 = vmatpush1.bf16.msra.mxu0 %v3529
    %3871 = vmatprep.subr.bf16.mxu0 0
    %3872 = vmatpush1.bf16.msra.mxu0 %v3530
    %3873 = vmatprep.subr.bf16.mxu0 0
    %3874 = vmatpush1.bf16.msra.mxu0 %v3531
    %3875 = vmatprep.subr.bf16.mxu0 0
    %3876 = vmatpush1.bf16.msra.mxu0 %v3532
    %3877 = vmatprep.subr.bf16.mxu0 0
    %3878 = vmatpush1.bf16.msra.mxu0 %v3533
    %3879 = vmatprep.subr.bf16.mxu0 0
    %3880 = vmatpush1.bf16.msra.mxu0 %v3534
    %3881 = vmatprep.subr.bf16.mxu0 0
    %3882 = vmatpush1.bf16.msra.mxu0 %v3535
    %3883 = vmatprep.subr.bf16.mxu0 0
    %3884 = vmatpush1.bf16.msra.mxu0 %v3536
    %3885 = vmatprep.subr.bf16.mxu0 0
    %3886 = vmatpush1.bf16.msra.mxu0 %v3537
    %3887 = vmatprep.subr.bf16.mxu0 0
    %3888 = vmatpush1.bf16.msra.mxu0 %v3538
    %3889 = vmatprep.subr.bf16.mxu0 0
    %3890 = vmatpush1.bf16.msra.mxu0 %v3539
    %3891 = vmatprep.subr.bf16.mxu0 0
    %3892 = vmatpush1.bf16.msra.mxu0 %v3540
    %3893 = vmatprep.mubr.bf16.mxu0 %v2728
    %3894 = vmatmul.mubr.bf16.gmra.mrb[0].mxu0 %v2727
    %v3895 = vpop.f32.mrb[0].mxu0
    %v3896 = vadd.f32 %v3856, %v3895
    %v3897 = vpop.f32.mrb[0].mxu0
    %v3898 = vpop.f32.mrb[0].mxu0
    %v3899 = vpop.f32.mrb[0].mxu0
    %3900 = vdwg.mxu0
    %3901 = vmatprep.subr.bf16.mxu0 0
    %3902 = vmatpush1.bf16.msra.mxu0 %v3541
    %3903 = vmatprep.subr.bf16.mxu0 0
    %3904 = vmatpush1.bf16.msra.mxu0 %v3542
    %3905 = vmatprep.subr.bf16.mxu0 0
    %3906 = vmatpush1.bf16.msra.mxu0 %v3543
    %3907 = vmatprep.subr.bf16.mxu0 0
    %3908 = vmatpush1.bf16.msra.mxu0 %v3544
    %3909 = vmatprep.subr.bf16.mxu0 0
    %3910 = vmatpush1.bf16.msra.mxu0 %v3545
    %3911 = vmatprep.subr.bf16.mxu0 0
    %3912 = vmatpush1.bf16.msra.mxu0 %v3546
    %3913 = vmatprep.subr.bf16.mxu0 0
    %3914 = vmatpush1.bf16.msra.mxu0 %v3547
    %3915 = vmatprep.subr.bf16.mxu0 0
    %3916 = vmatpush1.bf16.msra.mxu0 %v3548
    %3917 = vmatprep.subr.bf16.mxu0 0
    %3918 = vmatpush1.bf16.msra.mxu0 %v3549
    %3919 = vmatprep.subr.bf16.mxu0 0
    %3920 = vmatpush1.bf16.msra.mxu0 %v3550
    %3921 = vmatprep.subr.bf16.mxu0 0
    %3922 = vmatpush1.bf16.msra.mxu0 %v3551
    %3923 = vmatprep.subr.bf16.mxu0 0
    %3924 = vmatpush1.bf16.msra.mxu0 %v3552
    %3925 = vmatprep.subr.bf16.mxu0 0
    %3926 = vmatpush1.bf16.msra.mxu0 %v3553
    %3927 = vmatprep.subr.bf16.mxu0 0
    %3928 = vmatpush1.bf16.msra.mxu0 %v3554
    %3929 = vmatprep.subr.bf16.mxu0 0
    %3930 = vmatpush1.bf16.msra.mxu0 %v3555
    %3931 = vmatprep.subr.bf16.mxu0 0
    %3932 = vmatpush1.bf16.msra.mxu0 %v3556
    %3933 = vmatprep.mubr.bf16.mxu0 %v2730
    %3934 = vmatmul.mubr.bf16.gmra.mrb[0].mxu0 %v2729
    %v3935 = vpop.f32.mrb[0].mxu0
    %v3936 = vadd.f32 %v3896, %v3935
    %v3937 = vpop.f32.mrb[0].mxu0
    %v3938 = vpop.f32.mrb[0].mxu0
    %v3939 = vpop.f32.mrb[0].mxu0
    %3940 = vdwg.mxu0
    %3941 = vmatprep.subr.bf16.mxu0 0
    %3942 = vmatpush1.bf16.msra.mxu0 %v3557
    %3943 = vmatprep.subr.bf16.mxu0 0
    %3944 = vmatpush1.bf16.msra.mxu0 %v3558
    %3945 = vmatprep.subr.bf16.mxu0 0
    %3946 = vmatpush1.bf16.msra.mxu0 %v3559
    %3947 = vmatprep.subr.bf16.mxu0 0
    %3948 = vmatpush1.bf16.msra.mxu0 %v3560
    %3949 = vmatprep.subr.bf16.mxu0 0
    %3950 = vmatpush1.bf16.msra.mxu0 %v3561
    %3951 = vmatprep.subr.bf16.mxu0 0
    %3952 = vmatpush1.bf16.msra.mxu0 %v3562
    %3953 = vmatprep.subr.bf16.mxu0 0
    %3954 = vmatpush1.bf16.msra.mxu0 %v3563
    %3955 = vmatprep.subr.bf16.mxu0 0
    %3956 = vmatpush1.bf16.msra.mxu0 %v3564
    %3957 = vmatprep.subr.bf16.mxu0 0
    %3958 = vmatpush1.bf16.msra.mxu0 %v3565
    %3959 = vmatprep.subr.bf16.mxu0 0
    %3960 = vmatpush1.bf16.msra.mxu0 %v3566
    %3961 = vmatprep.subr.bf16.mxu0 0
    %3962 = vmatpush1.bf16.msra.mxu0 %v3567
    %3963 = vmatprep.subr.bf16.mxu0 0
    %3964 = vmatpush1.bf16.msra.mxu0 %v3568
    %3965 = vmatprep.subr.bf16.mxu0 0
    %3966 = vmatpush1.bf16.msra.mxu0 %v3569
    %3967 = vmatprep.subr.bf16.mxu0 0
    %3968 = vmatpush1.bf16.msra.mxu0 %v3570
    %3969 = vmatprep.subr.bf16.mxu0 0
    %3970 = vmatpush1.bf16.msra.mxu0 %v3571
    %3971 = vmatprep.subr.bf16.mxu0 0
    %3972 = vmatpush1.bf16.msra.mxu0 %v3572
    %3973 = vmatprep.mubr.bf16.mxu0 %v2732
    %3974 = vmatmul.mubr.bf16.gmra.mrb[0].mxu0 %v2731
    %v3975 = vpop.f32.mrb[0].mxu0
    %v3976 = vadd.f32 %v3936, %v3975
    %v3977 = vpop.f32.mrb[0].mxu0
    %v3978 = vpop.f32.mrb[0].mxu0
    %v3979 = vpop.f32.mrb[0].mxu0
    %3980 = vdwg.mxu0
    %3981 = vmatprep.subr.bf16.mxu0 0
    %3982 = vmatpush1.bf16.msra.mxu0 %v3573
    %3983 = vmatprep.subr.bf16.mxu0 0
    %3984 = vmatpush1.bf16.msra.mxu0 %v3574
    %3985 = vmatprep.subr.bf16.mxu0 0
    %3986 = vmatpush1.bf16.msra.mxu0 %v3575
    %3987 = vmatprep.subr.bf16.mxu0 0
    %3988 = vmatpush1.bf16.msra.mxu0 %v3576
    %3989 = vmatprep.subr.bf16.mxu0 0
    %3990 = vmatpush1.bf16.msra.mxu0 %v3577
    %3991 = vmatprep.subr.bf16.mxu0 0
    %3992 = vmatpush1.bf16.msra.mxu0 %v3578
    %3993 = vmatprep.subr.bf16.mxu0 0
    %3994 = vmatpush1.bf16.msra.mxu0 %v3579
    %3995 = vmatprep.subr.bf16.mxu0 0
    %3996 = vmatpush1.bf16.msra.mxu0 %v3580
    %3997 = vmatprep.subr.bf16.mxu0 0
    %3998 = vmatpush1.bf16.msra.mxu0 0
    %3999 = vmatprep.subr.bf16.mxu0 0
    %4000 = vmatpush1.bf16.msra.mxu0 0
    %4001 = vmatprep.subr.bf16.mxu0 0
    %4002 = vmatpush1.bf16.msra.mxu0 0
    %4003 = vmatprep.subr.bf16.mxu0 0
    %4004 = vmatpush1.bf16.msra.mxu0 0
    %4005 = vmatprep.subr.bf16.mxu0 0
    %4006 = vmatpush1.bf16.msra.mxu0 0
    %4007 = vmatprep.subr.bf16.mxu0 0
    %4008 = vmatpush1.bf16.msra.mxu0 0
    %4009 = vmatprep.subr.bf16.mxu0 0
    %4010 = vmatpush1.bf16.msra.mxu0 0
    %4011 = vmatprep.subr.bf16.mxu0 0
    %4012 = vmatpush1.bf16.msra.mxu0 0
    %4013 = vmatprep.mubr.bf16.mxu0 0
    %4014 = vmatmul.mubr.bf16.gmra.mrb[0].mxu0 %v2733
    %v4015 = vpop.f32.mrb[0].mxu0
    %v4016 = vadd.f32 %v3976, %v4015
    %v4017 = vpop.f32.mrb[0].mxu0
    %v4018 = vpop.f32.mrb[0].mxu0
    %v4019 = vpop.f32.mrb[0].mxu0
    %4020 = vdwg.mxu0
    %v4021 = vmax.f32 %v4016, 0.0
    %v4022 = vpack.c.bf16 %v4021, %v4021
    %v4023 = vld [vmem:[%s14] sm:$0xf]
    %v4024 = vld [vmem:[%s14 + $0x4] sm:$0xf]
    %v4025 = vld [vmem:[%s14 + $0x8] sm:$0xf]
    %v4026 = vld [vmem:[%s14 + $0xc] sm:$0xf]
    %v4027 = vld [vmem:[%s14 + $0x10] sm:$0xf]
    %v4028 = vld [vmem:[%s14 + $0x14] sm:$0xf]
    %v4029 = vld [vmem:[%s14 + $0x18] sm:$0xf]
    %v4030 = vld [vmem:[%s14 + $0x1c] sm:$0xf]
    %v4031 = vld [vmem:[%s14 + $0x20] sm:$0xf]
    %v4032 = vld [vmem:[%s14 + $0x24] sm:$0xf]
    %v4033 = vld [vmem:[%s14 + $0x28] sm:$0xf]
    %v4034 = vld [vmem:[%s14 + $0x2c] sm:$0xf]
    %v4035 = vld [vmem:[%s14 + $0x30] sm:$0xf]
    %v4036 = vld [vmem:[%s14 + $0x34] sm:$0xf]
    %v4037 = vld [vmem:[%s14 + $0x38] sm:$0xf]
    %v4038 = vld [vmem:[%s14 + $0x3c] sm:$0xf]
    %v4039 = vld [vmem:[%s15] sm:$0x1]
    %v4041 = vlaneseq
    %v4042 = vshrl.u32 %v4041, 7
    %v4043 = vsub.s32 0, %v4042
    %v4044 = vrot.slane %v4039, %v4043
    %v4062 = vunpack.c.l.b16 %v4023
    %v4063 = vunpack.c.l.b16 %v4024
    %v4064 = vunpack.c.l.b16 %v4025
    %v4065 = vunpack.c.l.b16 %v4026
    %v4066 = vunpack.c.l.b16 %v4027
    %v4067 = vunpack.c.l.b16 %v4028
    %v4068 = vunpack.c.l.b16 %v4029
    %v4069 = vunpack.c.l.b16 %v4030
    %v4070 = vunpack.c.l.b16 %v4031
    %v4071 = vunpack.c.l.b16 %v4032
    %v4072 = vunpack.c.l.b16 %v4033
    %v4073 = vunpack.c.l.b16 %v4034
    %v4074 = vunpack.c.l.b16 %v4035
    %v4075 = vunpack.c.l.b16 %v4036
    %v4076 = vunpack.c.l.b16 %v4037
    %v4077 = vunpack.c.l.b16 %v4038
    %v4078 = vpack.c.b16 %v4063, %v4062
    %v4079 = vpack.c.b16 %v4065, %v4064
    %v4080 = vpack.c.b16 %v4067, %v4066
    %v4081 = vpack.c.b16 %v4069, %v4068
    %v4082 = vpack.c.b16 %v4071, %v4070
    %v4083 = vpack.c.b16 %v4073, %v4072
    %v4084 = vpack.c.b16 %v4075, %v4074
    %v4085 = vpack.c.b16 %v4077, %v4076
    %4094 = vmatprep.subr.bf16.mxu0 0
    %4095 = vmatpush1.bf16.msra.mxu0 %v4078
    %4096 = vmatprep.subr.bf16.mxu0 0
    %4097 = vmatpush1.bf16.msra.mxu0 %v4079
    %4098 = vmatprep.subr.bf16.mxu0 0
    %4099 = vmatpush1.bf16.msra.mxu0 %v4080
    %4100 = vmatprep.subr.bf16.mxu0 0
    %4101 = vmatpush1.bf16.msra.mxu0 %v4081
    %4102 = vmatprep.subr.bf16.mxu0 0
    %4103 = vmatpush1.bf16.msra.mxu0 %v4082
    %4104 = vmatprep.subr.bf16.mxu0 0
    %4105 = vmatpush1.bf16.msra.mxu0 %v4083
    %4106 = vmatprep.subr.bf16.mxu0 0
    %4107 = vmatpush1.bf16.msra.mxu0 %v4084
    %4108 = vmatprep.subr.bf16.mxu0 0
    %4109 = vmatpush1.bf16.msra.mxu0 %v4085
    %4110 = vmatprep.subr.bf16.mxu0 0
    %4111 = vmatpush1.bf16.msra.mxu0 0
    %4112 = vmatprep.subr.bf16.mxu0 0
    %4113 = vmatpush1.bf16.msra.mxu0 0
    %4114 = vmatprep.subr.bf16.mxu0 0
    %4115 = vmatpush1.bf16.msra.mxu0 0
    %4116 = vmatprep.subr.bf16.mxu0 0
    %4117 = vmatpush1.bf16.msra.mxu0 0
    %4118 = vmatprep.subr.bf16.mxu0 0
    %4119 = vmatpush1.bf16.msra.mxu0 0
    %4120 = vmatprep.subr.bf16.mxu0 0
    %4121 = vmatpush1.bf16.msra.mxu0 0
    %4122 = vmatprep.subr.bf16.mxu0 0
    %4123 = vmatpush1.bf16.msra.mxu0 0
    %4124 = vmatprep.subr.bf16.mxu0 0
    %4125 = vmatpush1.bf16.msra.mxu0 0
    %4126 = vmatprep.mubr.bf16.mxu0 0
    %4127 = vmatmul.mubr.bf16.gmra.mrb[0].mxu0 %v4022
    %v4128 = vpop.f32.mrb[0].mxu0
    %v4129 = vadd.f32 %v4044, %v4128
    %v4130 = vpop.f32.mrb[0].mxu0
    %v4131 = vpop.f32.mrb[0].mxu0
    %v4132 = vpop.f32.mrb[0].mxu0
    %4133 = vdwg.mxu0
    %vm4134 = vcmask 123904
    %4135 = vst.msk [vmem:[#allocation11] sm:$0x3] %vm4134, %v4129
    // Predicated region
    $region86: #{tpu_custom_call.1} parent=1 // pred_check
      _
    $region87: #{tpu_custom_call.1} parent=1 // pred_check_branch
      %4137 = sbr.rel (0) target = $region89
    $region88: #{tpu_custom_call.1} parent=1 // pred_region
      %s4139 = ssub.s32 32, 32
      %4140 = vsyncadd [#allocation4], %s4139
      %s4142 = sshll.u32 [#allocation11], 4
      %s4143 = int_to_ptr.vmem [resolvable:$true] %s4142
      %4145 = dma.vmem_to_hbm [thread:$0]  %s4143, 32, %s16, [#allocation4]
    $region89: #{tpu_custom_call.1} parent=1 // pred_fallthru
      _
    // Predicated region
    $region90: #{tpu_custom_call.1} parent=1 // pred_check
      _
    $region91: #{tpu_custom_call.1} parent=1 // pred_check_branch
      %4147 = sbr.rel (0) target = $region93
    $region92: #{tpu_custom_call.1} parent=1 // pred_region
      %4148 = dma.done [#allocation4], 32
    $region93: #{tpu_custom_call.1} parent=1 // pred_fallthru
      _
    %4149 = vsyncpa [#allocation3], 1
    %4150 = vsyncpa [#allocation6], 1
    %4151 = vsyncpa [#allocation9], 1
    %4152 = vsyncpa [#allocation4], 1

</llo_original>
